<compile_context>
chip_gen: v5e
topology: v5e:2x2
jax: 0.10.0
libtpu: 0.0.40
codegen_flags: <defaults>
</compile_context>

<pallas_src>
import functools

import jax
import jax.numpy as jnp
from jax.experimental import pallas as pl
from jax.experimental.pallas import tpu as pltpu


# ---------------------------------------------------------------------------
# The single fused kernel (one grid step == B images stacked along M)
# ---------------------------------------------------------------------------
def _extractor_kernel(x_ref, mask_ref, w_in_ref, b_in_ref, w_body_ref,
                      b_body_ref, w_out_t_ref, b_out_ref, out_ref,
                      bufx_ref, bufh_ref, slab_ref, *, wp, m_tot, g, cm,
                      num_rb):
    """Whole extractor forward for B stacked images, activations in VMEM.

    Flat spatial layout: each image contributes `mrows` rows; row r of an
    image is position (h, w) = (r // wp, r % wp) of its zero-padded (Hp, Wp)
    grid (rows >= Hp*Wp are dummy lane-padding rows).  A 3x3 conv is an
    im2col slab built from 9 statically shifted row-slab copies followed by a
    single (M, 9*cm) x (9*cm, cm) MXU dot.  Shifted reads only produce garbage
    at pad/dummy rows, which are re-zeroed with `mask` after every conv, so
    interior rows stay exact and stacked images never contaminate each other
    (interior reach is at most pspat-1 < mrows within each image's block).
    """
    f32 = jnp.float32
    kdim = 9 * cm

    # Zero ONLY the guard rows; rows [g, g+m_tot) are fully overwritten before
    # every read.  Keep this per-step (each core has private scratch under
    # "parallel" semantics, so it must not be gated on program_id == 0).
    zguard = jnp.zeros((g, cm), f32)
    bufx_ref[0:g, :] = zguard
    bufx_ref[g + m_tot:g + m_tot + g, :] = zguard
    bufh_ref[0:g, :] = zguard
    bufh_ref[g + m_tot:g + m_tot + g, :] = zguard

    mask = mask_ref[...]                                        # (m_tot, 1)
    offs = [(ky - 1) * wp + (kx - 1) for ky in range(3) for kx in range(3)]

    def conv3x3(buf_ref, conv_idx):
        # im2col: 9 shifted row-slab copies -> one K=9*cm MXU matmul.
        for t in range(9):
            slab_ref[:, t * cm:(t + 1) * cm] = (
                buf_ref[g + offs[t]:g + offs[t] + m_tot, :])
        base = conv_idx * kdim
        acc = jnp.dot(slab_ref[...], w_body_ref[base:base + kdim, :],
                      preferred_element_type=f32)
        return acc + b_body_ref[conv_idx:conv_idx + 1, :]

    # Fused AvgPool2d(2,2) + in_conv(1x1): the wrapper packed the 4 pool taps
    # into the channel dim and folded the 0.25 factor into w_in.  The input
    # arrives channel-major (tapc, m_tot) so its DMA is lane-dense; contract
    # on axis 0 of both operands (TN dot) -> (m_tot, cm).
    x = jax.lax.dot_general(x_ref[...], w_in_ref[...],
                            dimension_numbers=(((0,), (0,)), ((), ())),
                            preferred_element_type=f32)
    x = (x + b_in_ref[...]) * mask

    # Body: num_rb x ResnetBlock_light, entirely in VMEM.
    for rb in range(num_rb):
        bufx_ref[g:g + m_tot, :] = x
        h = jnp.maximum(conv3x3(bufx_ref, rb * 2 + 0), 0.0) * mask  # block1+ReLU
        bufh_ref[g:g + m_tot, :] = h
        # Re-read the skip branch from VMEM so `x` does not stay live in vregs
        # across the second conv (low register pressure with batched M).
        x = (conv3x3(bufh_ref, rb * 2 + 1) + bufx_ref[g:g + m_tot, :]) * mask

    # out_conv (1x1), emitted transposed -> lane-dense (cout, m_tot) store.
    yt = jax.lax.dot_general(w_out_t_ref[...], x,
                             dimension_numbers=(((1,), (1,)), ((), ())),
                             preferred_element_type=f32)
    out_ref[...] = (yt + b_out_ref[...]).astype(out_ref.dtype)


# ---------------------------------------------------------------------------
# Wrapper: layout plumbing only (NCHW <-> flat padded layout, weight packing)
# ---------------------------------------------------------------------------
def _largest_divisor_leq(n, cap):
    cap = max(1, min(n, cap))
    b = 1
    for d in range(1, cap + 1):
        if n % d == 0:
            b = d
    return b


def extractor_forward(x_nchw, params, *, down=True, max_images_per_step=8):
    """extractor.forward for an NCHW input; returns an NCHW output."""
    N, cin, H, W = x_nchw.shape
    cm = params["w_in"].shape[1]            # inter_c
    cout = params["w_out"].shape[1]         # out_c
    num_rb = params["w1"].shape[0]

    x = jnp.transpose(x_nchw, (0, 2, 3, 1))                 # NHWC

    if down:
        # Pack the 2x2 average-pool taps into the channel dim (layout only);
        # the averaging itself is folded into the in_conv matmul weights.
        assert H % 2 == 0 and W % 2 == 0
        ho, wo = H // 2, W // 2
        x = x.reshape(N, ho, 2, wo, 2, cin).transpose(0, 1, 3, 2, 4, 5)
        x = x.reshape(N, ho, wo, 4 * cin)
        w_in_eff = 0.25 * jnp.tile(params["w_in"], (4, 1))  # (4*cin, cm)
    else:
        ho, wo = H, W
        w_in_eff = params["w_in"]

    tapc = x.shape[-1]
    hp, wp = ho + 2, wo + 2                  # zero-padded grid for the 3x3 convs
    pspat = hp * wp
    mrows = max(128, ((pspat + 127) // 128) * 128)   # lane-dense flat size / image
    g = ((wp + 1 + 7) // 8) * 8              # guard rows >= wp + 1, 8-aligned

    # Image batching along the M axis; keep >= 2 grid steps when N >= 2 so the
    # "parallel" grid axis shards across both TensorCores on v7x.
    cap = max_images_per_step if N < 2 else min(max_images_per_step,
                                                max(1, N // 2))
    B = _largest_divisor_leq(N, cap)
    steps = N // B
    m_tot = B * mrows

    # Flat, zero-padded, lane-padded spatial layout; then channel-major
    # (tapc on sublanes, spatial on lanes) so the HBM->VMEM DMA is lane-dense.
    xp = jnp.pad(x, ((0, 0), (1, 1), (1, 1), (0, 0))).reshape(N, pspat, tapc)
    x_flat = jnp.pad(xp, ((0, 0), (0, mrows - pspat), (0, 0)))   # (N, mrows, tapc)
    x_t = jnp.transpose(x_flat, (0, 2, 1))                       # (N, tapc, mrows)
    x_t = x_t.reshape(steps, B, tapc, mrows).transpose(0, 2, 1, 3)
    x_t = x_t.reshape(steps, tapc, m_tot)                        # (steps, tapc, B*mrows)

    # Interior (non-pad, non-dummy) row mask, tiled per image in the step.
    r = jnp.arange(pspat)
    interior = ((r // wp >= 1) & (r // wp <= ho) &
                (r % wp >= 1) & (r % wp <= wo)).astype(jnp.float32)
    mask1 = jnp.pad(interior, (0, mrows - pspat))
    mask = jnp.tile(mask1, (B,)).reshape(m_tot, 1)

    # Pack body conv weights into one (num_rb*2*9*cm, cm) matrix, tap-major,
    # matching the im2col slab column order inside the kernel.
    mats, brows = [], []
    for rb in range(num_rb):
        mats.append(params["w1"][rb].reshape(9 * cm, cm))
        mats.append(params["w2"][rb].reshape(9 * cm, cm))
        brows.append(params["b1"][rb])
        brows.append(params["b2"][rb])
    w_body = jnp.concatenate(mats, axis=0)
    b_body = jnp.stack(brows, axis=0)

    b_in2 = params["b_in"].reshape(1, cm)
    w_out_t = params["w_out"].T                              # (out_c, cm)
    b_out2 = params["b_out"].reshape(cout, 1)

    kernel = functools.partial(_extractor_kernel, wp=wp, m_tot=m_tot, g=g,
                               cm=cm, num_rb=num_rb)

    out = pl.pallas_call(
        kernel,
        out_shape=jax.ShapeDtypeStruct((steps, cout, m_tot), x_nchw.dtype),
        grid=(steps,),
        in_specs=[
            pl.BlockSpec((None, tapc, m_tot), lambda s: (s, 0, 0)),
            pl.BlockSpec((m_tot, 1), lambda s: (0, 0)),
            pl.BlockSpec((tapc, cm), lambda s: (0, 0)),
            pl.BlockSpec((1, cm), lambda s: (0, 0)),
            pl.BlockSpec((num_rb * 2 * 9 * cm, cm), lambda s: (0, 0)),
            pl.BlockSpec((num_rb * 2, cm), lambda s: (0, 0)),
            pl.BlockSpec((cout, cm), lambda s: (0, 0)),
            pl.BlockSpec((cout, 1), lambda s: (0, 0)),
        ],
        out_specs=pl.BlockSpec((None, cout, m_tot), lambda s: (s, 0, 0)),
        scratch_shapes=[pltpu.VMEM((m_tot + 2 * g, cm), jnp.float32),
                        pltpu.VMEM((m_tot + 2 * g, cm), jnp.float32),
                        pltpu.VMEM((m_tot, 9 * cm), jnp.float32)],
        compiler_params=pltpu.CompilerParams(
            dimension_semantics=("parallel",)),
    )(x_t, mask, w_in_eff, b_in2, w_body, b_body, w_out_t, b_out2)

    # (steps, cout, B*mrows) -> strip lane padding + conv-pad ring -> NCHW.
    y = out.reshape(steps, cout, B, mrows).transpose(0, 2, 1, 3)
    y = y.reshape(N, cout, mrows)[:, :, :pspat].reshape(N, cout, hp, wp)
    return y[:, :, 1:1 + ho, 1:1 + wo]


# ---------------------------------------------------------------------------
# Pure-JAX reference (numeric verification only)
# ---------------------------------------------------------------------------
def _conv3x3_ref(x, w_hwio, b):
    y = jax.lax.conv_general_dilated(
        x, w_hwio, window_strides=(1, 1), padding=((1, 1), (1, 1)),
        dimension_numbers=("NHWC", "HWIO", "NHWC"))
    return y + b


def extractor_ref(x_nchw, params, *, down=True):
    x = jnp.transpose(x_nchw, (0, 2, 3, 1))
    if down:
        N, H, W, C = x.shape
        x = x.reshape(N, H // 2, 2, W // 2, 2, C).mean(axis=(2, 4))
    x = jnp.einsum("nhwc,cd->nhwd", x, params["w_in"]) + params["b_in"]
    for rb in range(params["w1"].shape[0]):
        h = jnp.maximum(_conv3x3_ref(x, params["w1"][rb], params["b1"][rb]), 0.0)
        h = _conv3x3_ref(h, params["w2"][rb], params["b2"][rb])
        x = h + x
    y = jnp.einsum("nhwc,cd->nhwd", x, params["w_out"]) + params["b_out"]
    return jnp.transpose(y, (0, 3, 1, 2))


def make_params(key, in_c, inter_c, out_c, nums_rb):
    ks = jax.random.split(key, 8)
    s = 0.1
    return {
        "w_in": s * jax.random.normal(ks[0], (in_c, inter_c), jnp.float32),
        "b_in": s * jax.random.normal(ks[1], (inter_c,), jnp.float32),
        "w1": s * jax.random.normal(ks[2], (nums_rb, 3, 3, inter_c, inter_c), jnp.float32),
        "b1": s * jax.random.normal(ks[3], (nums_rb, inter_c), jnp.float32),
        "w2": s * jax.random.normal(ks[4], (nums_rb, 3, 3, inter_c, inter_c), jnp.float32),
        "b2": s * jax.random.normal(ks[5], (nums_rb, inter_c), jnp.float32),
        "w_out": s * jax.random.normal(ks[6], (inter_c, out_c), jnp.float32),
        "b_out": s * jax.random.normal(ks[7], (out_c,), jnp.float32),
    }


if __name__ == "__main__":
    key = jax.random.PRNGKey(0)
    kx, kp = jax.random.split(key)

    # extractor(in_c=4, inter_c=32, out_c=4, nums_rb=2, down=True)
    N, IN_C, H, W = 2, 4, 16, 16
    INTER_C, OUT_C, NUM_RB = 32, 4, 2

    x = jax.random.normal(kx, (N, IN_C, H, W), jnp.float32)   # PyTorch NCHW
    params = make_params(kp, IN_C, INTER_C, OUT_C, NUM_RB)

    fwd = jax.jit(functools.partial(extractor_forward, down=True))
    y = jax.block_until_ready(fwd(x, params))

    y_ref = extractor_ref(x, params, down=True)
    assert y.shape == (N, OUT_C, H // 2, W // 2), y.shape
    err = float(jnp.max(jnp.abs(y - y_ref)))
    assert jnp.allclose(y, y_ref, atol=2e-3, rtol=2e-3), err
    print("KERNEL_OK")
</pallas_src>

<mosaic_0001>
module attributes {stable_mosaic.version = 11 : i64} {
  func.func @_extractor_kernel(%arg0: i32, %arg1: memref<1x16x128xf32, #tpu.memory_space<vmem>>, %arg2: memref<128x1xf32, #tpu.memory_space<vmem>>, %arg3: memref<16x32xf32, #tpu.memory_space<vmem>>, %arg4: memref<1x32xf32, #tpu.memory_space<vmem>>, %arg5: memref<1152x32xf32, #tpu.memory_space<vmem>>, %arg6: memref<4x32xf32, #tpu.memory_space<vmem>>, %arg7: memref<4x32xf32, #tpu.memory_space<vmem>>, %arg8: memref<4x1xf32, #tpu.memory_space<vmem>>, %arg9: memref<1x4x128xf32, #tpu.memory_space<vmem>>, %arg10: memref<160x32xf32, #tpu.memory_space<vmem>>, %arg11: memref<160x32xf32, #tpu.memory_space<vmem>>, %arg12: memref<128x288xf32, #tpu.memory_space<vmem>>) attributes {dimension_semantics = [#tpu.dimension_semantics<parallel>], iteration_bounds = array<i64: 2>, scalar_prefetch = 0 : i64, scratch_operands = 3 : i64, tpu.core_type = #tpu.core_type<tc>, window_params = [{transform_indices = @transform_0, window_bounds = array<i64: 1, 16, 128>}, {pipeline_mode = #tpu.pipeline_mode<synchronous>, transform_indices = @transform_1, window_bounds = array<i64: 128, 1>}, {pipeline_mode = #tpu.pipeline_mode<synchronous>, transform_indices = @transform_2, window_bounds = array<i64: 16, 32>}, {pipeline_mode = #tpu.pipeline_mode<synchronous>, transform_indices = @transform_3, window_bounds = array<i64: 1, 32>}, {pipeline_mode = #tpu.pipeline_mode<synchronous>, transform_indices = @transform_4, window_bounds = array<i64: 1152, 32>}, {pipeline_mode = #tpu.pipeline_mode<synchronous>, transform_indices = @transform_5, window_bounds = array<i64: 4, 32>}, {pipeline_mode = #tpu.pipeline_mode<synchronous>, transform_indices = @transform_6, window_bounds = array<i64: 4, 32>}, {pipeline_mode = #tpu.pipeline_mode<synchronous>, transform_indices = @transform_7, window_bounds = array<i64: 4, 1>}, {transform_indices = @transform_8, window_bounds = array<i64: 1, 4, 128>}]} {
    %cst = arith.constant 0.000000e+00 : f32
    %0 = vector.broadcast %cst : f32 to vector<16x32xf32>
    %c0 = arith.constant 0 : index
    %c0_0 = arith.constant 0 : index
    %1 = vector.load %arg10[%c0, %c0_0] : memref<160x32xf32, #tpu.memory_space<vmem>>, vector<16x32xf32>
    tpu.vector_store %arg10[%c0, %c0_0], %0 {strides = array<i32>} : memref<160x32xf32, #tpu.memory_space<vmem>>, vector<16x32xf32>,
    %c144 = arith.constant 144 : index
    %c0_1 = arith.constant 0 : index
    %2 = vector.load %arg10[%c144, %c0_1] : memref<160x32xf32, #tpu.memory_space<vmem>>, vector<16x32xf32>
    tpu.vector_store %arg10[%c144, %c0_1], %0 {strides = array<i32>} : memref<160x32xf32, #tpu.memory_space<vmem>>, vector<16x32xf32>,
    %c0_2 = arith.constant 0 : index
    %c0_3 = arith.constant 0 : index
    %3 = vector.load %arg11[%c0_2, %c0_3] : memref<160x32xf32, #tpu.memory_space<vmem>>, vector<16x32xf32>
    tpu.vector_store %arg11[%c0_2, %c0_3], %0 {strides = array<i32>} : memref<160x32xf32, #tpu.memory_space<vmem>>, vector<16x32xf32>,
    %c144_4 = arith.constant 144 : index
    %c0_5 = arith.constant 0 : index
    %4 = vector.load %arg11[%c144_4, %c0_5] : memref<160x32xf32, #tpu.memory_space<vmem>>, vector<16x32xf32>
    tpu.vector_store %arg11[%c144_4, %c0_5], %0 {strides = array<i32>} : memref<160x32xf32, #tpu.memory_space<vmem>>, vector<16x32xf32>,
    %c0_6 = arith.constant 0 : index
    %c0_7 = arith.constant 0 : index
    %5 = vector.load %arg2[%c0_6, %c0_7] : memref<128x1xf32, #tpu.memory_space<vmem>>, vector<128x1xf32>
    %c0_8 = arith.constant 0 : index
    %c0_9 = arith.constant 0 : index
    %c0_10 = arith.constant 0 : index
    %6 = vector.load %arg1[%c0_8, %c0_9, %c0_10] : memref<1x16x128xf32, #tpu.memory_space<vmem>>, vector<1x16x128xf32>
    %7 = vector.shape_cast %6 : vector<1x16x128xf32> to vector<16x128xf32>
    %c0_11 = arith.constant 0 : index
    %c0_12 = arith.constant 0 : index
    %8 = vector.load %arg3[%c0_11, %c0_12] : memref<16x32xf32, #tpu.memory_space<vmem>>, vector<16x32xf32>
    %cst_13 = arith.constant dense<0.000000e+00> : vector<128x32xf32>
    %9 = tpu.matmul %7, %8, %cst_13 {dimension_numbers = #tpu.dot_dimension_numbers<[0], [0], [1], [1], [0, 1, 1, 1], [], []>} : vector<16x128xf32>, vector<16x32xf32>, vector<128x32xf32> -> vector<128x32xf32>
    %c0_14 = arith.constant 0 : index
    %c0_15 = arith.constant 0 : index
    %10 = vector.load %arg4[%c0_14, %c0_15] : memref<1x32xf32, #tpu.memory_space<vmem>>, vector<1x32xf32>
    %11 = vector.broadcast %10 : vector<1x32xf32> to vector<128x32xf32>
    %12 = arith.addf %9, %11 : vector<128x32xf32>
    %13 = vector.broadcast %5 : vector<128x1xf32> to vector<128x32xf32>
    %14 = arith.mulf %12, %13 : vector<128x32xf32>
    %c16 = arith.constant 16 : index
    %c0_16 = arith.constant 0 : index
    %15 = vector.load %arg10[%c16, %c0_16] : memref<160x32xf32, #tpu.memory_space<vmem>>, vector<128x32xf32>
    tpu.vector_store %arg10[%c16, %c0_16], %14 {strides = array<i32>} : memref<160x32xf32, #tpu.memory_space<vmem>>, vector<128x32xf32>,
    %c5 = arith.constant 5 : index
    %c0_17 = arith.constant 0 : index
    %16 = vector.load %arg10[%c5, %c0_17] : memref<160x32xf32, #tpu.memory_space<vmem>>, vector<128x32xf32>
    %c0_18 = arith.constant 0 : index
    %c0_19 = arith.constant 0 : index
    %17 = vector.load %arg12[%c0_18, %c0_19] : memref<128x288xf32, #tpu.memory_space<vmem>>, vector<128x32xf32>
    tpu.vector_store %arg12[%c0_18, %c0_19], %16 {strides = array<i32>} : memref<128x288xf32, #tpu.memory_space<vmem>>, vector<128x32xf32>,
    %c6 = arith.constant 6 : index
    %c0_20 = arith.constant 0 : index
    %18 = vector.load %arg10[%c6, %c0_20] : memref<160x32xf32, #tpu.memory_space<vmem>>, vector<128x32xf32>
    %c0_21 = arith.constant 0 : index
    %c32 = arith.constant 32 : index
    %19 = vector.load %arg12[%c0_21, %c32] : memref<128x288xf32, #tpu.memory_space<vmem>>, vector<128x32xf32>
    tpu.vector_store %arg12[%c0_21, %c32], %18 {strides = array<i32>} : memref<128x288xf32, #tpu.memory_space<vmem>>, vector<128x32xf32>,
    %c7 = arith.constant 7 : index
    %c0_22 = arith.constant 0 : index
    %20 = vector.load %arg10[%c7, %c0_22] : memref<160x32xf32, #tpu.memory_space<vmem>>, vector<128x32xf32>
    %c0_23 = arith.constant 0 : index
    %c64 = arith.constant 64 : index
    %21 = vector.load %arg12[%c0_23, %c64] : memref<128x288xf32, #tpu.memory_space<vmem>>, vector<128x32xf32>
    tpu.vector_store %arg12[%c0_23, %c64], %20 {strides = array<i32>} : memref<128x288xf32, #tpu.memory_space<vmem>>, vector<128x32xf32>,
    %c15 = arith.constant 15 : index
    %c0_24 = arith.constant 0 : index
    %22 = vector.load %arg10[%c15, %c0_24] : memref<160x32xf32, #tpu.memory_space<vmem>>, vector<128x32xf32>
    %c0_25 = arith.constant 0 : index
    %c96 = arith.constant 96 : index
    %23 = vector.load %arg12[%c0_25, %c96] : memref<128x288xf32, #tpu.memory_space<vmem>>, vector<128x32xf32>
    tpu.vector_store %arg12[%c0_25, %c96], %22 {strides = array<i32>} : memref<128x288xf32, #tpu.memory_space<vmem>>, vector<128x32xf32>,
    %c16_26 = arith.constant 16 : index
    %c0_27 = arith.constant 0 : index
    %24 = vector.load %arg10[%c16_26, %c0_27] : memref<160x32xf32, #tpu.memory_space<vmem>>, vector<128x32xf32>
    %c0_28 = arith.constant 0 : index
    %c128 = arith.constant 128 : index
    %25 = vector.load %arg12[%c0_28, %c128] : memref<128x288xf32, #tpu.memory_space<vmem>>, vector<128x32xf32>
    tpu.vector_store %arg12[%c0_28, %c128], %24 {strides = array<i32>} : memref<128x288xf32, #tpu.memory_space<vmem>>, vector<128x32xf32>,
    %c17 = arith.constant 17 : index
    %c0_29 = arith.constant 0 : index
    %26 = vector.load %arg10[%c17, %c0_29] : memref<160x32xf32, #tpu.memory_space<vmem>>, vector<128x32xf32>
    %c0_30 = arith.constant 0 : index
    %c160 = arith.constant 160 : index
    %27 = vector.load %arg12[%c0_30, %c160] : memref<128x288xf32, #tpu.memory_space<vmem>>, vector<128x32xf32>
    tpu.vector_store %arg12[%c0_30, %c160], %26 {strides = array<i32>} : memref<128x288xf32, #tpu.memory_space<vmem>>, vector<128x32xf32>,
    %c25 = arith.constant 25 : index
    %c0_31 = arith.constant 0 : index
    %28 = vector.load %arg10[%c25, %c0_31] : memref<160x32xf32, #tpu.memory_space<vmem>>, vector<128x32xf32>
    %c0_32 = arith.constant 0 : index
    %c192 = arith.constant 192 : index
    %29 = vector.load %arg12[%c0_32, %c192] : memref<128x288xf32, #tpu.memory_space<vmem>>, vector<128x32xf32>
    tpu.vector_store %arg12[%c0_32, %c192], %28 {strides = array<i32>} : memref<128x288xf32, #tpu.memory_space<vmem>>, vector<128x32xf32>,
    %c26 = arith.constant 26 : index
    %c0_33 = arith.constant 0 : index
    %30 = vector.load %arg10[%c26, %c0_33] : memref<160x32xf32, #tpu.memory_space<vmem>>, vector<128x32xf32>
    %c0_34 = arith.constant 0 : index
    %c224 = arith.constant 224 : index
    %31 = vector.load %arg12[%c0_34, %c224] : memref<128x288xf32, #tpu.memory_space<vmem>>, vector<128x32xf32>
    tpu.vector_store %arg12[%c0_34, %c224], %30 {strides = array<i32>} : memref<128x288xf32, #tpu.memory_space<vmem>>, vector<128x32xf32>,
    %c27 = arith.constant 27 : index
    %c0_35 = arith.constant 0 : index
    %32 = vector.load %arg10[%c27, %c0_35] : memref<160x32xf32, #tpu.memory_space<vmem>>, vector<128x32xf32>
    %c0_36 = arith.constant 0 : index
    %c256 = arith.constant 256 : index
    %33 = vector.load %arg12[%c0_36, %c256] : memref<128x288xf32, #tpu.memory_space<vmem>>, vector<128x32xf32>
    tpu.vector_store %arg12[%c0_36, %c256], %32 {strides = array<i32>} : memref<128x288xf32, #tpu.memory_space<vmem>>, vector<128x32xf32>,
    %c0_37 = arith.constant 0 : index
    %c0_38 = arith.constant 0 : index
    %34 = vector.load %arg12[%c0_37, %c0_38] : memref<128x288xf32, #tpu.memory_space<vmem>>, vector<128x288xf32>
    %c0_39 = arith.constant 0 : index
    %c0_40 = arith.constant 0 : index
    %35 = vector.load %arg5[%c0_39, %c0_40] : memref<1152x32xf32, #tpu.memory_space<vmem>>, vector<288x32xf32>
    %cst_41 = arith.constant dense<0.000000e+00> : vector<128x32xf32>
    %36 = tpu.matmul %34, %35, %cst_41 {dimension_numbers = #tpu.dot_dimension_numbers<[1], [0], [0], [1], [0, 0, 1, 1], [], []>} : vector<128x288xf32>, vector<288x32xf32>, vector<128x32xf32> -> vector<128x32xf32>
    %c0_42 = arith.constant 0 : index
    %c0_43 = arith.constant 0 : index
    %37 = vector.load %arg6[%c0_42, %c0_43] : memref<4x32xf32, #tpu.memory_space<vmem>>, vector<1x32xf32>
    %38 = vector.broadcast %37 : vector<1x32xf32> to vector<128x32xf32>
    %39 = arith.addf %36, %38 : vector<128x32xf32>
    %cst_44 = arith.constant 0.000000e+00 : f32
    %40 = vector.broadcast %cst_44 : f32 to vector<128x32xf32>
    %41 = arith.maximumf %39, %40 : vector<128x32xf32>
    %42 = vector.broadcast %5 : vector<128x1xf32> to vector<128x32xf32>
    %43 = arith.mulf %41, %42 : vector<128x32xf32>
    %c16_45 = arith.constant 16 : index
    %c0_46 = arith.constant 0 : index
    %44 = vector.load %arg11[%c16_45, %c0_46] : memref<160x32xf32, #tpu.memory_space<vmem>>, vector<128x32xf32>
    tpu.vector_store %arg11[%c16_45, %c0_46], %43 {strides = array<i32>} : memref<160x32xf32, #tpu.memory_space<vmem>>, vector<128x32xf32>,
    %c5_47 = arith.constant 5 : index
    %c0_48 = arith.constant 0 : index
    %45 = vector.load %arg11[%c5_47, %c0_48] : memref<160x32xf32, #tpu.memory_space<vmem>>, vector<128x32xf32>
    %c0_49 = arith.constant 0 : index
    %c0_50 = arith.constant 0 : index
    %46 = vector.load %arg12[%c0_49, %c0_50] : memref<128x288xf32, #tpu.memory_space<vmem>>, vector<128x32xf32>
    tpu.vector_store %arg12[%c0_49, %c0_50], %45 {strides = array<i32>} : memref<128x288xf32, #tpu.memory_space<vmem>>, vector<128x32xf32>,
    %c6_51 = arith.constant 6 : index
    %c0_52 = arith.constant 0 : index
    %47 = vector.load %arg11[%c6_51, %c0_52] : memref<160x32xf32, #tpu.memory_space<vmem>>, vector<128x32xf32>
    %c0_53 = arith.constant 0 : index
    %c32_54 = arith.constant 32 : index
    %48 = vector.load %arg12[%c0_53, %c32_54] : memref<128x288xf32, #tpu.memory_space<vmem>>, vector<128x32xf32>
    tpu.vector_store %arg12[%c0_53, %c32_54], %47 {strides = array<i32>} : memref<128x288xf32, #tpu.memory_space<vmem>>, vector<128x32xf32>,
    %c7_55 = arith.constant 7 : index
    %c0_56 = arith.constant 0 : index
    %49 = vector.load %arg11[%c7_55, %c0_56] : memref<160x32xf32, #tpu.memory_space<vmem>>, vector<128x32xf32>
    %c0_57 = arith.constant 0 : index
    %c64_58 = arith.constant 64 : index
    %50 = vector.load %arg12[%c0_57, %c64_58] : memref<128x288xf32, #tpu.memory_space<vmem>>, vector<128x32xf32>
    tpu.vector_store %arg12[%c0_57, %c64_58], %49 {strides = array<i32>} : memref<128x288xf32, #tpu.memory_space<vmem>>, vector<128x32xf32>,
    %c15_59 = arith.constant 15 : index
    %c0_60 = arith.constant 0 : index
    %51 = vector.load %arg11[%c15_59, %c0_60] : memref<160x32xf32, #tpu.memory_space<vmem>>, vector<128x32xf32>
    %c0_61 = arith.constant 0 : index
    %c96_62 = arith.constant 96 : index
    %52 = vector.load %arg12[%c0_61, %c96_62] : memref<128x288xf32, #tpu.memory_space<vmem>>, vector<128x32xf32>
    tpu.vector_store %arg12[%c0_61, %c96_62], %51 {strides = array<i32>} : memref<128x288xf32, #tpu.memory_space<vmem>>, vector<128x32xf32>,
    %c16_63 = arith.constant 16 : index
    %c0_64 = arith.constant 0 : index
    %53 = vector.load %arg11[%c16_63, %c0_64] : memref<160x32xf32, #tpu.memory_space<vmem>>, vector<128x32xf32>
    %c0_65 = arith.constant 0 : index
    %c128_66 = arith.constant 128 : index
    %54 = vector.load %arg12[%c0_65, %c128_66] : memref<128x288xf32, #tpu.memory_space<vmem>>, vector<128x32xf32>
    tpu.vector_store %arg12[%c0_65, %c128_66], %53 {strides = array<i32>} : memref<128x288xf32, #tpu.memory_space<vmem>>, vector<128x32xf32>,
    %c17_67 = arith.constant 17 : index
    %c0_68 = arith.constant 0 : index
    %55 = vector.load %arg11[%c17_67, %c0_68] : memref<160x32xf32, #tpu.memory_space<vmem>>, vector<128x32xf32>
    %c0_69 = arith.constant 0 : index
    %c160_70 = arith.constant 160 : index
    %56 = vector.load %arg12[%c0_69, %c160_70] : memref<128x288xf32, #tpu.memory_space<vmem>>, vector<128x32xf32>
    tpu.vector_store %arg12[%c0_69, %c160_70], %55 {strides = array<i32>} : memref<128x288xf32, #tpu.memory_space<vmem>>, vector<128x32xf32>,
    %c25_71 = arith.constant 25 : index
    %c0_72 = arith.constant 0 : index
    %57 = vector.load %arg11[%c25_71, %c0_72] : memref<160x32xf32, #tpu.memory_space<vmem>>, vector<128x32xf32>
    %c0_73 = arith.constant 0 : index
    %c192_74 = arith.constant 192 : index
    %58 = vector.load %arg12[%c0_73, %c192_74] : memref<128x288xf32, #tpu.memory_space<vmem>>, vector<128x32xf32>
    tpu.vector_store %arg12[%c0_73, %c192_74], %57 {strides = array<i32>} : memref<128x288xf32, #tpu.memory_space<vmem>>, vector<128x32xf32>,
    %c26_75 = arith.constant 26 : index
    %c0_76 = arith.constant 0 : index
    %59 = vector.load %arg11[%c26_75, %c0_76] : memref<160x32xf32, #tpu.memory_space<vmem>>, vector<128x32xf32>
    %c0_77 = arith.constant 0 : index
    %c224_78 = arith.constant 224 : index
    %60 = vector.load %arg12[%c0_77, %c224_78] : memref<128x288xf32, #tpu.memory_space<vmem>>, vector<128x32xf32>
    tpu.vector_store %arg12[%c0_77, %c224_78], %59 {strides = array<i32>} : memref<128x288xf32, #tpu.memory_space<vmem>>, vector<128x32xf32>,
    %c27_79 = arith.constant 27 : index
    %c0_80 = arith.constant 0 : index
    %61 = vector.load %arg11[%c27_79, %c0_80] : memref<160x32xf32, #tpu.memory_space<vmem>>, vector<128x32xf32>
    %c0_81 = arith.constant 0 : index
    %c256_82 = arith.constant 256 : index
    %62 = vector.load %arg12[%c0_81, %c256_82] : memref<128x288xf32, #tpu.memory_space<vmem>>, vector<128x32xf32>
    tpu.vector_store %arg12[%c0_81, %c256_82], %61 {strides = array<i32>} : memref<128x288xf32, #tpu.memory_space<vmem>>, vector<128x32xf32>,
    %c0_83 = arith.constant 0 : index
    %c0_84 = arith.constant 0 : index
    %63 = vector.load %arg12[%c0_83, %c0_84] : memref<128x288xf32, #tpu.memory_space<vmem>>, vector<128x288xf32>
    %c288 = arith.constant 288 : index
    %c0_85 = arith.constant 0 : index
    %64 = vector.load %arg5[%c288, %c0_85] : memref<1152x32xf32, #tpu.memory_space<vmem>>, vector<288x32xf32>
    %cst_86 = arith.constant dense<0.000000e+00> : vector<128x32xf32>
    %65 = tpu.matmul %63, %64, %cst_86 {dimension_numbers = #tpu.dot_dimension_numbers<[1], [0], [0], [1], [0, 0, 1, 1], [], []>} : vector<128x288xf32>, vector<288x32xf32>, vector<128x32xf32> -> vector<128x32xf32>
    %c1 = arith.constant 1 : index
    %c0_87 = arith.constant 0 : index
    %66 = vector.load %arg6[%c1, %c0_87] : memref<4x32xf32, #tpu.memory_space<vmem>>, vector<1x32xf32>
    %67 = vector.broadcast %66 : vector<1x32xf32> to vector<128x32xf32>
    %68 = arith.addf %65, %67 : vector<128x32xf32>
    %c16_88 = arith.constant 16 : index
    %c0_89 = arith.constant 0 : index
    %69 = vector.load %arg10[%c16_88, %c0_89] : memref<160x32xf32, #tpu.memory_space<vmem>>, vector<128x32xf32>
    %70 = arith.addf %68, %69 : vector<128x32xf32>
    %71 = vector.broadcast %5 : vector<128x1xf32> to vector<128x32xf32>
    %72 = arith.mulf %70, %71 : vector<128x32xf32>
    %c16_90 = arith.constant 16 : index
    %c0_91 = arith.constant 0 : index
    %73 = vector.load %arg10[%c16_90, %c0_91] : memref<160x32xf32, #tpu.memory_space<vmem>>, vector<128x32xf32>
    tpu.vector_store %arg10[%c16_90, %c0_91], %72 {strides = array<i32>} : memref<160x32xf32, #tpu.memory_space<vmem>>, vector<128x32xf32>,
    %c5_92 = arith.constant 5 : index
    %c0_93 = arith.constant 0 : index
    %74 = vector.load %arg10[%c5_92, %c0_93] : memref<160x32xf32, #tpu.memory_space<vmem>>, vector<128x32xf32>
    %c0_94 = arith.constant 0 : index
    %c0_95 = arith.constant 0 : index
    %75 = vector.load %arg12[%c0_94, %c0_95] : memref<128x288xf32, #tpu.memory_space<vmem>>, vector<128x32xf32>
    tpu.vector_store %arg12[%c0_94, %c0_95], %74 {strides = array<i32>} : memref<128x288xf32, #tpu.memory_space<vmem>>, vector<128x32xf32>,
    %c6_96 = arith.constant 6 : index
    %c0_97 = arith.constant 0 : index
    %76 = vector.load %arg10[%c6_96, %c0_97] : memref<160x32xf32, #tpu.memory_space<vmem>>, vector<128x32xf32>
    %c0_98 = arith.constant 0 : index
    %c32_99 = arith.constant 32 : index
    %77 = vector.load %arg12[%c0_98, %c32_99] : memref<128x288xf32, #tpu.memory_space<vmem>>, vector<128x32xf32>
    tpu.vector_store %arg12[%c0_98, %c32_99], %76 {strides = array<i32>} : memref<128x288xf32, #tpu.memory_space<vmem>>, vector<128x32xf32>,
    %c7_100 = arith.constant 7 : index
    %c0_101 = arith.constant 0 : index
    %78 = vector.load %arg10[%c7_100, %c0_101] : memref<160x32xf32, #tpu.memory_space<vmem>>, vector<128x32xf32>
    %c0_102 = arith.constant 0 : index
    %c64_103 = arith.constant 64 : index
    %79 = vector.load %arg12[%c0_102, %c64_103] : memref<128x288xf32, #tpu.memory_space<vmem>>, vector<128x32xf32>
    tpu.vector_store %arg12[%c0_102, %c64_103], %78 {strides = array<i32>} : memref<128x288xf32, #tpu.memory_space<vmem>>, vector<128x32xf32>,
    %c15_104 = arith.constant 15 : index
    %c0_105 = arith.constant 0 : index
    %80 = vector.load %arg10[%c15_104, %c0_105] : memref<160x32xf32, #tpu.memory_space<vmem>>, vector<128x32xf32>
    %c0_106 = arith.constant 0 : index
    %c96_107 = arith.constant 96 : index
    %81 = vector.load %arg12[%c0_106, %c96_107] : memref<128x288xf32, #tpu.memory_space<vmem>>, vector<128x32xf32>
    tpu.vector_store %arg12[%c0_106, %c96_107], %80 {strides = array<i32>} : memref<128x288xf32, #tpu.memory_space<vmem>>, vector<128x32xf32>,
    %c16_108 = arith.constant 16 : index
    %c0_109 = arith.constant 0 : index
    %82 = vector.load %arg10[%c16_108, %c0_109] : memref<160x32xf32, #tpu.memory_space<vmem>>, vector<128x32xf32>
    %c0_110 = arith.constant 0 : index
    %c128_111 = arith.constant 128 : index
    %83 = vector.load %arg12[%c0_110, %c128_111] : memref<128x288xf32, #tpu.memory_space<vmem>>, vector<128x32xf32>
    tpu.vector_store %arg12[%c0_110, %c128_111], %82 {strides = array<i32>} : memref<128x288xf32, #tpu.memory_space<vmem>>, vector<128x32xf32>,
    %c17_112 = arith.constant 17 : index
    %c0_113 = arith.constant 0 : index
    %84 = vector.load %arg10[%c17_112, %c0_113] : memref<160x32xf32, #tpu.memory_space<vmem>>, vector<128x32xf32>
    %c0_114 = arith.constant 0 : index
    %c160_115 = arith.constant 160 : index
    %85 = vector.load %arg12[%c0_114, %c160_115] : memref<128x288xf32, #tpu.memory_space<vmem>>, vector<128x32xf32>
    tpu.vector_store %arg12[%c0_114, %c160_115], %84 {strides = array<i32>} : memref<128x288xf32, #tpu.memory_space<vmem>>, vector<128x32xf32>,
    %c25_116 = arith.constant 25 : index
    %c0_117 = arith.constant 0 : index
    %86 = vector.load %arg10[%c25_116, %c0_117] : memref<160x32xf32, #tpu.memory_space<vmem>>, vector<128x32xf32>
    %c0_118 = arith.constant 0 : index
    %c192_119 = arith.constant 192 : index
    %87 = vector.load %arg12[%c0_118, %c192_119] : memref<128x288xf32, #tpu.memory_space<vmem>>, vector<128x32xf32>
    tpu.vector_store %arg12[%c0_118, %c192_119], %86 {strides = array<i32>} : memref<128x288xf32, #tpu.memory_space<vmem>>, vector<128x32xf32>,
    %c26_120 = arith.constant 26 : index
    %c0_121 = arith.constant 0 : index
    %88 = vector.load %arg10[%c26_120, %c0_121] : memref<160x32xf32, #tpu.memory_space<vmem>>, vector<128x32xf32>
    %c0_122 = arith.constant 0 : index
    %c224_123 = arith.constant 224 : index
    %89 = vector.load %arg12[%c0_122, %c224_123] : memref<128x288xf32, #tpu.memory_space<vmem>>, vector<128x32xf32>
    tpu.vector_store %arg12[%c0_122, %c224_123], %88 {strides = array<i32>} : memref<128x288xf32, #tpu.memory_space<vmem>>, vector<128x32xf32>,
    %c27_124 = arith.constant 27 : index
    %c0_125 = arith.constant 0 : index
    %90 = vector.load %arg10[%c27_124, %c0_125] : memref<160x32xf32, #tpu.memory_space<vmem>>, vector<128x32xf32>
    %c0_126 = arith.constant 0 : index
    %c256_127 = arith.constant 256 : index
    %91 = vector.load %arg12[%c0_126, %c256_127] : memref<128x288xf32, #tpu.memory_space<vmem>>, vector<128x32xf32>
    tpu.vector_store %arg12[%c0_126, %c256_127], %90 {strides = array<i32>} : memref<128x288xf32, #tpu.memory_space<vmem>>, vector<128x32xf32>,
    %c0_128 = arith.constant 0 : index
    %c0_129 = arith.constant 0 : index
    %92 = vector.load %arg12[%c0_128, %c0_129] : memref<128x288xf32, #tpu.memory_space<vmem>>, vector<128x288xf32>
    %c576 = arith.constant 576 : index
    %c0_130 = arith.constant 0 : index
    %93 = vector.load %arg5[%c576, %c0_130] : memref<1152x32xf32, #tpu.memory_space<vmem>>, vector<288x32xf32>
    %cst_131 = arith.constant dense<0.000000e+00> : vector<128x32xf32>
    %94 = tpu.matmul %92, %93, %cst_131 {dimension_numbers = #tpu.dot_dimension_numbers<[1], [0], [0], [1], [0, 0, 1, 1], [], []>} : vector<128x288xf32>, vector<288x32xf32>, vector<128x32xf32> -> vector<128x32xf32>
    %c2 = arith.constant 2 : index
    %c0_132 = arith.constant 0 : index
    %95 = vector.load %arg6[%c2, %c0_132] : memref<4x32xf32, #tpu.memory_space<vmem>>, vector<1x32xf32>
    %96 = vector.broadcast %95 : vector<1x32xf32> to vector<128x32xf32>
    %97 = arith.addf %94, %96 : vector<128x32xf32>
    %cst_133 = arith.constant 0.000000e+00 : f32
    %98 = vector.broadcast %cst_133 : f32 to vector<128x32xf32>
    %99 = arith.maximumf %97, %98 : vector<128x32xf32>
    %100 = vector.broadcast %5 : vector<128x1xf32> to vector<128x32xf32>
    %101 = arith.mulf %99, %100 : vector<128x32xf32>
    %c16_134 = arith.constant 16 : index
    %c0_135 = arith.constant 0 : index
    %102 = vector.load %arg11[%c16_134, %c0_135] : memref<160x32xf32, #tpu.memory_space<vmem>>, vector<128x32xf32>
    tpu.vector_store %arg11[%c16_134, %c0_135], %101 {strides = array<i32>} : memref<160x32xf32, #tpu.memory_space<vmem>>, vector<128x32xf32>,
    %c5_136 = arith.constant 5 : index
    %c0_137 = arith.constant 0 : index
    %103 = vector.load %arg11[%c5_136, %c0_137] : memref<160x32xf32, #tpu.memory_space<vmem>>, vector<128x32xf32>
    %c0_138 = arith.constant 0 : index
    %c0_139 = arith.constant 0 : index
    %104 = vector.load %arg12[%c0_138, %c0_139] : memref<128x288xf32, #tpu.memory_space<vmem>>, vector<128x32xf32>
    tpu.vector_store %arg12[%c0_138, %c0_139], %103 {strides = array<i32>} : memref<128x288xf32, #tpu.memory_space<vmem>>, vector<128x32xf32>,
    %c6_140 = arith.constant 6 : index
    %c0_141 = arith.constant 0 : index
    %105 = vector.load %arg11[%c6_140, %c0_141] : memref<160x32xf32, #tpu.memory_space<vmem>>, vector<128x32xf32>
    %c0_142 = arith.constant 0 : index
    %c32_143 = arith.constant 32 : index
    %106 = vector.load %arg12[%c0_142, %c32_143] : memref<128x288xf32, #tpu.memory_space<vmem>>, vector<128x32xf32>
    tpu.vector_store %arg12[%c0_142, %c32_143], %105 {strides = array<i32>} : memref<128x288xf32, #tpu.memory_space<vmem>>, vector<128x32xf32>,
    %c7_144 = arith.constant 7 : index
    %c0_145 = arith.constant 0 : index
    %107 = vector.load %arg11[%c7_144, %c0_145] : memref<160x32xf32, #tpu.memory_space<vmem>>, vector<128x32xf32>
    %c0_146 = arith.constant 0 : index
    %c64_147 = arith.constant 64 : index
    %108 = vector.load %arg12[%c0_146, %c64_147] : memref<128x288xf32, #tpu.memory_space<vmem>>, vector<128x32xf32>
    tpu.vector_store %arg12[%c0_146, %c64_147], %107 {strides = array<i32>} : memref<128x288xf32, #tpu.memory_space<vmem>>, vector<128x32xf32>,
    %c15_148 = arith.constant 15 : index
    %c0_149 = arith.constant 0 : index
    %109 = vector.load %arg11[%c15_148, %c0_149] : memref<160x32xf32, #tpu.memory_space<vmem>>, vector<128x32xf32>
    %c0_150 = arith.constant 0 : index
    %c96_151 = arith.constant 96 : index
    %110 = vector.load %arg12[%c0_150, %c96_151] : memref<128x288xf32, #tpu.memory_space<vmem>>, vector<128x32xf32>
    tpu.vector_store %arg12[%c0_150, %c96_151], %109 {strides = array<i32>} : memref<128x288xf32, #tpu.memory_space<vmem>>, vector<128x32xf32>,
    %c16_152 = arith.constant 16 : index
    %c0_153 = arith.constant 0 : index
    %111 = vector.load %arg11[%c16_152, %c0_153] : memref<160x32xf32, #tpu.memory_space<vmem>>, vector<128x32xf32>
    %c0_154 = arith.constant 0 : index
    %c128_155 = arith.constant 128 : index
    %112 = vector.load %arg12[%c0_154, %c128_155] : memref<128x288xf32, #tpu.memory_space<vmem>>, vector<128x32xf32>
    tpu.vector_store %arg12[%c0_154, %c128_155], %111 {strides = array<i32>} : memref<128x288xf32, #tpu.memory_space<vmem>>, vector<128x32xf32>,
    %c17_156 = arith.constant 17 : index
    %c0_157 = arith.constant 0 : index
    %113 = vector.load %arg11[%c17_156, %c0_157] : memref<160x32xf32, #tpu.memory_space<vmem>>, vector<128x32xf32>
    %c0_158 = arith.constant 0 : index
    %c160_159 = arith.constant 160 : index
    %114 = vector.load %arg12[%c0_158, %c160_159] : memref<128x288xf32, #tpu.memory_space<vmem>>, vector<128x32xf32>
    tpu.vector_store %arg12[%c0_158, %c160_159], %113 {strides = array<i32>} : memref<128x288xf32, #tpu.memory_space<vmem>>, vector<128x32xf32>,
    %c25_160 = arith.constant 25 : index
    %c0_161 = arith.constant 0 : index
    %115 = vector.load %arg11[%c25_160, %c0_161] : memref<160x32xf32, #tpu.memory_space<vmem>>, vector<128x32xf32>
    %c0_162 = arith.constant 0 : index
    %c192_163 = arith.constant 192 : index
    %116 = vector.load %arg12[%c0_162, %c192_163] : memref<128x288xf32, #tpu.memory_space<vmem>>, vector<128x32xf32>
    tpu.vector_store %arg12[%c0_162, %c192_163], %115 {strides = array<i32>} : memref<128x288xf32, #tpu.memory_space<vmem>>, vector<128x32xf32>,
    %c26_164 = arith.constant 26 : index
    %c0_165 = arith.constant 0 : index
    %117 = vector.load %arg11[%c26_164, %c0_165] : memref<160x32xf32, #tpu.memory_space<vmem>>, vector<128x32xf32>
    %c0_166 = arith.constant 0 : index
    %c224_167 = arith.constant 224 : index
    %118 = vector.load %arg12[%c0_166, %c224_167] : memref<128x288xf32, #tpu.memory_space<vmem>>, vector<128x32xf32>
    tpu.vector_store %arg12[%c0_166, %c224_167], %117 {strides = array<i32>} : memref<128x288xf32, #tpu.memory_space<vmem>>, vector<128x32xf32>,
    %c27_168 = arith.constant 27 : index
    %c0_169 = arith.constant 0 : index
    %119 = vector.load %arg11[%c27_168, %c0_169] : memref<160x32xf32, #tpu.memory_space<vmem>>, vector<128x32xf32>
    %c0_170 = arith.constant 0 : index
    %c256_171 = arith.constant 256 : index
    %120 = vector.load %arg12[%c0_170, %c256_171] : memref<128x288xf32, #tpu.memory_space<vmem>>, vector<128x32xf32>
    tpu.vector_store %arg12[%c0_170, %c256_171], %119 {strides = array<i32>} : memref<128x288xf32, #tpu.memory_space<vmem>>, vector<128x32xf32>,
    %c0_172 = arith.constant 0 : index
    %c0_173 = arith.constant 0 : index
    %121 = vector.load %arg12[%c0_172, %c0_173] : memref<128x288xf32, #tpu.memory_space<vmem>>, vector<128x288xf32>
    %c864 = arith.constant 864 : index
    %c0_174 = arith.constant 0 : index
    %122 = vector.load %arg5[%c864, %c0_174] : memref<1152x32xf32, #tpu.memory_space<vmem>>, vector<288x32xf32>
    %cst_175 = arith.constant dense<0.000000e+00> : vector<128x32xf32>
    %123 = tpu.matmul %121, %122, %cst_175 {dimension_numbers = #tpu.dot_dimension_numbers<[1], [0], [0], [1], [0, 0, 1, 1], [], []>} : vector<128x288xf32>, vector<288x32xf32>, vector<128x32xf32> -> vector<128x32xf32>
    %c3 = arith.constant 3 : index
    %c0_176 = arith.constant 0 : index
    %124 = vector.load %arg6[%c3, %c0_176] : memref<4x32xf32, #tpu.memory_space<vmem>>, vector<1x32xf32>
    %125 = vector.broadcast %124 : vector<1x32xf32> to vector<128x32xf32>
    %126 = arith.addf %123, %125 : vector<128x32xf32>
    %c16_177 = arith.constant 16 : index
    %c0_178 = arith.constant 0 : index
    %127 = vector.load %arg10[%c16_177, %c0_178] : memref<160x32xf32, #tpu.memory_space<vmem>>, vector<128x32xf32>
    %128 = arith.addf %126, %127 : vector<128x32xf32>
    %129 = vector.broadcast %5 : vector<128x1xf32> to vector<128x32xf32>
    %130 = arith.mulf %128, %129 : vector<128x32xf32>
    %c0_179 = arith.constant 0 : index
    %c0_180 = arith.constant 0 : index
    %131 = vector.load %arg7[%c0_179, %c0_180] : memref<4x32xf32, #tpu.memory_space<vmem>>, vector<4x32xf32>
    %cst_181 = arith.constant dense<0.000000e+00> : vector<4x128xf32>
    %132 = tpu.matmul %131, %130, %cst_181 {dimension_numbers = #tpu.dot_dimension_numbers<[1], [1], [0], [0], [0, 0, 1, 0], [], []>} : vector<4x32xf32>, vector<128x32xf32>, vector<4x128xf32> -> vector<4x128xf32>
    %c0_182 = arith.constant 0 : index
    %c0_183 = arith.constant 0 : index
    %133 = vector.load %arg8[%c0_182, %c0_183] : memref<4x1xf32, #tpu.memory_space<vmem>>, vector<4x1xf32>
    %134 = vector.broadcast %133 : vector<4x1xf32> to vector<4x128xf32>
    %135 = arith.addf %132, %134 : vector<4x128xf32>
    %c0_184 = arith.constant 0 : index
    %c0_185 = arith.constant 0 : index
    %c0_186 = arith.constant 0 : index
    %136 = vector.load %arg9[%c0_184, %c0_185, %c0_186] : memref<1x4x128xf32, #tpu.memory_space<vmem>>, vector<1x4x128xf32>
    %137 = vector.shape_cast %136 : vector<1x4x128xf32> to vector<4x128xf32>
    %138 = vector.shape_cast %135 : vector<4x128xf32> to vector<1x4x128xf32>
    tpu.vector_store %arg9[%c0_184, %c0_185, %c0_186], %138 {strides = array<i32>} : memref<1x4x128xf32, #tpu.memory_space<vmem>>, vector<1x4x128xf32>,
    return
  }
  func.func @transform_0(%arg0: i32) -> (i32, i32, i32) {
    %c0_i32 = arith.constant 0 : i32
    %c0_i32_0 = arith.constant 0 : i32
    %c0_i32_1 = arith.constant 0 : i32
    return %arg0, %c0_i32, %c0_i32_0 : i32, i32, i32
  }
  func.func @transform_1(%arg0: i32) -> (i32, i32) {
    %c0_i32 = arith.constant 0 : i32
    %c0_i32_0 = arith.constant 0 : i32
    %c0_i32_1 = arith.constant 0 : i32
    return %c0_i32, %c0_i32_0 : i32, i32
  }
  func.func @transform_2(%arg0: i32) -> (i32, i32) {
    %c0_i32 = arith.constant 0 : i32
    %c0_i32_0 = arith.constant 0 : i32
    %c0_i32_1 = arith.constant 0 : i32
    return %c0_i32, %c0_i32_0 : i32, i32
  }
  func.func @transform_3(%arg0: i32) -> (i32, i32) {
    %c0_i32 = arith.constant 0 : i32
    %c0_i32_0 = arith.constant 0 : i32
    %c0_i32_1 = arith.constant 0 : i32
    return %c0_i32, %c0_i32_0 : i32, i32
  }
  func.func @transform_4(%arg0: i32) -> (i32, i32) {
    %c0_i32 = arith.constant 0 : i32
    %c0_i32_0 = arith.constant 0 : i32
    %c0_i32_1 = arith.constant 0 : i32
    return %c0_i32, %c0_i32_0 : i32, i32
  }
  func.func @transform_5(%arg0: i32) -> (i32, i32) {
    %c0_i32 = arith.constant 0 : i32
    %c0_i32_0 = arith.constant 0 : i32
    %c0_i32_1 = arith.constant 0 : i32
    return %c0_i32, %c0_i32_0 : i32, i32
  }
  func.func @transform_6(%arg0: i32) -> (i32, i32) {
    %c0_i32 = arith.constant 0 : i32
    %c0_i32_0 = arith.constant 0 : i32
    %c0_i32_1 = arith.constant 0 : i32
    return %c0_i32, %c0_i32_0 : i32, i32
  }
  func.func @transform_7(%arg0: i32) -> (i32, i32) {
    %c0_i32 = arith.constant 0 : i32
    %c0_i32_0 = arith.constant 0 : i32
    %c0_i32_1 = arith.constant 0 : i32
    return %c0_i32, %c0_i32_0 : i32, i32
  }
  func.func @transform_8(%arg0: i32) -> (i32, i32, i32) {
    %c0_i32 = arith.constant 0 : i32
    %c0_i32_0 = arith.constant 0 : i32
    %c0_i32_1 = arith.constant 0 : i32
    return %arg0, %c0_i32, %c0_i32_0 : i32, i32, i32
  }
}

</mosaic_0001>

<llo_original>
// kernel: extractor_forward.1
$region0: #{extractor_forward.1}
  #allocation0 [shape = 'u32[]', space=smem, size = 0x4, offset = 0x4, fixed_abs, tag = 'smem constant byte address 0x4 - core index']
  #allocation1 [shape = 'u32[72,128]{1,0:T(1,128)}', space=vmem, size = 0x9000, scoped, tag = 'internal scratch']
  #allocation2 [shape = 'f32[160,32]{1,0:T(8,128)}', space=vmem, size = 0x14000, scoped, tag = 'scratch operand']
  #allocation3 [shape = 'f32[160,32]{1,0:T(8,128)}', space=vmem, size = 0x14000, scoped, tag = 'scratch operand']
  #allocation4 [shape = 'f32[128,288]{1,0:T(8,128)}', space=vmem, size = 0x30000, scoped, tag = 'scratch operand']
  %s0 = inlined_call_operand.vmem [shape: f32[2,16,128], index: 0, kind: input, shape index: {}]
  %s1 = inlined_call_operand.vmem [shape: f32[128,1], index: 1, kind: input, shape index: {}]
  %s2 = inlined_call_operand.vmem [shape: f32[16,32], index: 2, kind: input, shape index: {}]
  %s3 = inlined_call_operand.vmem [shape: f32[1,32], index: 3, kind: input, shape index: {}]
  %s4 = inlined_call_operand.vmem [shape: f32[1152,32], index: 4, kind: input, shape index: {}]
  %s5 = inlined_call_operand.vmem [shape: f32[4,32], index: 5, kind: input, shape index: {}]
  %s6 = inlined_call_operand.vmem [shape: f32[4,32], index: 6, kind: input, shape index: {}]
  %s7 = inlined_call_operand.vmem [shape: f32[4,1], index: 7, kind: input, shape index: {}]
  %s8 = inlined_call_operand.vmem [shape: f32[2,4,128], index: 8, kind: output, shape index: {}]
  %s9 = sld [smem:[#allocation0]]
  $region65: #{extractor_forward.1} parent=0
    _
  %s11 = ssub.s32 1, %s9
  %s12 = scalar_select 0, %s11, %s9
  loop: start=0, step=1, limit=4
  $region2: #{extractor_forward.1} parent=0 // loop_pre_header
    _
  $region3: #{extractor_forward.1} parent=0 // loop_header
    %s14 = sphi 0, %s18
    %p15 = scmp.ge.s32.totalorder %s14, 4
    %s24 = sphi 0, %s26
    %s27 = sphi 0, %s24
    %s28 = sphi 0, %s27
    %s44 = sphi 0, %s28
    %s48 = sphi 0, %s48
    %s50 = sphi 0, %s48
    %s51 = sphi 0, %s50
    %s65 = sphi 0, %s51
    %s69 = sphi 0, %s69
    %s71 = sphi 0, %s69
    %s72 = sphi 0, %s71
    %s86 = sphi 0, %s72
    %s90 = sphi 0, %s90
    %s92 = sphi 0, %s90
    %s93 = sphi 0, %s92
    %s107 = sphi 0, %s93
    %s111 = sphi 0, %s111
    %s113 = sphi 0, %s111
    %s114 = sphi 0, %s113
    %s128 = sphi 0, %s114
    %s132 = sphi 0, %s132
    %s134 = sphi 0, %s132
    %s135 = sphi 0, %s134
    %s149 = sphi 0, %s135
    %s153 = sphi 0, %s153
    %s155 = sphi 0, %s153
    %s156 = sphi 0, %s155
    %s170 = sphi 0, %s156
    %s174 = sphi 0, %s174
    %s176 = sphi 0, %s174
    %s177 = sphi 0, %s176
    %s191 = sphi 0, %s177
    %s197 = sphi 0, %s199
    %s200 = sphi 0, %s197
    %s201 = sphi 0, %s200
    %s217 = sphi 0, %s201
  $region4: #{extractor_forward.1} parent=0 // loop_header_branch
    %17 = sbr.rel (%p15) target = $region8
  $region5: #{extractor_forward.1} parent=0 // loop_body
    %s19 = ssub.s32 %s14, 1
    %s20 = ssub.s32 %s14, 2
    %s21 = sadd.s32 %s14, 1
    %s22 = ssub.s32 %s14, %s21
    %p23 = scmp.eq.s32.totalorder %s22, 0
    %s25 = sadd.s32 %s24, 1
    %s26 = scalar_select %p23, %s24, %s25
    %p29 = pneg %p23
    %p30 = scmp.eq.s32.totalorder %s14, 1
    %p31 = por %p29, %p30
    %p32 = scmp.ne.s32.totalorder %s24, %s27
    %p33 = scmp.eq.s32.totalorder %s14, 0
    %p34 = por %p32, %p33
    %p35 = scmp.ne.s32.totalorder %s24, %s27
    %p36 = scmp.eq.s32.totalorder %s19, 1
    %p37 = por %p35, %p36
    %p38 = scmp.ne.s32.totalorder %s27, %s28
    %p39 = scmp.eq.s32.totalorder %s19, 0
    %p40 = por %p38, %p39
    %p41 = scmp.ne.s32.totalorder %s27, %s28
    %p42 = scmp.eq.s32.totalorder %s20, 1
    %p43 = por %p41, %p42
    %p45 = scmp.ne.s32.totalorder %s28, %s44
    %p46 = scmp.eq.s32.totalorder %s20, 0
    %p47 = por %p45, %p46
    %s49 = sadd.s32 %s48, 1
    %p52 = scmp.eq.s32.totalorder %s14, 1
    %p53 = scmp.ne.s32.totalorder %s48, %s50
    %p54 = scmp.eq.s32.totalorder %s14, 0
    %p55 = por %p53, %p54
    %p56 = scmp.ne.s32.totalorder %s48, %s50
    %p57 = scmp.eq.s32.totalorder %s19, 1
    %p58 = por %p56, %p57
    %p59 = scmp.ne.s32.totalorder %s50, %s51
    %p60 = scmp.eq.s32.totalorder %s19, 0
    %p61 = por %p59, %p60
    %p62 = scmp.ne.s32.totalorder %s50, %s51
    %p63 = scmp.eq.s32.totalorder %s20, 1
    %p64 = por %p62, %p63
    %p66 = scmp.ne.s32.totalorder %s51, %s65
    %p67 = scmp.eq.s32.totalorder %s20, 0
    %p68 = por %p66, %p67
    %s70 = sadd.s32 %s69, 1
    %p73 = scmp.eq.s32.totalorder %s14, 1
    %p74 = scmp.ne.s32.totalorder %s69, %s71
    %p75 = scmp.eq.s32.totalorder %s14, 0
    %p76 = por %p74, %p75
    %p77 = scmp.ne.s32.totalorder %s69, %s71
    %p78 = scmp.eq.s32.totalorder %s19, 1
    %p79 = por %p77, %p78
    %p80 = scmp.ne.s32.totalorder %s71, %s72
    %p81 = scmp.eq.s32.totalorder %s19, 0
    %p82 = por %p80, %p81
    %p83 = scmp.ne.s32.totalorder %s71, %s72
    %p84 = scmp.eq.s32.totalorder %s20, 1
    %p85 = por %p83, %p84
    %p87 = scmp.ne.s32.totalorder %s72, %s86
    %p88 = scmp.eq.s32.totalorder %s20, 0
    %p89 = por %p87, %p88
    %s91 = sadd.s32 %s90, 1
    %p94 = scmp.eq.s32.totalorder %s14, 1
    %p95 = scmp.ne.s32.totalorder %s90, %s92
    %p96 = scmp.eq.s32.totalorder %s14, 0
    %p97 = por %p95, %p96
    %p98 = scmp.ne.s32.totalorder %s90, %s92
    %p99 = scmp.eq.s32.totalorder %s19, 1
    %p100 = por %p98, %p99
    %p101 = scmp.ne.s32.totalorder %s92, %s93
    %p102 = scmp.eq.s32.totalorder %s19, 0
    %p103 = por %p101, %p102
    %p104 = scmp.ne.s32.totalorder %s92, %s93
    %p105 = scmp.eq.s32.totalorder %s20, 1
    %p106 = por %p104, %p105
    %p108 = scmp.ne.s32.totalorder %s93, %s107
    %p109 = scmp.eq.s32.totalorder %s20, 0
    %p110 = por %p108, %p109
    %s112 = sadd.s32 %s111, 1
    %p115 = scmp.eq.s32.totalorder %s14, 1
    %p116 = scmp.ne.s32.totalorder %s111, %s113
    %p117 = scmp.eq.s32.totalorder %s14, 0
    %p118 = por %p116, %p117
    %p119 = scmp.ne.s32.totalorder %s111, %s113
    %p120 = scmp.eq.s32.totalorder %s19, 1
    %p121 = por %p119, %p120
    %p122 = scmp.ne.s32.totalorder %s113, %s114
    %p123 = scmp.eq.s32.totalorder %s19, 0
    %p124 = por %p122, %p123
    %p125 = scmp.ne.s32.totalorder %s113, %s114
    %p126 = scmp.eq.s32.totalorder %s20, 1
    %p127 = por %p125, %p126
    %p129 = scmp.ne.s32.totalorder %s114, %s128
    %p130 = scmp.eq.s32.totalorder %s20, 0
    %p131 = por %p129, %p130
    %s133 = sadd.s32 %s132, 1
    %p136 = scmp.eq.s32.totalorder %s14, 1
    %p137 = scmp.ne.s32.totalorder %s132, %s134
    %p138 = scmp.eq.s32.totalorder %s14, 0
    %p139 = por %p137, %p138
    %p140 = scmp.ne.s32.totalorder %s132, %s134
    %p141 = scmp.eq.s32.totalorder %s19, 1
    %p142 = por %p140, %p141
    %p143 = scmp.ne.s32.totalorder %s134, %s135
    %p144 = scmp.eq.s32.totalorder %s19, 0
    %p145 = por %p143, %p144
    %p146 = scmp.ne.s32.totalorder %s134, %s135
    %p147 = scmp.eq.s32.totalorder %s20, 1
    %p148 = por %p146, %p147
    %p150 = scmp.ne.s32.totalorder %s135, %s149
    %p151 = scmp.eq.s32.totalorder %s20, 0
    %p152 = por %p150, %p151
    %s154 = sadd.s32 %s153, 1
    %p157 = scmp.eq.s32.totalorder %s14, 1
    %p158 = scmp.ne.s32.totalorder %s153, %s155
    %p159 = scmp.eq.s32.totalorder %s14, 0
    %p160 = por %p158, %p159
    %p161 = scmp.ne.s32.totalorder %s153, %s155
    %p162 = scmp.eq.s32.totalorder %s19, 1
    %p163 = por %p161, %p162
    %p164 = scmp.ne.s32.totalorder %s155, %s156
    %p165 = scmp.eq.s32.totalorder %s19, 0
    %p166 = por %p164, %p165
    %p167 = scmp.ne.s32.totalorder %s155, %s156
    %p168 = scmp.eq.s32.totalorder %s20, 1
    %p169 = por %p167, %p168
    %p171 = scmp.ne.s32.totalorder %s156, %s170
    %p172 = scmp.eq.s32.totalorder %s20, 0
    %p173 = por %p171, %p172
    %s175 = sadd.s32 %s174, 1
    %p178 = scmp.eq.s32.totalorder %s14, 1
    %p179 = scmp.ne.s32.totalorder %s174, %s176
    %p180 = scmp.eq.s32.totalorder %s14, 0
    %p181 = por %p179, %p180
    %p182 = scmp.ne.s32.totalorder %s174, %s176
    %p183 = scmp.eq.s32.totalorder %s19, 1
    %p184 = por %p182, %p183
    %p185 = scmp.ne.s32.totalorder %s176, %s177
    %p186 = scmp.eq.s32.totalorder %s19, 0
    %p187 = por %p185, %p186
    %p188 = scmp.ne.s32.totalorder %s176, %s177
    %p189 = scmp.eq.s32.totalorder %s20, 1
    %p190 = por %p188, %p189
    %p192 = scmp.ne.s32.totalorder %s177, %s191
    %p193 = scmp.eq.s32.totalorder %s20, 0
    %p194 = por %p192, %p193
    %s195 = ssub.s32 %s14, %s21
    %p196 = scmp.eq.s32.totalorder %s195, 0
    %s198 = sadd.s32 %s197, 1
    %s199 = scalar_select %p196, %s197, %s198
    %p202 = pneg %p196
    %p203 = scmp.eq.s32.totalorder %s14, 1
    %p204 = por %p202, %p203
    %p205 = scmp.ne.s32.totalorder %s197, %s200
    %p206 = scmp.eq.s32.totalorder %s14, 0
    %p207 = por %p205, %p206
    %p208 = scmp.ne.s32.totalorder %s197, %s200
    %p209 = scmp.eq.s32.totalorder %s19, 1
    %p210 = por %p208, %p209
    %p211 = scmp.ne.s32.totalorder %s200, %s201
    %p212 = scmp.eq.s32.totalorder %s19, 0
    %p213 = por %p211, %p212
    %p214 = scmp.ne.s32.totalorder %s200, %s201
    %p215 = scmp.eq.s32.totalorder %s20, 1
    %p216 = por %p214, %p215
    %p218 = scmp.ne.s32.totalorder %s201, %s217
    %p219 = scmp.eq.s32.totalorder %s20, 0
    %p220 = por %p218, %p219
    %p221 = scmp.le.s32.totalorder 1, %s14
    %p222 = scmp.lt.s32.totalorder %s14, 3
    %p223 = pnand %p221, %p222
    %p224 = pneg %p223
    // Predicated region
    $region9: #{extractor_forward.1} parent=5 // pred_check
      _
    $region10: #{extractor_forward.1} parent=5 // pred_check_branch
      %226 = sbr.rel (%p223) target = $region12
    $region11: #{extractor_forward.1} parent=5 // pred_region
      %s227 = ssub.s32 %s14, 1
      // Predicated region
      $region13: #{extractor_forward.1} parent=11 // pred_check
        %p228 = pneg %p61
      $region14: #{extractor_forward.1} parent=11 // pred_check_branch
        %230 = sbr.rel (%p228) target = $region16
      $region15: #{extractor_forward.1} parent=11 // pred_region
        _
      $region16: #{extractor_forward.1} parent=11 // pred_fallthru
        _
      // Predicated region
      $region17: #{extractor_forward.1} parent=11 // pred_check
        %p231 = pneg %p82
      $region18: #{extractor_forward.1} parent=11 // pred_check_branch
        %233 = sbr.rel (%p231) target = $region20
      $region19: #{extractor_forward.1} parent=11 // pred_region
        _
      $region20: #{extractor_forward.1} parent=11 // pred_fallthru
        _
      // Predicated region
      $region21: #{extractor_forward.1} parent=11 // pred_check
        %p234 = pneg %p103
      $region22: #{extractor_forward.1} parent=11 // pred_check_branch
        %236 = sbr.rel (%p234) target = $region24
      $region23: #{extractor_forward.1} parent=11 // pred_region
        _
      $region24: #{extractor_forward.1} parent=11 // pred_fallthru
        _
      // Predicated region
      $region25: #{extractor_forward.1} parent=11 // pred_check
        %p237 = pneg %p124
      $region26: #{extractor_forward.1} parent=11 // pred_check_branch
        %239 = sbr.rel (%p237) target = $region28
      $region27: #{extractor_forward.1} parent=11 // pred_region
        _
      $region28: #{extractor_forward.1} parent=11 // pred_fallthru
        _
      // Predicated region
      $region29: #{extractor_forward.1} parent=11 // pred_check
        %p240 = pneg %p145
      $region30: #{extractor_forward.1} parent=11 // pred_check_branch
        %242 = sbr.rel (%p240) target = $region32
      $region31: #{extractor_forward.1} parent=11 // pred_region
        _
      $region32: #{extractor_forward.1} parent=11 // pred_fallthru
        _
      // Predicated region
      $region33: #{extractor_forward.1} parent=11 // pred_check
        %p243 = pneg %p166
      $region34: #{extractor_forward.1} parent=11 // pred_check_branch
        %245 = sbr.rel (%p243) target = $region36
      $region35: #{extractor_forward.1} parent=11 // pred_region
        _
      $region36: #{extractor_forward.1} parent=11 // pred_fallthru
        _
      // Predicated region
      $region37: #{extractor_forward.1} parent=11 // pred_check
        %p246 = pneg %p187
      $region38: #{extractor_forward.1} parent=11 // pred_check_branch
        %248 = sbr.rel (%p246) target = $region40
      $region39: #{extractor_forward.1} parent=11 // pred_region
        _
      $region40: #{extractor_forward.1} parent=11 // pred_fallthru
        _
    $region12: #{extractor_forward.1} parent=5 // pred_fallthru
      _
    %p249 = scmp.lt.s32.totalorder %s14, 2
    // Predicated region
    $region41: #{extractor_forward.1} parent=5 // pred_check
      %p250 = pneg %p249
    $region42: #{extractor_forward.1} parent=5 // pred_check_branch
      %252 = sbr.rel (%p250) target = $region44
    $region43: #{extractor_forward.1} parent=5 // pred_region
      // Predicated region
      $region45: #{extractor_forward.1} parent=43 // pred_check
        %p253 = pneg %p34
      $region46: #{extractor_forward.1} parent=43 // pred_check_branch
        %255 = sbr.rel (%p253) target = $region48
      $region47: #{extractor_forward.1} parent=43 // pred_region
        %p256 = scmp.lt.s32.totalorder %s14, 1
        %s257 = scalar_select %p256, %s14, 1
        %s258 = smul.addr %s257, 2
        %s259 = smul.addr %s258, 8
        %s260 = scalar_lea.vmem %s0, %s259
      $region48: #{extractor_forward.1} parent=43 // pred_fallthru
        _
    $region44: #{extractor_forward.1} parent=5 // pred_fallthru
      _
    %p261 = scmp.le.s32.totalorder 1, %s14
    %p262 = scmp.lt.s32.totalorder %s14, 3
    %p263 = pnand %p261, %p262
    %p264 = pneg %p263
    // Predicated region
    $region49: #{extractor_forward.1} parent=5 // pred_check
      _
    $region50: #{extractor_forward.1} parent=5 // pred_check_branch
      %266 = sbr.rel (%p263) target = $region52
    $region51: #{extractor_forward.1} parent=5 // pred_region
      %s267 = ssub.s32 %s14, 1
      %p268 = scmp.lt.s32.totalorder %s19, 1
      %s269 = scalar_select %p268, %s19, 1
      %s270 = smul.addr %s269, 2
      %s271 = smul.addr %s270, 8
      %s272 = scalar_lea.vmem %s0, %s271
      %p273 = pneg %p40
      %p274 = pneg %p37
      %p275 = pneg %p61
      %p276 = pneg %p58
      %p277 = pneg %p82
      %p278 = pneg %p79
      %p279 = pneg %p103
      %p280 = pneg %p100
      %p281 = pneg %p124
      %p282 = pneg %p121
      %p283 = pneg %p145
      %p284 = pneg %p142
      %p285 = pneg %p166
      %p286 = pneg %p163
      %p287 = pneg %p187
      %p288 = pneg %p184
      %p289 = pneg %p213
      %p290 = pneg %p210
      %p291 = scmp.lt.s32.totalorder %s19, 1
      %s292 = scalar_select %p291, %s19, 1
      %s293 = smul.addr %s292, 4
      %s294 = scalar_lea.vmem %s8, %s293
      %p295 = scmp.lt.s32.totalorder %s19, 1
      %s296 = scalar_select %p295, %s19, 1
      %s297 = smul.addr %s296, 2
      %s298 = smul.addr %s297, 8
      %s299 = scalar_lea.vmem %s0, %s298
      %p300 = scmp.lt.s32.totalorder %s19, 1
      %s301 = scalar_select %p300, %s19, 1
      %s302 = smul.addr %s301, 4
      %s303 = scalar_lea.vmem %s8, %s302
      %vm304 = vcmask 261120
      %305 = vst.msk [vmem:[#allocation2] sm:$0xff] %vm304, 0.0
      %306 = vst.msk [vmem:[#allocation2 + $0x8] sm:$0xff] %vm304, 0.0
      %307 = vst.msk [vmem:[#allocation2 + $0x90] sm:$0xff] %vm304, 0.0
      %308 = vst.msk [vmem:[#allocation2 + $0x98] sm:$0xff] %vm304, 0.0
      %309 = vst.msk [vmem:[#allocation3] sm:$0xff] %vm304, 0.0
      %310 = vst.msk [vmem:[#allocation3 + $0x8] sm:$0xff] %vm304, 0.0
      %311 = vst.msk [vmem:[#allocation3 + $0x90] sm:$0xff] %vm304, 0.0
      %312 = vst.msk [vmem:[#allocation3 + $0x98] sm:$0xff] %vm304, 0.0
      %v313 = vld [vmem:[%s1] sm:$0xff]
      %v314 = vld [vmem:[%s1 + $0x8] sm:$0xff]
      %v315 = vld [vmem:[%s1 + $0x10] sm:$0xff]
      %v316 = vld [vmem:[%s1 + $0x18] sm:$0xff]
      %v317 = vld [vmem:[%s1 + $0x20] sm:$0xff]
      %v318 = vld [vmem:[%s1 + $0x28] sm:$0xff]
      %v319 = vld [vmem:[%s1 + $0x30] sm:$0xff]
      %v320 = vld [vmem:[%s1 + $0x38] sm:$0xff]
      %v321 = vld [vmem:[%s1 + $0x40] sm:$0xff]
      %v322 = vld [vmem:[%s1 + $0x48] sm:$0xff]
      %v323 = vld [vmem:[%s1 + $0x50] sm:$0xff]
      %v324 = vld [vmem:[%s1 + $0x58] sm:$0xff]
      %v325 = vld [vmem:[%s1 + $0x60] sm:$0xff]
      %v326 = vld [vmem:[%s1 + $0x68] sm:$0xff]
      %v327 = vld [vmem:[%s1 + $0x70] sm:$0xff]
      %v328 = vld [vmem:[%s1 + $0x78] sm:$0xff]
      %v329 = vld [vmem:[%s299] sm:$0xff]
      %v330 = vld [vmem:[%s299 + $0x8] sm:$0xff]
      %v331 = vld [vmem:[%s2] sm:$0xff]
      %v332 = vld [vmem:[%s2 + $0x8] sm:$0xff]
      %v333 = vld [vmem:[%s3] sm:$0x1]
      %v335 = vperm.slane %v333, 0
      %337 = vxpose.xlu0.b32.start [1/16] %v329, 128
      %338 = vxpose.xlu0.b32.cont [2/16] %v330, 128
      %339 = vxpose.xlu0.b32.cont [3/16] 0.0, 128
      %340 = vxpose.xlu0.b32.cont [4/16] 0.0, 128
      %341 = vxpose.xlu0.b32.cont [5/16] 0.0, 128
      %342 = vxpose.xlu0.b32.cont [6/16] 0.0, 128
      %343 = vxpose.xlu0.b32.cont [7/16] 0.0, 128
      %344 = vxpose.xlu0.b32.cont [8/16] 0.0, 128
      %345 = vxpose.xlu0.b32.cont [9/16] 0.0, 128
      %346 = vxpose.xlu0.b32.cont [10/16] 0.0, 128
      %347 = vxpose.xlu0.b32.cont [11/16] 0.0, 128
      %348 = vxpose.xlu0.b32.cont [12/16] 0.0, 128
      %349 = vxpose.xlu0.b32.cont [13/16] 0.0, 128
      %350 = vxpose.xlu0.b32.cont [14/16] 0.0, 128
      %351 = vxpose.xlu0.b32.cont [15/16] 0.0, 128
      %352 = vxpose.xlu0.b32.end [16/16] 0.0, 128
      %v353 = vpop.trf.xlu0
      %v354 = vpop.trf.xlu0
      %v355 = vpop.trf.xlu0
      %v356 = vpop.trf.xlu0
      %v357 = vpop.trf.xlu0
      %v358 = vpop.trf.xlu0
      %v359 = vpop.trf.xlu0
      %v360 = vpop.trf.xlu0
      %v361 = vpop.trf.xlu0
      %v362 = vpop.trf.xlu0
      %v363 = vpop.trf.xlu0
      %v364 = vpop.trf.xlu0
      %v365 = vpop.trf.xlu0
      %v366 = vpop.trf.xlu0
      %v367 = vpop.trf.xlu0
      %v368 = vpop.trf.xlu0
      %vm369 = vcmask 130048
      %v371 = vsel %vm369, %v353, 0
      %v374 = vsel %vm369, %v354, 0
      %v377 = vsel %vm369, %v355, 0
      %v380 = vsel %vm369, %v356, 0
      %v383 = vsel %vm369, %v357, 0
      %v386 = vsel %vm369, %v358, 0
      %v389 = vsel %vm369, %v359, 0
      %v392 = vsel %vm369, %v360, 0
      %v395 = vsel %vm369, %v361, 0
      %v398 = vsel %vm369, %v362, 0
      %v401 = vsel %vm369, %v363, 0
      %v404 = vsel %vm369, %v364, 0
      %v407 = vsel %vm369, %v365, 0
      %v410 = vsel %vm369, %v366, 0
      %v413 = vsel %vm369, %v367, 0
      %v416 = vsel %vm369, %v368, 0
      %418 = vmatpush.msra.mxu0 0.0
      %419 = vmatpush.msra.mxu0 0.0
      %420 = vmatpush.msra.mxu0 0.0
      %421 = vmatpush.msra.mxu0 0.0
      %422 = vmatpush.msra.mxu0 0.0
      %423 = vmatpush.msra.mxu0 0.0
      %424 = vmatpush.msra.mxu0 0.0
      %425 = vmatpush.msra.mxu0 0.0
      %426 = vmatpush.msra.mxu0 0.0
      %427 = vmatpush.msra.mxu0 0.0
      %428 = vmatpush.msra.mxu0 0.0
      %429 = vmatpush.msra.mxu0 0.0
      %430 = vmatpush.msra.mxu0 0.0
      %431 = vmatpush.msra.mxu0 0.0
      %432 = vmatpush.msra.mxu0 %v332
      %433 = vmatpush.msra.mxu0 %v331
      %434 = vmatmul.f32.gmra.mxu0 %v371
      %v435 = vpop.f32.mrf.mxu0
      %v436 = vadd.f32 %v335, %v435
      %437 = vmatmul.f32.gmra.mxu0 %v374
      %v438 = vpop.f32.mrf.mxu0
      %v439 = vadd.f32 %v335, %v438
      %440 = vmatmul.f32.gmra.mxu0 %v377
      %v441 = vpop.f32.mrf.mxu0
      %v442 = vadd.f32 %v335, %v441
      %443 = vmatmul.f32.gmra.mxu0 %v380
      %v444 = vpop.f32.mrf.mxu0
      %v445 = vadd.f32 %v335, %v444
      %446 = vmatmul.f32.gmra.mxu0 %v383
      %v447 = vpop.f32.mrf.mxu0
      %v448 = vadd.f32 %v335, %v447
      %449 = vmatmul.f32.gmra.mxu0 %v386
      %v450 = vpop.f32.mrf.mxu0
      %v451 = vadd.f32 %v335, %v450
      %452 = vmatmul.f32.gmra.mxu0 %v389
      %v453 = vpop.f32.mrf.mxu0
      %v454 = vadd.f32 %v335, %v453
      %455 = vmatmul.f32.gmra.mxu0 %v392
      %v456 = vpop.f32.mrf.mxu0
      %v457 = vadd.f32 %v335, %v456
      %458 = vmatmul.f32.gmra.mxu0 %v395
      %v459 = vpop.f32.mrf.mxu0
      %v460 = vadd.f32 %v335, %v459
      %461 = vmatmul.f32.gmra.mxu0 %v398
      %v462 = vpop.f32.mrf.mxu0
      %v463 = vadd.f32 %v335, %v462
      %464 = vmatmul.f32.gmra.mxu0 %v401
      %v465 = vpop.f32.mrf.mxu0
      %v466 = vadd.f32 %v335, %v465
      %467 = vmatmul.f32.gmra.mxu0 %v404
      %v468 = vpop.f32.mrf.mxu0
      %v469 = vadd.f32 %v335, %v468
      %470 = vmatmul.f32.gmra.mxu0 %v407
      %v471 = vpop.f32.mrf.mxu0
      %v472 = vadd.f32 %v335, %v471
      %473 = vmatmul.f32.gmra.mxu0 %v410
      %v474 = vpop.f32.mrf.mxu0
      %v475 = vadd.f32 %v335, %v474
      %476 = vmatmul.f32.gmra.mxu0 %v413
      %v477 = vpop.f32.mrf.mxu0
      %v478 = vadd.f32 %v335, %v477
      %479 = vmatmul.f32.gmra.mxu0 %v416
      %v480 = vpop.f32.mrf.mxu0
      %v481 = vadd.f32 %v335, %v480
      %482 = vdwg.mxu0
      %484 = vset.pattern.permute.xlu0 0
      %485 = vperm.xlu0 %484, %v313
      %v486 = vpop.permute.xlu0 %485
      %489 = vset.pattern.permute.xlu0 0
      %490 = vperm.xlu0 %489, %v314
      %v491 = vpop.permute.xlu0 %490
      %494 = vset.pattern.permute.xlu0 0
      %495 = vperm.xlu0 %494, %v315
      %v496 = vpop.permute.xlu0 %495
      %499 = vset.pattern.permute.xlu0 0
      %500 = vperm.xlu0 %499, %v316
      %v501 = vpop.permute.xlu0 %500
      %504 = vset.pattern.permute.xlu0 0
      %505 = vperm.xlu0 %504, %v317
      %v506 = vpop.permute.xlu0 %505
      %509 = vset.pattern.permute.xlu0 0
      %510 = vperm.xlu0 %509, %v318
      %v511 = vpop.permute.xlu0 %510
      %514 = vset.pattern.permute.xlu0 0
      %515 = vperm.xlu0 %514, %v319
      %v516 = vpop.permute.xlu0 %515
      %519 = vset.pattern.permute.xlu0 0
      %520 = vperm.xlu0 %519, %v320
      %v521 = vpop.permute.xlu0 %520
      %524 = vset.pattern.permute.xlu0 0
      %525 = vperm.xlu0 %524, %v321
      %v526 = vpop.permute.xlu0 %525
      %529 = vset.pattern.permute.xlu0 0
      %530 = vperm.xlu0 %529, %v322
      %v531 = vpop.permute.xlu0 %530
      %534 = vset.pattern.permute.xlu0 0
      %535 = vperm.xlu0 %534, %v323
      %v536 = vpop.permute.xlu0 %535
      %539 = vset.pattern.permute.xlu0 0
      %540 = vperm.xlu0 %539, %v324
      %v541 = vpop.permute.xlu0 %540
      %544 = vset.pattern.permute.xlu0 0
      %545 = vperm.xlu0 %544, %v325
      %v546 = vpop.permute.xlu0 %545
      %549 = vset.pattern.permute.xlu0 0
      %550 = vperm.xlu0 %549, %v326
      %v551 = vpop.permute.xlu0 %550
      %554 = vset.pattern.permute.xlu0 0
      %555 = vperm.xlu0 %554, %v327
      %v556 = vpop.permute.xlu0 %555
      %559 = vset.pattern.permute.xlu0 0
      %560 = vperm.xlu0 %559, %v328
      %v561 = vpop.permute.xlu0 %560
      %v563 = vmul.f32 %v436, %v486
      %v564 = vmul.f32 %v439, %v491
      %v565 = vmul.f32 %v442, %v496
      %v566 = vmul.f32 %v445, %v501
      %v567 = vmul.f32 %v448, %v506
      %v568 = vmul.f32 %v451, %v511
      %v569 = vmul.f32 %v454, %v516
      %v570 = vmul.f32 %v457, %v521
      %v571 = vmul.f32 %v460, %v526
      %v572 = vmul.f32 %v463, %v531
      %v573 = vmul.f32 %v466, %v536
      %v574 = vmul.f32 %v469, %v541
      %v575 = vmul.f32 %v472, %v546
      %v576 = vmul.f32 %v475, %v551
      %v577 = vmul.f32 %v478, %v556
      %v578 = vmul.f32 %v481, %v561
      %579 = vst.msk [vmem:[#allocation2 + $0x10] sm:$0xff] %vm304, %v563
      %580 = vst.msk [vmem:[#allocation2 + $0x18] sm:$0xff] %vm304, %v564
      %581 = vst.msk [vmem:[#allocation2 + $0x20] sm:$0xff] %vm304, %v565
      %582 = vst.msk [vmem:[#allocation2 + $0x28] sm:$0xff] %vm304, %v566
      %583 = vst.msk [vmem:[#allocation2 + $0x30] sm:$0xff] %vm304, %v567
      %584 = vst.msk [vmem:[#allocation2 + $0x38] sm:$0xff] %vm304, %v568
      %585 = vst.msk [vmem:[#allocation2 + $0x40] sm:$0xff] %vm304, %v569
      %586 = vst.msk [vmem:[#allocation2 + $0x48] sm:$0xff] %vm304, %v570
      %587 = vst.msk [vmem:[#allocation2 + $0x50] sm:$0xff] %vm304, %v571
      %588 = vst.msk [vmem:[#allocation2 + $0x58] sm:$0xff] %vm304, %v572
      %589 = vst.msk [vmem:[#allocation2 + $0x60] sm:$0xff] %vm304, %v573
      %590 = vst.msk [vmem:[#allocation2 + $0x68] sm:$0xff] %vm304, %v574
      %591 = vst.msk [vmem:[#allocation2 + $0x70] sm:$0xff] %vm304, %v575
      %592 = vst.msk [vmem:[#allocation2 + $0x78] sm:$0xff] %vm304, %v576
      %593 = vst.msk [vmem:[#allocation2 + $0x80] sm:$0xff] %vm304, %v577
      %594 = vst.msk [vmem:[#allocation2 + $0x88] sm:$0xff] %vm304, %v578
      %v595 = vld [vmem:[#allocation2 + $0x5] sm:$0xff]
      %v596 = vld [vmem:[#allocation2 + $0xd] sm:$0xff]
      %v597 = vld [vmem:[#allocation2 + $0x15] sm:$0xff]
      %v598 = vld [vmem:[#allocation2 + $0x1d] sm:$0xff]
      %v599 = vld [vmem:[#allocation2 + $0x25] sm:$0xff]
      %v600 = vld [vmem:[#allocation2 + $0x2d] sm:$0xff]
      %v601 = vld [vmem:[#allocation2 + $0x35] sm:$0xff]
      %v602 = vld [vmem:[#allocation2 + $0x3d] sm:$0xff]
      %v603 = vld [vmem:[#allocation2 + $0x45] sm:$0xff]
      %v604 = vld [vmem:[#allocation2 + $0x4d] sm:$0xff]
      %v605 = vld [vmem:[#allocation2 + $0x55] sm:$0xff]
      %v606 = vld [vmem:[#allocation2 + $0x5d] sm:$0xff]
      %v607 = vld [vmem:[#allocation2 + $0x65] sm:$0xff]
      %v608 = vld [vmem:[#allocation2 + $0x6d] sm:$0xff]
      %v609 = vld [vmem:[#allocation2 + $0x75] sm:$0xff]
      %v610 = vld [vmem:[#allocation2 + $0x7d] sm:$0xff]
      %611 = vst.msk [vmem:[#allocation4] sm:$0xff] %vm304, %v595
      %612 = vst.msk [vmem:[#allocation4 + $0x18] sm:$0xff] %vm304, %v596
      %613 = vst.msk [vmem:[#allocation4 + $0x30] sm:$0xff] %vm304, %v597
      %614 = vst.msk [vmem:[#allocation4 + $0x48] sm:$0xff] %vm304, %v598
      %615 = vst.msk [vmem:[#allocation4 + $0x60] sm:$0xff] %vm304, %v599
      %616 = vst.msk [vmem:[#allocation4 + $0x78] sm:$0xff] %vm304, %v600
      %617 = vst.msk [vmem:[#allocation4 + $0x90] sm:$0xff] %vm304, %v601
      %618 = vst.msk [vmem:[#allocation4 + $0xa8] sm:$0xff] %vm304, %v602
      %619 = vst.msk [vmem:[#allocation4 + $0xc0] sm:$0xff] %vm304, %v603
      %620 = vst.msk [vmem:[#allocation4 + $0xd8] sm:$0xff] %vm304, %v604
      %621 = vst.msk [vmem:[#allocation4 + $0xf0] sm:$0xff] %vm304, %v605
      %622 = vst.msk [vmem:[#allocation4 + $0x108] sm:$0xff] %vm304, %v606
      %623 = vst.msk [vmem:[#allocation4 + $0x120] sm:$0xff] %vm304, %v607
      %624 = vst.msk [vmem:[#allocation4 + $0x138] sm:$0xff] %vm304, %v608
      %625 = vst.msk [vmem:[#allocation4 + $0x150] sm:$0xff] %vm304, %v609
      %626 = vst.msk [vmem:[#allocation4 + $0x168] sm:$0xff] %vm304, %v610
      %v627 = vld [vmem:[#allocation2 + $0x6] sm:$0xff]
      %v628 = vld [vmem:[#allocation2 + $0xe] sm:$0xff]
      %v629 = vld [vmem:[#allocation2 + $0x16] sm:$0xff]
      %v630 = vld [vmem:[#allocation2 + $0x1e] sm:$0xff]
      %v631 = vld [vmem:[#allocation2 + $0x26] sm:$0xff]
      %v632 = vld [vmem:[#allocation2 + $0x2e] sm:$0xff]
      %v633 = vld [vmem:[#allocation2 + $0x36] sm:$0xff]
      %v634 = vld [vmem:[#allocation2 + $0x3e] sm:$0xff]
      %v635 = vld [vmem:[#allocation2 + $0x46] sm:$0xff]
      %v636 = vld [vmem:[#allocation2 + $0x4e] sm:$0xff]
      %v637 = vld [vmem:[#allocation2 + $0x56] sm:$0xff]
      %v638 = vld [vmem:[#allocation2 + $0x5e] sm:$0xff]
      %v639 = vld [vmem:[#allocation2 + $0x66] sm:$0xff]
      %v640 = vld [vmem:[#allocation2 + $0x6e] sm:$0xff]
      %v641 = vld [vmem:[#allocation2 + $0x76] sm:$0xff]
      %v642 = vld [vmem:[#allocation2 + $0x7e] sm:$0xff]
      %659 = vrot.lane.b32.xlu0 %v627, 32
      %v660 = vpop.permute.xlu0 %659
      %661 = vrot.lane.b32.xlu0 %v628, 32
      %v662 = vpop.permute.xlu0 %661
      %663 = vrot.lane.b32.xlu0 %v629, 32
      %v664 = vpop.permute.xlu0 %663
      %665 = vrot.lane.b32.xlu0 %v630, 32
      %v666 = vpop.permute.xlu0 %665
      %667 = vrot.lane.b32.xlu0 %v631, 32
      %v668 = vpop.permute.xlu0 %667
      %669 = vrot.lane.b32.xlu0 %v632, 32
      %v670 = vpop.permute.xlu0 %669
      %671 = vrot.lane.b32.xlu0 %v633, 32
      %v672 = vpop.permute.xlu0 %671
      %673 = vrot.lane.b32.xlu0 %v634, 32
      %v674 = vpop.permute.xlu0 %673
      %675 = vrot.lane.b32.xlu0 %v635, 32
      %v676 = vpop.permute.xlu0 %675
      %677 = vrot.lane.b32.xlu0 %v636, 32
      %v678 = vpop.permute.xlu0 %677
      %679 = vrot.lane.b32.xlu0 %v637, 32
      %v680 = vpop.permute.xlu0 %679
      %681 = vrot.lane.b32.xlu0 %v638, 32
      %v682 = vpop.permute.xlu0 %681
      %683 = vrot.lane.b32.xlu0 %v639, 32
      %v684 = vpop.permute.xlu0 %683
      %685 = vrot.lane.b32.xlu0 %v640, 32
      %v686 = vpop.permute.xlu0 %685
      %687 = vrot.lane.b32.xlu0 %v641, 32
      %v688 = vpop.permute.xlu0 %687
      %689 = vrot.lane.b32.xlu0 %v642, 32
      %v690 = vpop.permute.xlu0 %689
      %vm707 = vcmask 523520
      %708 = vst.msk [vmem:[#allocation4] sm:$0xff] %vm707, %v660
      %709 = vst.msk [vmem:[#allocation4 + $0x18] sm:$0xff] %vm707, %v662
      %710 = vst.msk [vmem:[#allocation4 + $0x30] sm:$0xff] %vm707, %v664
      %711 = vst.msk [vmem:[#allocation4 + $0x48] sm:$0xff] %vm707, %v666
      %712 = vst.msk [vmem:[#allocation4 + $0x60] sm:$0xff] %vm707, %v668
      %713 = vst.msk [vmem:[#allocation4 + $0x78] sm:$0xff] %vm707, %v670
      %714 = vst.msk [vmem:[#allocation4 + $0x90] sm:$0xff] %vm707, %v672
      %715 = vst.msk [vmem:[#allocation4 + $0xa8] sm:$0xff] %vm707, %v674
      %716 = vst.msk [vmem:[#allocation4 + $0xc0] sm:$0xff] %vm707, %v676
      %717 = vst.msk [vmem:[#allocation4 + $0xd8] sm:$0xff] %vm707, %v678
      %718 = vst.msk [vmem:[#allocation4 + $0xf0] sm:$0xff] %vm707, %v680
      %719 = vst.msk [vmem:[#allocation4 + $0x108] sm:$0xff] %vm707, %v682
      %720 = vst.msk [vmem:[#allocation4 + $0x120] sm:$0xff] %vm707, %v684
      %721 = vst.msk [vmem:[#allocation4 + $0x138] sm:$0xff] %vm707, %v686
      %722 = vst.msk [vmem:[#allocation4 + $0x150] sm:$0xff] %vm707, %v688
      %723 = vst.msk [vmem:[#allocation4 + $0x168] sm:$0xff] %vm707, %v690
      %v724 = vld [vmem:[#allocation2 + $0x7] sm:$0xff]
      %v725 = vld [vmem:[#allocation2 + $0xf] sm:$0xff]
      %v726 = vld [vmem:[#allocation2 + $0x17] sm:$0xff]
      %v727 = vld [vmem:[#allocation2 + $0x1f] sm:$0xff]
      %v728 = vld [vmem:[#allocation2 + $0x27] sm:$0xff]
      %v729 = vld [vmem:[#allocation2 + $0x2f] sm:$0xff]
      %v730 = vld [vmem:[#allocation2 + $0x37] sm:$0xff]
      %v731 = vld [vmem:[#allocation2 + $0x3f] sm:$0xff]
      %v732 = vld [vmem:[#allocation2 + $0x47] sm:$0xff]
      %v733 = vld [vmem:[#allocation2 + $0x4f] sm:$0xff]
      %v734 = vld [vmem:[#allocation2 + $0x57] sm:$0xff]
      %v735 = vld [vmem:[#allocation2 + $0x5f] sm:$0xff]
      %v736 = vld [vmem:[#allocation2 + $0x67] sm:$0xff]
      %v737 = vld [vmem:[#allocation2 + $0x6f] sm:$0xff]
      %v738 = vld [vmem:[#allocation2 + $0x77] sm:$0xff]
      %v739 = vld [vmem:[#allocation2 + $0x7f] sm:$0xff]
      %756 = vrot.lane.b32.xlu0 %v724, 64
      %v757 = vpop.permute.xlu0 %756
      %758 = vrot.lane.b32.xlu0 %v725, 64
      %v759 = vpop.permute.xlu0 %758
      %760 = vrot.lane.b32.xlu0 %v726, 64
      %v761 = vpop.permute.xlu0 %760
      %762 = vrot.lane.b32.xlu0 %v727, 64
      %v763 = vpop.permute.xlu0 %762
      %764 = vrot.lane.b32.xlu0 %v728, 64
      %v765 = vpop.permute.xlu0 %764
      %766 = vrot.lane.b32.xlu0 %v729, 64
      %v767 = vpop.permute.xlu0 %766
      %768 = vrot.lane.b32.xlu0 %v730, 64
      %v769 = vpop.permute.xlu0 %768
      %770 = vrot.lane.b32.xlu0 %v731, 64
      %v771 = vpop.permute.xlu0 %770
      %772 = vrot.lane.b32.xlu0 %v732, 64
      %v773 = vpop.permute.xlu0 %772
      %774 = vrot.lane.b32.xlu0 %v733, 64
      %v775 = vpop.permute.xlu0 %774
      %776 = vrot.lane.b32.xlu0 %v734, 64
      %v777 = vpop.permute.xlu0 %776
      %778 = vrot.lane.b32.xlu0 %v735, 64
      %v779 = vpop.permute.xlu0 %778
      %780 = vrot.lane.b32.xlu0 %v736, 64
      %v781 = vpop.permute.xlu0 %780
      %782 = vrot.lane.b32.xlu0 %v737, 64
      %v783 = vpop.permute.xlu0 %782
      %784 = vrot.lane.b32.xlu0 %v738, 64
      %v785 = vpop.permute.xlu0 %784
      %786 = vrot.lane.b32.xlu0 %v739, 64
      %v787 = vpop.permute.xlu0 %786
      %vm804 = vcmask 785920
      %805 = vst.msk [vmem:[#allocation4] sm:$0xff] %vm804, %v757
      %806 = vst.msk [vmem:[#allocation4 + $0x18] sm:$0xff] %vm804, %v759
      %807 = vst.msk [vmem:[#allocation4 + $0x30] sm:$0xff] %vm804, %v761
      %808 = vst.msk [vmem:[#allocation4 + $0x48] sm:$0xff] %vm804, %v763
      %809 = vst.msk [vmem:[#allocation4 + $0x60] sm:$0xff] %vm804, %v765
      %810 = vst.msk [vmem:[#allocation4 + $0x78] sm:$0xff] %vm804, %v767
      %811 = vst.msk [vmem:[#allocation4 + $0x90] sm:$0xff] %vm804, %v769
      %812 = vst.msk [vmem:[#allocation4 + $0xa8] sm:$0xff] %vm804, %v771
      %813 = vst.msk [vmem:[#allocation4 + $0xc0] sm:$0xff] %vm804, %v773
      %814 = vst.msk [vmem:[#allocation4 + $0xd8] sm:$0xff] %vm804, %v775
      %815 = vst.msk [vmem:[#allocation4 + $0xf0] sm:$0xff] %vm804, %v777
      %816 = vst.msk [vmem:[#allocation4 + $0x108] sm:$0xff] %vm804, %v779
      %817 = vst.msk [vmem:[#allocation4 + $0x120] sm:$0xff] %vm804, %v781
      %818 = vst.msk [vmem:[#allocation4 + $0x138] sm:$0xff] %vm804, %v783
      %819 = vst.msk [vmem:[#allocation4 + $0x150] sm:$0xff] %vm804, %v785
      %820 = vst.msk [vmem:[#allocation4 + $0x168] sm:$0xff] %vm804, %v787
      %v821 = vld [vmem:[#allocation2 + $0xf] sm:$0xff]
      %v822 = vld [vmem:[#allocation2 + $0x17] sm:$0xff]
      %v823 = vld [vmem:[#allocation2 + $0x1f] sm:$0xff]
      %v824 = vld [vmem:[#allocation2 + $0x27] sm:$0xff]
      %v825 = vld [vmem:[#allocation2 + $0x2f] sm:$0xff]
      %v826 = vld [vmem:[#allocation2 + $0x37] sm:$0xff]
      %v827 = vld [vmem:[#allocation2 + $0x3f] sm:$0xff]
      %v828 = vld [vmem:[#allocation2 + $0x47] sm:$0xff]
      %v829 = vld [vmem:[#allocation2 + $0x4f] sm:$0xff]
      %v830 = vld [vmem:[#allocation2 + $0x57] sm:$0xff]
      %v831 = vld [vmem:[#allocation2 + $0x5f] sm:$0xff]
      %v832 = vld [vmem:[#allocation2 + $0x67] sm:$0xff]
      %v833 = vld [vmem:[#allocation2 + $0x6f] sm:$0xff]
      %v834 = vld [vmem:[#allocation2 + $0x77] sm:$0xff]
      %v835 = vld [vmem:[#allocation2 + $0x7f] sm:$0xff]
      %v836 = vld [vmem:[#allocation2 + $0x87] sm:$0xff]
      %853 = vrot.lane.b32.xlu0 %v821, 96
      %v854 = vpop.permute.xlu0 %853
      %855 = vrot.lane.b32.xlu0 %v822, 96
      %v856 = vpop.permute.xlu0 %855
      %857 = vrot.lane.b32.xlu0 %v823, 96
      %v858 = vpop.permute.xlu0 %857
      %859 = vrot.lane.b32.xlu0 %v824, 96
      %v860 = vpop.permute.xlu0 %859
      %861 = vrot.lane.b32.xlu0 %v825, 96
      %v862 = vpop.permute.xlu0 %861
      %863 = vrot.lane.b32.xlu0 %v826, 96
      %v864 = vpop.permute.xlu0 %863
      %865 = vrot.lane.b32.xlu0 %v827, 96
      %v866 = vpop.permute.xlu0 %865
      %867 = vrot.lane.b32.xlu0 %v828, 96
      %v868 = vpop.permute.xlu0 %867
      %869 = vrot.lane.b32.xlu0 %v829, 96
      %v870 = vpop.permute.xlu0 %869
      %871 = vrot.lane.b32.xlu0 %v830, 96
      %v872 = vpop.permute.xlu0 %871
      %873 = vrot.lane.b32.xlu0 %v831, 96
      %v874 = vpop.permute.xlu0 %873
      %875 = vrot.lane.b32.xlu0 %v832, 96
      %v876 = vpop.permute.xlu0 %875
      %877 = vrot.lane.b32.xlu0 %v833, 96
      %v878 = vpop.permute.xlu0 %877
      %879 = vrot.lane.b32.xlu0 %v834, 96
      %v880 = vpop.permute.xlu0 %879
      %881 = vrot.lane.b32.xlu0 %v835, 96
      %v882 = vpop.permute.xlu0 %881
      %883 = vrot.lane.b32.xlu0 %v836, 96
      %v884 = vpop.permute.xlu0 %883
      %vm901 = vcmask 1048320
      %902 = vst.msk [vmem:[#allocation4] sm:$0xff] %vm901, %v854
      %903 = vst.msk [vmem:[#allocation4 + $0x18] sm:$0xff] %vm901, %v856
      %904 = vst.msk [vmem:[#allocation4 + $0x30] sm:$0xff] %vm901, %v858
      %905 = vst.msk [vmem:[#allocation4 + $0x48] sm:$0xff] %vm901, %v860
      %906 = vst.msk [vmem:[#allocation4 + $0x60] sm:$0xff] %vm901, %v862
      %907 = vst.msk [vmem:[#allocation4 + $0x78] sm:$0xff] %vm901, %v864
      %908 = vst.msk [vmem:[#allocation4 + $0x90] sm:$0xff] %vm901, %v866
      %909 = vst.msk [vmem:[#allocation4 + $0xa8] sm:$0xff] %vm901, %v868
      %910 = vst.msk [vmem:[#allocation4 + $0xc0] sm:$0xff] %vm901, %v870
      %911 = vst.msk [vmem:[#allocation4 + $0xd8] sm:$0xff] %vm901, %v872
      %912 = vst.msk [vmem:[#allocation4 + $0xf0] sm:$0xff] %vm901, %v874
      %913 = vst.msk [vmem:[#allocation4 + $0x108] sm:$0xff] %vm901, %v876
      %914 = vst.msk [vmem:[#allocation4 + $0x120] sm:$0xff] %vm901, %v878
      %915 = vst.msk [vmem:[#allocation4 + $0x138] sm:$0xff] %vm901, %v880
      %916 = vst.msk [vmem:[#allocation4 + $0x150] sm:$0xff] %vm901, %v882
      %917 = vst.msk [vmem:[#allocation4 + $0x168] sm:$0xff] %vm901, %v884
      %v918 = vld [vmem:[#allocation2 + $0x10] sm:$0xff]
      %v919 = vld [vmem:[#allocation2 + $0x18] sm:$0xff]
      %v920 = vld [vmem:[#allocation2 + $0x20] sm:$0xff]
      %v921 = vld [vmem:[#allocation2 + $0x28] sm:$0xff]
      %v922 = vld [vmem:[#allocation2 + $0x30] sm:$0xff]
      %v923 = vld [vmem:[#allocation2 + $0x38] sm:$0xff]
      %v924 = vld [vmem:[#allocation2 + $0x40] sm:$0xff]
      %v925 = vld [vmem:[#allocation2 + $0x48] sm:$0xff]
      %v926 = vld [vmem:[#allocation2 + $0x50] sm:$0xff]
      %v927 = vld [vmem:[#allocation2 + $0x58] sm:$0xff]
      %v928 = vld [vmem:[#allocation2 + $0x60] sm:$0xff]
      %v929 = vld [vmem:[#allocation2 + $0x68] sm:$0xff]
      %v930 = vld [vmem:[#allocation2 + $0x70] sm:$0xff]
      %v931 = vld [vmem:[#allocation2 + $0x78] sm:$0xff]
      %v932 = vld [vmem:[#allocation2 + $0x80] sm:$0xff]
      %v933 = vld [vmem:[#allocation2 + $0x88] sm:$0xff]
      %934 = vst.msk [vmem:[#allocation4 + $0x8] sm:$0xff] %vm304, %v918
      %935 = vst.msk [vmem:[#allocation4 + $0x20] sm:$0xff] %vm304, %v919
      %936 = vst.msk [vmem:[#allocation4 + $0x38] sm:$0xff] %vm304, %v920
      %937 = vst.msk [vmem:[#allocation4 + $0x50] sm:$0xff] %vm304, %v921
      %938 = vst.msk [vmem:[#allocation4 + $0x68] sm:$0xff] %vm304, %v922
      %939 = vst.msk [vmem:[#allocation4 + $0x80] sm:$0xff] %vm304, %v923
      %940 = vst.msk [vmem:[#allocation4 + $0x98] sm:$0xff] %vm304, %v924
      %941 = vst.msk [vmem:[#allocation4 + $0xb0] sm:$0xff] %vm304, %v925
      %942 = vst.msk [vmem:[#allocation4 + $0xc8] sm:$0xff] %vm304, %v926
      %943 = vst.msk [vmem:[#allocation4 + $0xe0] sm:$0xff] %vm304, %v927
      %944 = vst.msk [vmem:[#allocation4 + $0xf8] sm:$0xff] %vm304, %v928
      %945 = vst.msk [vmem:[#allocation4 + $0x110] sm:$0xff] %vm304, %v929
      %946 = vst.msk [vmem:[#allocation4 + $0x128] sm:$0xff] %vm304, %v930
      %947 = vst.msk [vmem:[#allocation4 + $0x140] sm:$0xff] %vm304, %v931
      %948 = vst.msk [vmem:[#allocation4 + $0x158] sm:$0xff] %vm304, %v932
      %949 = vst.msk [vmem:[#allocation4 + $0x170] sm:$0xff] %vm304, %v933
      %v950 = vld [vmem:[#allocation2 + $0x11] sm:$0xff]
      %v951 = vld [vmem:[#allocation2 + $0x19] sm:$0xff]
      %v952 = vld [vmem:[#allocation2 + $0x21] sm:$0xff]
      %v953 = vld [vmem:[#allocation2 + $0x29] sm:$0xff]
      %v954 = vld [vmem:[#allocation2 + $0x31] sm:$0xff]
      %v955 = vld [vmem:[#allocation2 + $0x39] sm:$0xff]
      %v956 = vld [vmem:[#allocation2 + $0x41] sm:$0xff]
      %v957 = vld [vmem:[#allocation2 + $0x49] sm:$0xff]
      %v958 = vld [vmem:[#allocation2 + $0x51] sm:$0xff]
      %v959 = vld [vmem:[#allocation2 + $0x59] sm:$0xff]
      %v960 = vld [vmem:[#allocation2 + $0x61] sm:$0xff]
      %v961 = vld [vmem:[#allocation2 + $0x69] sm:$0xff]
      %v962 = vld [vmem:[#allocation2 + $0x71] sm:$0xff]
      %v963 = vld [vmem:[#allocation2 + $0x79] sm:$0xff]
      %v964 = vld [vmem:[#allocation2 + $0x81] sm:$0xff]
      %v965 = vld [vmem:[#allocation2 + $0x89] sm:$0xff]
      %982 = vrot.lane.b32.xlu0 %v950, 32
      %v983 = vpop.permute.xlu0 %982
      %984 = vrot.lane.b32.xlu0 %v951, 32
      %v985 = vpop.permute.xlu0 %984
      %986 = vrot.lane.b32.xlu0 %v952, 32
      %v987 = vpop.permute.xlu0 %986
      %988 = vrot.lane.b32.xlu0 %v953, 32
      %v989 = vpop.permute.xlu0 %988
      %990 = vrot.lane.b32.xlu0 %v954, 32
      %v991 = vpop.permute.xlu0 %990
      %992 = vrot.lane.b32.xlu0 %v955, 32
      %v993 = vpop.permute.xlu0 %992
      %994 = vrot.lane.b32.xlu0 %v956, 32
      %v995 = vpop.permute.xlu0 %994
      %996 = vrot.lane.b32.xlu0 %v957, 32
      %v997 = vpop.permute.xlu0 %996
      %998 = vrot.lane.b32.xlu0 %v958, 32
      %v999 = vpop.permute.xlu0 %998
      %1000 = vrot.lane.b32.xlu0 %v959, 32
      %v1001 = vpop.permute.xlu0 %1000
      %1002 = vrot.lane.b32.xlu0 %v960, 32
      %v1003 = vpop.permute.xlu0 %1002
      %1004 = vrot.lane.b32.xlu0 %v961, 32
      %v1005 = vpop.permute.xlu0 %1004
      %1006 = vrot.lane.b32.xlu0 %v962, 32
      %v1007 = vpop.permute.xlu0 %1006
      %1008 = vrot.lane.b32.xlu0 %v963, 32
      %v1009 = vpop.permute.xlu0 %1008
      %1010 = vrot.lane.b32.xlu0 %v964, 32
      %v1011 = vpop.permute.xlu0 %1010
      %1012 = vrot.lane.b32.xlu0 %v965, 32
      %v1013 = vpop.permute.xlu0 %1012
      %1030 = vst.msk [vmem:[#allocation4 + $0x8] sm:$0xff] %vm707, %v983
      %1031 = vst.msk [vmem:[#allocation4 + $0x20] sm:$0xff] %vm707, %v985
      %1032 = vst.msk [vmem:[#allocation4 + $0x38] sm:$0xff] %vm707, %v987
      %1033 = vst.msk [vmem:[#allocation4 + $0x50] sm:$0xff] %vm707, %v989
      %1034 = vst.msk [vmem:[#allocation4 + $0x68] sm:$0xff] %vm707, %v991
      %1035 = vst.msk [vmem:[#allocation4 + $0x80] sm:$0xff] %vm707, %v993
      %1036 = vst.msk [vmem:[#allocation4 + $0x98] sm:$0xff] %vm707, %v995
      %1037 = vst.msk [vmem:[#allocation4 + $0xb0] sm:$0xff] %vm707, %v997
      %1038 = vst.msk [vmem:[#allocation4 + $0xc8] sm:$0xff] %vm707, %v999
      %1039 = vst.msk [vmem:[#allocation4 + $0xe0] sm:$0xff] %vm707, %v1001
      %1040 = vst.msk [vmem:[#allocation4 + $0xf8] sm:$0xff] %vm707, %v1003
      %1041 = vst.msk [vmem:[#allocation4 + $0x110] sm:$0xff] %vm707, %v1005
      %1042 = vst.msk [vmem:[#allocation4 + $0x128] sm:$0xff] %vm707, %v1007
      %1043 = vst.msk [vmem:[#allocation4 + $0x140] sm:$0xff] %vm707, %v1009
      %1044 = vst.msk [vmem:[#allocation4 + $0x158] sm:$0xff] %vm707, %v1011
      %1045 = vst.msk [vmem:[#allocation4 + $0x170] sm:$0xff] %vm707, %v1013
      %v1046 = vld [vmem:[#allocation2 + $0x19] sm:$0xff]
      %v1047 = vld [vmem:[#allocation2 + $0x21] sm:$0xff]
      %v1048 = vld [vmem:[#allocation2 + $0x29] sm:$0xff]
      %v1049 = vld [vmem:[#allocation2 + $0x31] sm:$0xff]
      %v1050 = vld [vmem:[#allocation2 + $0x39] sm:$0xff]
      %v1051 = vld [vmem:[#allocation2 + $0x41] sm:$0xff]
      %v1052 = vld [vmem:[#allocation2 + $0x49] sm:$0xff]
      %v1053 = vld [vmem:[#allocation2 + $0x51] sm:$0xff]
      %v1054 = vld [vmem:[#allocation2 + $0x59] sm:$0xff]
      %v1055 = vld [vmem:[#allocation2 + $0x61] sm:$0xff]
      %v1056 = vld [vmem:[#allocation2 + $0x69] sm:$0xff]
      %v1057 = vld [vmem:[#allocation2 + $0x71] sm:$0xff]
      %v1058 = vld [vmem:[#allocation2 + $0x79] sm:$0xff]
      %v1059 = vld [vmem:[#allocation2 + $0x81] sm:$0xff]
      %v1060 = vld [vmem:[#allocation2 + $0x89] sm:$0xff]
      %v1061 = vld [vmem:[#allocation2 + $0x91] sm:$0xff]
      %1078 = vrot.lane.b32.xlu0 %v1046, 64
      %v1079 = vpop.permute.xlu0 %1078
      %1080 = vrot.lane.b32.xlu0 %v1047, 64
      %v1081 = vpop.permute.xlu0 %1080
      %1082 = vrot.lane.b32.xlu0 %v1048, 64
      %v1083 = vpop.permute.xlu0 %1082
      %1084 = vrot.lane.b32.xlu0 %v1049, 64
      %v1085 = vpop.permute.xlu0 %1084
      %1086 = vrot.lane.b32.xlu0 %v1050, 64
      %v1087 = vpop.permute.xlu0 %1086
      %1088 = vrot.lane.b32.xlu0 %v1051, 64
      %v1089 = vpop.permute.xlu0 %1088
      %1090 = vrot.lane.b32.xlu0 %v1052, 64
      %v1091 = vpop.permute.xlu0 %1090
      %1092 = vrot.lane.b32.xlu0 %v1053, 64
      %v1093 = vpop.permute.xlu0 %1092
      %1094 = vrot.lane.b32.xlu0 %v1054, 64
      %v1095 = vpop.permute.xlu0 %1094
      %1096 = vrot.lane.b32.xlu0 %v1055, 64
      %v1097 = vpop.permute.xlu0 %1096
      %1098 = vrot.lane.b32.xlu0 %v1056, 64
      %v1099 = vpop.permute.xlu0 %1098
      %1100 = vrot.lane.b32.xlu0 %v1057, 64
      %v1101 = vpop.permute.xlu0 %1100
      %1102 = vrot.lane.b32.xlu0 %v1058, 64
      %v1103 = vpop.permute.xlu0 %1102
      %1104 = vrot.lane.b32.xlu0 %v1059, 64
      %v1105 = vpop.permute.xlu0 %1104
      %1106 = vrot.lane.b32.xlu0 %v1060, 64
      %v1107 = vpop.permute.xlu0 %1106
      %1108 = vrot.lane.b32.xlu0 %v1061, 64
      %v1109 = vpop.permute.xlu0 %1108
      %1126 = vst.msk [vmem:[#allocation4 + $0x8] sm:$0xff] %vm804, %v1079
      %1127 = vst.msk [vmem:[#allocation4 + $0x20] sm:$0xff] %vm804, %v1081
      %1128 = vst.msk [vmem:[#allocation4 + $0x38] sm:$0xff] %vm804, %v1083
      %1129 = vst.msk [vmem:[#allocation4 + $0x50] sm:$0xff] %vm804, %v1085
      %1130 = vst.msk [vmem:[#allocation4 + $0x68] sm:$0xff] %vm804, %v1087
      %1131 = vst.msk [vmem:[#allocation4 + $0x80] sm:$0xff] %vm804, %v1089
      %1132 = vst.msk [vmem:[#allocation4 + $0x98] sm:$0xff] %vm804, %v1091
      %1133 = vst.msk [vmem:[#allocation4 + $0xb0] sm:$0xff] %vm804, %v1093
      %1134 = vst.msk [vmem:[#allocation4 + $0xc8] sm:$0xff] %vm804, %v1095
      %1135 = vst.msk [vmem:[#allocation4 + $0xe0] sm:$0xff] %vm804, %v1097
      %1136 = vst.msk [vmem:[#allocation4 + $0xf8] sm:$0xff] %vm804, %v1099
      %1137 = vst.msk [vmem:[#allocation4 + $0x110] sm:$0xff] %vm804, %v1101
      %1138 = vst.msk [vmem:[#allocation4 + $0x128] sm:$0xff] %vm804, %v1103
      %1139 = vst.msk [vmem:[#allocation4 + $0x140] sm:$0xff] %vm804, %v1105
      %1140 = vst.msk [vmem:[#allocation4 + $0x158] sm:$0xff] %vm804, %v1107
      %1141 = vst.msk [vmem:[#allocation4 + $0x170] sm:$0xff] %vm804, %v1109
      %v1142 = vld [vmem:[#allocation2 + $0x1a] sm:$0xff]
      %v1143 = vld [vmem:[#allocation2 + $0x22] sm:$0xff]
      %v1144 = vld [vmem:[#allocation2 + $0x2a] sm:$0xff]
      %v1145 = vld [vmem:[#allocation2 + $0x32] sm:$0xff]
      %v1146 = vld [vmem:[#allocation2 + $0x3a] sm:$0xff]
      %v1147 = vld [vmem:[#allocation2 + $0x42] sm:$0xff]
      %v1148 = vld [vmem:[#allocation2 + $0x4a] sm:$0xff]
      %v1149 = vld [vmem:[#allocation2 + $0x52] sm:$0xff]
      %v1150 = vld [vmem:[#allocation2 + $0x5a] sm:$0xff]
      %v1151 = vld [vmem:[#allocation2 + $0x62] sm:$0xff]
      %v1152 = vld [vmem:[#allocation2 + $0x6a] sm:$0xff]
      %v1153 = vld [vmem:[#allocation2 + $0x72] sm:$0xff]
      %v1154 = vld [vmem:[#allocation2 + $0x7a] sm:$0xff]
      %v1155 = vld [vmem:[#allocation2 + $0x82] sm:$0xff]
      %v1156 = vld [vmem:[#allocation2 + $0x8a] sm:$0xff]
      %v1157 = vld [vmem:[#allocation2 + $0x92] sm:$0xff]
      %1174 = vrot.lane.b32.xlu0 %v1142, 96
      %v1175 = vpop.permute.xlu0 %1174
      %1176 = vrot.lane.b32.xlu0 %v1143, 96
      %v1177 = vpop.permute.xlu0 %1176
      %1178 = vrot.lane.b32.xlu0 %v1144, 96
      %v1179 = vpop.permute.xlu0 %1178
      %1180 = vrot.lane.b32.xlu0 %v1145, 96
      %v1181 = vpop.permute.xlu0 %1180
      %1182 = vrot.lane.b32.xlu0 %v1146, 96
      %v1183 = vpop.permute.xlu0 %1182
      %1184 = vrot.lane.b32.xlu0 %v1147, 96
      %v1185 = vpop.permute.xlu0 %1184
      %1186 = vrot.lane.b32.xlu0 %v1148, 96
      %v1187 = vpop.permute.xlu0 %1186
      %1188 = vrot.lane.b32.xlu0 %v1149, 96
      %v1189 = vpop.permute.xlu0 %1188
      %1190 = vrot.lane.b32.xlu0 %v1150, 96
      %v1191 = vpop.permute.xlu0 %1190
      %1192 = vrot.lane.b32.xlu0 %v1151, 96
      %v1193 = vpop.permute.xlu0 %1192
      %1194 = vrot.lane.b32.xlu0 %v1152, 96
      %v1195 = vpop.permute.xlu0 %1194
      %1196 = vrot.lane.b32.xlu0 %v1153, 96
      %v1197 = vpop.permute.xlu0 %1196
      %1198 = vrot.lane.b32.xlu0 %v1154, 96
      %v1199 = vpop.permute.xlu0 %1198
      %1200 = vrot.lane.b32.xlu0 %v1155, 96
      %v1201 = vpop.permute.xlu0 %1200
      %1202 = vrot.lane.b32.xlu0 %v1156, 96
      %v1203 = vpop.permute.xlu0 %1202
      %1204 = vrot.lane.b32.xlu0 %v1157, 96
      %v1205 = vpop.permute.xlu0 %1204
      %1222 = vst.msk [vmem:[#allocation4 + $0x8] sm:$0xff] %vm901, %v1175
      %1223 = vst.msk [vmem:[#allocation4 + $0x20] sm:$0xff] %vm901, %v1177
      %1224 = vst.msk [vmem:[#allocation4 + $0x38] sm:$0xff] %vm901, %v1179
      %1225 = vst.msk [vmem:[#allocation4 + $0x50] sm:$0xff] %vm901, %v1181
      %1226 = vst.msk [vmem:[#allocation4 + $0x68] sm:$0xff] %vm901, %v1183
      %1227 = vst.msk [vmem:[#allocation4 + $0x80] sm:$0xff] %vm901, %v1185
      %1228 = vst.msk [vmem:[#allocation4 + $0x98] sm:$0xff] %vm901, %v1187
      %1229 = vst.msk [vmem:[#allocation4 + $0xb0] sm:$0xff] %vm901, %v1189
      %1230 = vst.msk [vmem:[#allocation4 + $0xc8] sm:$0xff] %vm901, %v1191
      %1231 = vst.msk [vmem:[#allocation4 + $0xe0] sm:$0xff] %vm901, %v1193
      %1232 = vst.msk [vmem:[#allocation4 + $0xf8] sm:$0xff] %vm901, %v1195
      %1233 = vst.msk [vmem:[#allocation4 + $0x110] sm:$0xff] %vm901, %v1197
      %1234 = vst.msk [vmem:[#allocation4 + $0x128] sm:$0xff] %vm901, %v1199
      %1235 = vst.msk [vmem:[#allocation4 + $0x140] sm:$0xff] %vm901, %v1201
      %1236 = vst.msk [vmem:[#allocation4 + $0x158] sm:$0xff] %vm901, %v1203
      %1237 = vst.msk [vmem:[#allocation4 + $0x170] sm:$0xff] %vm901, %v1205
      %v1238 = vld [vmem:[#allocation2 + $0x1b] sm:$0xff]
      %v1239 = vld [vmem:[#allocation2 + $0x23] sm:$0xff]
      %v1240 = vld [vmem:[#allocation2 + $0x2b] sm:$0xff]
      %v1241 = vld [vmem:[#allocation2 + $0x33] sm:$0xff]
      %v1242 = vld [vmem:[#allocation2 + $0x3b] sm:$0xff]
      %v1243 = vld [vmem:[#allocation2 + $0x43] sm:$0xff]
      %v1244 = vld [vmem:[#allocation2 + $0x4b] sm:$0xff]
      %v1245 = vld [vmem:[#allocation2 + $0x53] sm:$0xff]
      %v1246 = vld [vmem:[#allocation2 + $0x5b] sm:$0xff]
      %v1247 = vld [vmem:[#allocation2 + $0x63] sm:$0xff]
      %v1248 = vld [vmem:[#allocation2 + $0x6b] sm:$0xff]
      %v1249 = vld [vmem:[#allocation2 + $0x73] sm:$0xff]
      %v1250 = vld [vmem:[#allocation2 + $0x7b] sm:$0xff]
      %v1251 = vld [vmem:[#allocation2 + $0x83] sm:$0xff]
      %v1252 = vld [vmem:[#allocation2 + $0x8b] sm:$0xff]
      %v1253 = vld [vmem:[#allocation2 + $0x93] sm:$0xff]
      %1254 = vst.msk [vmem:[#allocation4 + $0x10] sm:$0xff] %vm304, %v1238
      %1255 = vst.msk [vmem:[#allocation4 + $0x28] sm:$0xff] %vm304, %v1239
      %1256 = vst.msk [vmem:[#allocation4 + $0x40] sm:$0xff] %vm304, %v1240
      %1257 = vst.msk [vmem:[#allocation4 + $0x58] sm:$0xff] %vm304, %v1241
      %1258 = vst.msk [vmem:[#allocation4 + $0x70] sm:$0xff] %vm304, %v1242
      %1259 = vst.msk [vmem:[#allocation4 + $0x88] sm:$0xff] %vm304, %v1243
      %1260 = vst.msk [vmem:[#allocation4 + $0xa0] sm:$0xff] %vm304, %v1244
      %1261 = vst.msk [vmem:[#allocation4 + $0xb8] sm:$0xff] %vm304, %v1245
      %1262 = vst.msk [vmem:[#allocation4 + $0xd0] sm:$0xff] %vm304, %v1246
      %1263 = vst.msk [vmem:[#allocation4 + $0xe8] sm:$0xff] %vm304, %v1247
      %1264 = vst.msk [vmem:[#allocation4 + $0x100] sm:$0xff] %vm304, %v1248
      %1265 = vst.msk [vmem:[#allocation4 + $0x118] sm:$0xff] %vm304, %v1249
      %1266 = vst.msk [vmem:[#allocation4 + $0x130] sm:$0xff] %vm304, %v1250
      %1267 = vst.msk [vmem:[#allocation4 + $0x148] sm:$0xff] %vm304, %v1251
      %1268 = vst.msk [vmem:[#allocation4 + $0x160] sm:$0xff] %vm304, %v1252
      %1269 = vst.msk [vmem:[#allocation4 + $0x178] sm:$0xff] %vm304, %v1253
      %v1270 = vld [vmem:[#allocation4] sm:$0xff]
      %v1271 = vld [vmem:[#allocation4 + $0x8] sm:$0xff]
      %v1272 = vld [vmem:[#allocation4 + $0x10] sm:$0xff]
      %v1273 = vld [vmem:[#allocation4 + $0x18] sm:$0xff]
      %v1274 = vld [vmem:[#allocation4 + $0x20] sm:$0xff]
      %v1275 = vld [vmem:[#allocation4 + $0x28] sm:$0xff]
      %v1276 = vld [vmem:[#allocation4 + $0x30] sm:$0xff]
      %v1277 = vld [vmem:[#allocation4 + $0x38] sm:$0xff]
      %v1278 = vld [vmem:[#allocation4 + $0x40] sm:$0xff]
      %v1279 = vld [vmem:[#allocation4 + $0x48] sm:$0xff]
      %v1280 = vld [vmem:[#allocation4 + $0x50] sm:$0xff]
      %v1281 = vld [vmem:[#allocation4 + $0x58] sm:$0xff]
      %v1282 = vld [vmem:[#allocation4 + $0x60] sm:$0xff]
      %v1283 = vld [vmem:[#allocation4 + $0x68] sm:$0xff]
      %v1284 = vld [vmem:[#allocation4 + $0x70] sm:$0xff]
      %v1285 = vld [vmem:[#allocation4 + $0x78] sm:$0xff]
      %v1286 = vld [vmem:[#allocation4 + $0x80] sm:$0xff]
      %v1287 = vld [vmem:[#allocation4 + $0x88] sm:$0xff]
      %v1288 = vld [vmem:[#allocation4 + $0x90] sm:$0xff]
      %v1289 = vld [vmem:[#allocation4 + $0x98] sm:$0xff]
      %v1290 = vld [vmem:[#allocation4 + $0xa0] sm:$0xff]
      %v1291 = vld [vmem:[#allocation4 + $0xa8] sm:$0xff]
      %v1292 = vld [vmem:[#allocation4 + $0xb0] sm:$0xff]
      %v1293 = vld [vmem:[#allocation4 + $0xb8] sm:$0xff]
      %v1294 = vld [vmem:[#allocation4 + $0xc0] sm:$0xff]
      %v1295 = vld [vmem:[#allocation4 + $0xc8] sm:$0xff]
      %v1296 = vld [vmem:[#allocation4 + $0xd0] sm:$0xff]
      %v1297 = vld [vmem:[#allocation4 + $0xd8] sm:$0xff]
      %v1298 = vld [vmem:[#allocation4 + $0xe0] sm:$0xff]
      %v1299 = vld [vmem:[#allocation4 + $0xe8] sm:$0xff]
      %v1300 = vld [vmem:[#allocation4 + $0xf0] sm:$0xff]
      %v1301 = vld [vmem:[#allocation4 + $0xf8] sm:$0xff]
      %v1302 = vld [vmem:[#allocation4 + $0x100] sm:$0xff]
      %v1303 = vld [vmem:[#allocation4 + $0x108] sm:$0xff]
      %v1304 = vld [vmem:[#allocation4 + $0x110] sm:$0xff]
      %v1305 = vld [vmem:[#allocation4 + $0x118] sm:$0xff]
      %v1306 = vld [vmem:[#allocation4 + $0x120] sm:$0xff]
      %v1307 = vld [vmem:[#allocation4 + $0x128] sm:$0xff]
      %v1308 = vld [vmem:[#allocation4 + $0x130] sm:$0xff]
      %v1309 = vld [vmem:[#allocation4 + $0x138] sm:$0xff]
      %v1310 = vld [vmem:[#allocation4 + $0x140] sm:$0xff]
      %v1311 = vld [vmem:[#allocation4 + $0x148] sm:$0xff]
      %v1312 = vld [vmem:[#allocation4 + $0x150] sm:$0xff]
      %v1313 = vld [vmem:[#allocation4 + $0x158] sm:$0xff]
      %v1314 = vld [vmem:[#allocation4 + $0x160] sm:$0xff]
      %v1315 = vld [vmem:[#allocation4 + $0x168] sm:$0xff]
      %v1316 = vld [vmem:[#allocation4 + $0x170] sm:$0xff]
      %v1317 = vld [vmem:[#allocation4 + $0x178] sm:$0xff]
      %v1318 = vld [vmem:[%s4] sm:$0xff]
      %v1319 = vld [vmem:[%s4 + $0x8] sm:$0xff]
      %v1320 = vld [vmem:[%s4 + $0x10] sm:$0xff]
      %v1321 = vld [vmem:[%s4 + $0x18] sm:$0xff]
      %v1322 = vld [vmem:[%s4 + $0x20] sm:$0xff]
      %v1323 = vld [vmem:[%s4 + $0x28] sm:$0xff]
      %v1324 = vld [vmem:[%s4 + $0x30] sm:$0xff]
      %v1325 = vld [vmem:[%s4 + $0x38] sm:$0xff]
      %v1326 = vld [vmem:[%s4 + $0x40] sm:$0xff]
      %v1327 = vld [vmem:[%s4 + $0x48] sm:$0xff]
      %v1328 = vld [vmem:[%s4 + $0x50] sm:$0xff]
      %v1329 = vld [vmem:[%s4 + $0x58] sm:$0xff]
      %v1330 = vld [vmem:[%s4 + $0x60] sm:$0xff]
      %v1331 = vld [vmem:[%s4 + $0x68] sm:$0xff]
      %v1332 = vld [vmem:[%s4 + $0x70] sm:$0xff]
      %v1333 = vld [vmem:[%s4 + $0x78] sm:$0xff]
      %v1334 = vld [vmem:[%s4 + $0x80] sm:$0xff]
      %v1335 = vld [vmem:[%s4 + $0x88] sm:$0xff]
      %v1336 = vld [vmem:[%s4 + $0x90] sm:$0xff]
      %v1337 = vld [vmem:[%s4 + $0x98] sm:$0xff]
      %v1338 = vld [vmem:[%s4 + $0xa0] sm:$0xff]
      %v1339 = vld [vmem:[%s4 + $0xa8] sm:$0xff]
      %v1340 = vld [vmem:[%s4 + $0xb0] sm:$0xff]
      %v1341 = vld [vmem:[%s4 + $0xb8] sm:$0xff]
      %v1342 = vld [vmem:[%s4 + $0xc0] sm:$0xff]
      %v1343 = vld [vmem:[%s4 + $0xc8] sm:$0xff]
      %v1344 = vld [vmem:[%s4 + $0xd0] sm:$0xff]
      %v1345 = vld [vmem:[%s4 + $0xd8] sm:$0xff]
      %v1346 = vld [vmem:[%s4 + $0xe0] sm:$0xff]
      %v1347 = vld [vmem:[%s4 + $0xe8] sm:$0xff]
      %v1348 = vld [vmem:[%s4 + $0xf0] sm:$0xff]
      %v1349 = vld [vmem:[%s4 + $0xf8] sm:$0xff]
      %v1350 = vld [vmem:[%s4 + $0x100] sm:$0xff]
      %v1351 = vld [vmem:[%s4 + $0x108] sm:$0xff]
      %v1352 = vld [vmem:[%s4 + $0x110] sm:$0xff]
      %v1353 = vld [vmem:[%s4 + $0x118] sm:$0xff]
      %v1354 = vld [vmem:[%s5] sm:$0x1]
      %v1355 = vperm.slane %v1354, 0
      %v1357 = vsel %vm304, %v1272, 0
      %v1360 = vsel %vm304, %v1275, 0
      %v1363 = vsel %vm304, %v1278, 0
      %v1366 = vsel %vm304, %v1281, 0
      %v1369 = vsel %vm304, %v1284, 0
      %v1372 = vsel %vm304, %v1287, 0
      %v1375 = vsel %vm304, %v1290, 0
      %v1378 = vsel %vm304, %v1293, 0
      %v1381 = vsel %vm304, %v1296, 0
      %v1384 = vsel %vm304, %v1299, 0
      %v1387 = vsel %vm304, %v1302, 0
      %v1390 = vsel %vm304, %v1305, 0
      %v1393 = vsel %vm304, %v1308, 0
      %v1396 = vsel %vm304, %v1311, 0
      %v1399 = vsel %vm304, %v1314, 0
      %v1402 = vsel %vm304, %v1317, 0
      %1404 = vmatpush.msra.mxu0 %v1333
      %1405 = vmatpush.msra.mxu0 %v1332
      %1406 = vmatpush.msra.mxu0 %v1331
      %1407 = vmatpush.msra.mxu0 %v1330
      %1408 = vmatpush.msra.mxu0 %v1329
      %1409 = vmatpush.msra.mxu0 %v1328
      %1410 = vmatpush.msra.mxu0 %v1327
      %1411 = vmatpush.msra.mxu0 %v1326
      %1412 = vmatpush.msra.mxu0 %v1325
      %1413 = vmatpush.msra.mxu0 %v1324
      %1414 = vmatpush.msra.mxu0 %v1323
      %1415 = vmatpush.msra.mxu0 %v1322
      %1416 = vmatpush.msra.mxu0 %v1321
      %1417 = vmatpush.msra.mxu0 %v1320
      %1418 = vmatpush.msra.mxu0 %v1319
      %1419 = vmatpush.msra.mxu0 %v1318
      %1420 = vmatmul.f32.gmra.mxu0 %v1270
      %v1421 = vpop.f32.mrf.mxu0
      %v1422 = vadd.f32 %v1355, %v1421
      %1423 = vmatmul.f32.gmra.mxu0 %v1273
      %v1424 = vpop.f32.mrf.mxu0
      %v1425 = vadd.f32 %v1355, %v1424
      %1426 = vmatmul.f32.gmra.mxu0 %v1276
      %v1427 = vpop.f32.mrf.mxu0
      %v1428 = vadd.f32 %v1355, %v1427
      %1429 = vmatmul.f32.gmra.mxu0 %v1279
      %v1430 = vpop.f32.mrf.mxu0
      %v1431 = vadd.f32 %v1355, %v1430
      %1432 = vmatmul.f32.gmra.mxu0 %v1282
      %v1433 = vpop.f32.mrf.mxu0
      %v1434 = vadd.f32 %v1355, %v1433
      %1435 = vmatmul.f32.gmra.mxu0 %v1285
      %v1436 = vpop.f32.mrf.mxu0
      %v1437 = vadd.f32 %v1355, %v1436
      %1438 = vmatmul.f32.gmra.mxu0 %v1288
      %v1439 = vpop.f32.mrf.mxu0
      %v1440 = vadd.f32 %v1355, %v1439
      %1441 = vmatmul.f32.gmra.mxu0 %v1291
      %v1442 = vpop.f32.mrf.mxu0
      %v1443 = vadd.f32 %v1355, %v1442
      %1444 = vmatmul.f32.gmra.mxu0 %v1294
      %v1445 = vpop.f32.mrf.mxu0
      %v1446 = vadd.f32 %v1355, %v1445
      %1447 = vmatmul.f32.gmra.mxu0 %v1297
      %v1448 = vpop.f32.mrf.mxu0
      %v1449 = vadd.f32 %v1355, %v1448
      %1450 = vmatmul.f32.gmra.mxu0 %v1300
      %v1451 = vpop.f32.mrf.mxu0
      %v1452 = vadd.f32 %v1355, %v1451
      %1453 = vmatmul.f32.gmra.mxu0 %v1303
      %v1454 = vpop.f32.mrf.mxu0
      %v1455 = vadd.f32 %v1355, %v1454
      %1456 = vmatmul.f32.gmra.mxu0 %v1306
      %v1457 = vpop.f32.mrf.mxu0
      %v1458 = vadd.f32 %v1355, %v1457
      %1459 = vmatmul.f32.gmra.mxu0 %v1309
      %v1460 = vpop.f32.mrf.mxu0
      %v1461 = vadd.f32 %v1355, %v1460
      %1462 = vmatmul.f32.gmra.mxu0 %v1312
      %v1463 = vpop.f32.mrf.mxu0
      %v1464 = vadd.f32 %v1355, %v1463
      %1465 = vmatmul.f32.gmra.mxu0 %v1315
      %v1466 = vpop.f32.mrf.mxu0
      %v1467 = vadd.f32 %v1355, %v1466
      %1468 = vdwg.mxu0
      %1469 = vmatpush.msra.mxu0 %v1349
      %1470 = vmatpush.msra.mxu0 %v1348
      %1471 = vmatpush.msra.mxu0 %v1347
      %1472 = vmatpush.msra.mxu0 %v1346
      %1473 = vmatpush.msra.mxu0 %v1345
      %1474 = vmatpush.msra.mxu0 %v1344
      %1475 = vmatpush.msra.mxu0 %v1343
      %1476 = vmatpush.msra.mxu0 %v1342
      %1477 = vmatpush.msra.mxu0 %v1341
      %1478 = vmatpush.msra.mxu0 %v1340
      %1479 = vmatpush.msra.mxu0 %v1339
      %1480 = vmatpush.msra.mxu0 %v1338
      %1481 = vmatpush.msra.mxu0 %v1337
      %1482 = vmatpush.msra.mxu0 %v1336
      %1483 = vmatpush.msra.mxu0 %v1335
      %1484 = vmatpush.msra.mxu0 %v1334
      %1485 = vmatmul.f32.gmra.mxu0 %v1271
      %v1486 = vpop.f32.mrf.mxu0
      %v1487 = vadd.f32 %v1422, %v1486
      %1488 = vmatmul.f32.gmra.mxu0 %v1274
      %v1489 = vpop.f32.mrf.mxu0
      %v1490 = vadd.f32 %v1425, %v1489
      %1491 = vmatmul.f32.gmra.mxu0 %v1277
      %v1492 = vpop.f32.mrf.mxu0
      %v1493 = vadd.f32 %v1428, %v1492
      %1494 = vmatmul.f32.gmra.mxu0 %v1280
      %v1495 = vpop.f32.mrf.mxu0
      %v1496 = vadd.f32 %v1431, %v1495
      %1497 = vmatmul.f32.gmra.mxu0 %v1283
      %v1498 = vpop.f32.mrf.mxu0
      %v1499 = vadd.f32 %v1434, %v1498
      %1500 = vmatmul.f32.gmra.mxu0 %v1286
      %v1501 = vpop.f32.mrf.mxu0
      %v1502 = vadd.f32 %v1437, %v1501
      %1503 = vmatmul.f32.gmra.mxu0 %v1289
      %v1504 = vpop.f32.mrf.mxu0
      %v1505 = vadd.f32 %v1440, %v1504
      %1506 = vmatmul.f32.gmra.mxu0 %v1292
      %v1507 = vpop.f32.mrf.mxu0
      %v1508 = vadd.f32 %v1443, %v1507
      %1509 = vmatmul.f32.gmra.mxu0 %v1295
      %v1510 = vpop.f32.mrf.mxu0
      %v1511 = vadd.f32 %v1446, %v1510
      %1512 = vmatmul.f32.gmra.mxu0 %v1298
      %v1513 = vpop.f32.mrf.mxu0
      %v1514 = vadd.f32 %v1449, %v1513
      %1515 = vmatmul.f32.gmra.mxu0 %v1301
      %v1516 = vpop.f32.mrf.mxu0
      %v1517 = vadd.f32 %v1452, %v1516
      %1518 = vmatmul.f32.gmra.mxu0 %v1304
      %v1519 = vpop.f32.mrf.mxu0
      %v1520 = vadd.f32 %v1455, %v1519
      %1521 = vmatmul.f32.gmra.mxu0 %v1307
      %v1522 = vpop.f32.mrf.mxu0
      %v1523 = vadd.f32 %v1458, %v1522
      %1524 = vmatmul.f32.gmra.mxu0 %v1310
      %v1525 = vpop.f32.mrf.mxu0
      %v1526 = vadd.f32 %v1461, %v1525
      %1527 = vmatmul.f32.gmra.mxu0 %v1313
      %v1528 = vpop.f32.mrf.mxu0
      %v1529 = vadd.f32 %v1464, %v1528
      %1530 = vmatmul.f32.gmra.mxu0 %v1316
      %v1531 = vpop.f32.mrf.mxu0
      %v1532 = vadd.f32 %v1467, %v1531
      %1533 = vdwg.mxu0
      %1534 = vmatpush.msra.mxu0 0.0
      %1535 = vmatpush.msra.mxu0 0.0
      %1536 = vmatpush.msra.mxu0 0.0
      %1537 = vmatpush.msra.mxu0 0.0
      %1538 = vmatpush.msra.mxu0 0.0
      %1539 = vmatpush.msra.mxu0 0.0
      %1540 = vmatpush.msra.mxu0 0.0
      %1541 = vmatpush.msra.mxu0 0.0
      %1542 = vmatpush.msra.mxu0 0.0
      %1543 = vmatpush.msra.mxu0 0.0
      %1544 = vmatpush.msra.mxu0 0.0
      %1545 = vmatpush.msra.mxu0 0.0
      %1546 = vmatpush.msra.mxu0 %v1353
      %1547 = vmatpush.msra.mxu0 %v1352
      %1548 = vmatpush.msra.mxu0 %v1351
      %1549 = vmatpush.msra.mxu0 %v1350
      %1550 = vmatmul.f32.gmra.mxu0 %v1357
      %v1551 = vpop.f32.mrf.mxu0
      %v1552 = vadd.f32 %v1487, %v1551
      %1553 = vmatmul.f32.gmra.mxu0 %v1360
      %v1554 = vpop.f32.mrf.mxu0
      %v1555 = vadd.f32 %v1490, %v1554
      %1556 = vmatmul.f32.gmra.mxu0 %v1363
      %v1557 = vpop.f32.mrf.mxu0
      %v1558 = vadd.f32 %v1493, %v1557
      %1559 = vmatmul.f32.gmra.mxu0 %v1366
      %v1560 = vpop.f32.mrf.mxu0
      %v1561 = vadd.f32 %v1496, %v1560
      %1562 = vmatmul.f32.gmra.mxu0 %v1369
      %v1563 = vpop.f32.mrf.mxu0
      %v1564 = vadd.f32 %v1499, %v1563
      %1565 = vmatmul.f32.gmra.mxu0 %v1372
      %v1566 = vpop.f32.mrf.mxu0
      %v1567 = vadd.f32 %v1502, %v1566
      %1568 = vmatmul.f32.gmra.mxu0 %v1375
      %v1569 = vpop.f32.mrf.mxu0
      %v1570 = vadd.f32 %v1505, %v1569
      %1571 = vmatmul.f32.gmra.mxu0 %v1378
      %v1572 = vpop.f32.mrf.mxu0
      %v1573 = vadd.f32 %v1508, %v1572
      %1574 = vmatmul.f32.gmra.mxu0 %v1381
      %v1575 = vpop.f32.mrf.mxu0
      %v1576 = vadd.f32 %v1511, %v1575
      %1577 = vmatmul.f32.gmra.mxu0 %v1384
      %v1578 = vpop.f32.mrf.mxu0
      %v1579 = vadd.f32 %v1514, %v1578
      %1580 = vmatmul.f32.gmra.mxu0 %v1387
      %v1581 = vpop.f32.mrf.mxu0
      %v1582 = vadd.f32 %v1517, %v1581
      %1583 = vmatmul.f32.gmra.mxu0 %v1390
      %v1584 = vpop.f32.mrf.mxu0
      %v1585 = vadd.f32 %v1520, %v1584
      %1586 = vmatmul.f32.gmra.mxu0 %v1393
      %v1587 = vpop.f32.mrf.mxu0
      %v1588 = vadd.f32 %v1523, %v1587
      %1589 = vmatmul.f32.gmra.mxu0 %v1396
      %v1590 = vpop.f32.mrf.mxu0
      %v1591 = vadd.f32 %v1526, %v1590
      %1592 = vmatmul.f32.gmra.mxu0 %v1399
      %v1593 = vpop.f32.mrf.mxu0
      %v1594 = vadd.f32 %v1529, %v1593
      %1595 = vmatmul.f32.gmra.mxu0 %v1402
      %v1596 = vpop.f32.mrf.mxu0
      %v1597 = vadd.f32 %v1532, %v1596
      %1598 = vdwg.mxu0
      %v1599 = vmax.f32 %v1552, 0.0
      %v1600 = vmax.f32 %v1555, 0.0
      %v1601 = vmax.f32 %v1558, 0.0
      %v1602 = vmax.f32 %v1561, 0.0
      %v1603 = vmax.f32 %v1564, 0.0
      %v1604 = vmax.f32 %v1567, 0.0
      %v1605 = vmax.f32 %v1570, 0.0
      %v1606 = vmax.f32 %v1573, 0.0
      %v1607 = vmax.f32 %v1576, 0.0
      %v1608 = vmax.f32 %v1579, 0.0
      %v1609 = vmax.f32 %v1582, 0.0
      %v1610 = vmax.f32 %v1585, 0.0
      %v1611 = vmax.f32 %v1588, 0.0
      %v1612 = vmax.f32 %v1591, 0.0
      %v1613 = vmax.f32 %v1594, 0.0
      %v1614 = vmax.f32 %v1597, 0.0
      %v1615 = vmul.f32 %v1599, %v486
      %v1616 = vmul.f32 %v1600, %v491
      %v1617 = vmul.f32 %v1601, %v496
      %v1618 = vmul.f32 %v1602, %v501
      %v1619 = vmul.f32 %v1603, %v506
      %v1620 = vmul.f32 %v1604, %v511
      %v1621 = vmul.f32 %v1605, %v516
      %v1622 = vmul.f32 %v1606, %v521
      %v1623 = vmul.f32 %v1607, %v526
      %v1624 = vmul.f32 %v1608, %v531
      %v1625 = vmul.f32 %v1609, %v536
      %v1626 = vmul.f32 %v1610, %v541
      %v1627 = vmul.f32 %v1611, %v546
      %v1628 = vmul.f32 %v1612, %v551
      %v1629 = vmul.f32 %v1613, %v556
      %v1630 = vmul.f32 %v1614, %v561
      %1631 = vst.msk [vmem:[#allocation3 + $0x10] sm:$0xff] %vm304, %v1615
      %1632 = vst.msk [vmem:[#allocation3 + $0x18] sm:$0xff] %vm304, %v1616
      %1633 = vst.msk [vmem:[#allocation3 + $0x20] sm:$0xff] %vm304, %v1617
      %1634 = vst.msk [vmem:[#allocation3 + $0x28] sm:$0xff] %vm304, %v1618
      %1635 = vst.msk [vmem:[#allocation3 + $0x30] sm:$0xff] %vm304, %v1619
      %1636 = vst.msk [vmem:[#allocation3 + $0x38] sm:$0xff] %vm304, %v1620
      %1637 = vst.msk [vmem:[#allocation3 + $0x40] sm:$0xff] %vm304, %v1621
      %1638 = vst.msk [vmem:[#allocation3 + $0x48] sm:$0xff] %vm304, %v1622
      %1639 = vst.msk [vmem:[#allocation3 + $0x50] sm:$0xff] %vm304, %v1623
      %1640 = vst.msk [vmem:[#allocation3 + $0x58] sm:$0xff] %vm304, %v1624
      %1641 = vst.msk [vmem:[#allocation3 + $0x60] sm:$0xff] %vm304, %v1625
      %1642 = vst.msk [vmem:[#allocation3 + $0x68] sm:$0xff] %vm304, %v1626
      %1643 = vst.msk [vmem:[#allocation3 + $0x70] sm:$0xff] %vm304, %v1627
      %1644 = vst.msk [vmem:[#allocation3 + $0x78] sm:$0xff] %vm304, %v1628
      %1645 = vst.msk [vmem:[#allocation3 + $0x80] sm:$0xff] %vm304, %v1629
      %1646 = vst.msk [vmem:[#allocation3 + $0x88] sm:$0xff] %vm304, %v1630
      %v1647 = vld [vmem:[#allocation3 + $0x5] sm:$0xff]
      %v1648 = vld [vmem:[#allocation3 + $0xd] sm:$0xff]
      %v1649 = vld [vmem:[#allocation3 + $0x15] sm:$0xff]
      %v1650 = vld [vmem:[#allocation3 + $0x1d] sm:$0xff]
      %v1651 = vld [vmem:[#allocation3 + $0x25] sm:$0xff]
      %v1652 = vld [vmem:[#allocation3 + $0x2d] sm:$0xff]
      %v1653 = vld [vmem:[#allocation3 + $0x35] sm:$0xff]
      %v1654 = vld [vmem:[#allocation3 + $0x3d] sm:$0xff]
      %v1655 = vld [vmem:[#allocation3 + $0x45] sm:$0xff]
      %v1656 = vld [vmem:[#allocation3 + $0x4d] sm:$0xff]
      %v1657 = vld [vmem:[#allocation3 + $0x55] sm:$0xff]
      %v1658 = vld [vmem:[#allocation3 + $0x5d] sm:$0xff]
      %v1659 = vld [vmem:[#allocation3 + $0x65] sm:$0xff]
      %v1660 = vld [vmem:[#allocation3 + $0x6d] sm:$0xff]
      %v1661 = vld [vmem:[#allocation3 + $0x75] sm:$0xff]
      %v1662 = vld [vmem:[#allocation3 + $0x7d] sm:$0xff]
      %1663 = vst.msk [vmem:[#allocation4] sm:$0xff] %vm304, %v1647
      %1664 = vst.msk [vmem:[#allocation4 + $0x18] sm:$0xff] %vm304, %v1648
      %1665 = vst.msk [vmem:[#allocation4 + $0x30] sm:$0xff] %vm304, %v1649
      %1666 = vst.msk [vmem:[#allocation4 + $0x48] sm:$0xff] %vm304, %v1650
      %1667 = vst.msk [vmem:[#allocation4 + $0x60] sm:$0xff] %vm304, %v1651
      %1668 = vst.msk [vmem:[#allocation4 + $0x78] sm:$0xff] %vm304, %v1652
      %1669 = vst.msk [vmem:[#allocation4 + $0x90] sm:$0xff] %vm304, %v1653
      %1670 = vst.msk [vmem:[#allocation4 + $0xa8] sm:$0xff] %vm304, %v1654
      %1671 = vst.msk [vmem:[#allocation4 + $0xc0] sm:$0xff] %vm304, %v1655
      %1672 = vst.msk [vmem:[#allocation4 + $0xd8] sm:$0xff] %vm304, %v1656
      %1673 = vst.msk [vmem:[#allocation4 + $0xf0] sm:$0xff] %vm304, %v1657
      %1674 = vst.msk [vmem:[#allocation4 + $0x108] sm:$0xff] %vm304, %v1658
      %1675 = vst.msk [vmem:[#allocation4 + $0x120] sm:$0xff] %vm304, %v1659
      %1676 = vst.msk [vmem:[#allocation4 + $0x138] sm:$0xff] %vm304, %v1660
      %1677 = vst.msk [vmem:[#allocation4 + $0x150] sm:$0xff] %vm304, %v1661
      %1678 = vst.msk [vmem:[#allocation4 + $0x168] sm:$0xff] %vm304, %v1662
      %v1679 = vld [vmem:[#allocation3 + $0x6] sm:$0xff]
      %v1680 = vld [vmem:[#allocation3 + $0xe] sm:$0xff]
      %v1681 = vld [vmem:[#allocation3 + $0x16] sm:$0xff]
      %v1682 = vld [vmem:[#allocation3 + $0x1e] sm:$0xff]
      %v1683 = vld [vmem:[#allocation3 + $0x26] sm:$0xff]
      %v1684 = vld [vmem:[#allocation3 + $0x2e] sm:$0xff]
      %v1685 = vld [vmem:[#allocation3 + $0x36] sm:$0xff]
      %v1686 = vld [vmem:[#allocation3 + $0x3e] sm:$0xff]
      %v1687 = vld [vmem:[#allocation3 + $0x46] sm:$0xff]
      %v1688 = vld [vmem:[#allocation3 + $0x4e] sm:$0xff]
      %v1689 = vld [vmem:[#allocation3 + $0x56] sm:$0xff]
      %v1690 = vld [vmem:[#allocation3 + $0x5e] sm:$0xff]
      %v1691 = vld [vmem:[#allocation3 + $0x66] sm:$0xff]
      %v1692 = vld [vmem:[#allocation3 + $0x6e] sm:$0xff]
      %v1693 = vld [vmem:[#allocation3 + $0x76] sm:$0xff]
      %v1694 = vld [vmem:[#allocation3 + $0x7e] sm:$0xff]
      %1711 = vrot.lane.b32.xlu0 %v1679, 32
      %v1712 = vpop.permute.xlu0 %1711
      %1713 = vrot.lane.b32.xlu0 %v1680, 32
      %v1714 = vpop.permute.xlu0 %1713
      %1715 = vrot.lane.b32.xlu0 %v1681, 32
      %v1716 = vpop.permute.xlu0 %1715
      %1717 = vrot.lane.b32.xlu0 %v1682, 32
      %v1718 = vpop.permute.xlu0 %1717
      %1719 = vrot.lane.b32.xlu0 %v1683, 32
      %v1720 = vpop.permute.xlu0 %1719
      %1721 = vrot.lane.b32.xlu0 %v1684, 32
      %v1722 = vpop.permute.xlu0 %1721
      %1723 = vrot.lane.b32.xlu0 %v1685, 32
      %v1724 = vpop.permute.xlu0 %1723
      %1725 = vrot.lane.b32.xlu0 %v1686, 32
      %v1726 = vpop.permute.xlu0 %1725
      %1727 = vrot.lane.b32.xlu0 %v1687, 32
      %v1728 = vpop.permute.xlu0 %1727
      %1729 = vrot.lane.b32.xlu0 %v1688, 32
      %v1730 = vpop.permute.xlu0 %1729
      %1731 = vrot.lane.b32.xlu0 %v1689, 32
      %v1732 = vpop.permute.xlu0 %1731
      %1733 = vrot.lane.b32.xlu0 %v1690, 32
      %v1734 = vpop.permute.xlu0 %1733
      %1735 = vrot.lane.b32.xlu0 %v1691, 32
      %v1736 = vpop.permute.xlu0 %1735
      %1737 = vrot.lane.b32.xlu0 %v1692, 32
      %v1738 = vpop.permute.xlu0 %1737
      %1739 = vrot.lane.b32.xlu0 %v1693, 32
      %v1740 = vpop.permute.xlu0 %1739
      %1741 = vrot.lane.b32.xlu0 %v1694, 32
      %v1742 = vpop.permute.xlu0 %1741
      %1759 = vst.msk [vmem:[#allocation4] sm:$0xff] %vm707, %v1712
      %1760 = vst.msk [vmem:[#allocation4 + $0x18] sm:$0xff] %vm707, %v1714
      %1761 = vst.msk [vmem:[#allocation4 + $0x30] sm:$0xff] %vm707, %v1716
      %1762 = vst.msk [vmem:[#allocation4 + $0x48] sm:$0xff] %vm707, %v1718
      %1763 = vst.msk [vmem:[#allocation4 + $0x60] sm:$0xff] %vm707, %v1720
      %1764 = vst.msk [vmem:[#allocation4 + $0x78] sm:$0xff] %vm707, %v1722
      %1765 = vst.msk [vmem:[#allocation4 + $0x90] sm:$0xff] %vm707, %v1724
      %1766 = vst.msk [vmem:[#allocation4 + $0xa8] sm:$0xff] %vm707, %v1726
      %1767 = vst.msk [vmem:[#allocation4 + $0xc0] sm:$0xff] %vm707, %v1728
      %1768 = vst.msk [vmem:[#allocation4 + $0xd8] sm:$0xff] %vm707, %v1730
      %1769 = vst.msk [vmem:[#allocation4 + $0xf0] sm:$0xff] %vm707, %v1732
      %1770 = vst.msk [vmem:[#allocation4 + $0x108] sm:$0xff] %vm707, %v1734
      %1771 = vst.msk [vmem:[#allocation4 + $0x120] sm:$0xff] %vm707, %v1736
      %1772 = vst.msk [vmem:[#allocation4 + $0x138] sm:$0xff] %vm707, %v1738
      %1773 = vst.msk [vmem:[#allocation4 + $0x150] sm:$0xff] %vm707, %v1740
      %1774 = vst.msk [vmem:[#allocation4 + $0x168] sm:$0xff] %vm707, %v1742
      %v1775 = vld [vmem:[#allocation3 + $0x7] sm:$0xff]
      %v1776 = vld [vmem:[#allocation3 + $0xf] sm:$0xff]
      %v1777 = vld [vmem:[#allocation3 + $0x17] sm:$0xff]
      %v1778 = vld [vmem:[#allocation3 + $0x1f] sm:$0xff]
      %v1779 = vld [vmem:[#allocation3 + $0x27] sm:$0xff]
      %v1780 = vld [vmem:[#allocation3 + $0x2f] sm:$0xff]
      %v1781 = vld [vmem:[#allocation3 + $0x37] sm:$0xff]
      %v1782 = vld [vmem:[#allocation3 + $0x3f] sm:$0xff]
      %v1783 = vld [vmem:[#allocation3 + $0x47] sm:$0xff]
      %v1784 = vld [vmem:[#allocation3 + $0x4f] sm:$0xff]
      %v1785 = vld [vmem:[#allocation3 + $0x57] sm:$0xff]
      %v1786 = vld [vmem:[#allocation3 + $0x5f] sm:$0xff]
      %v1787 = vld [vmem:[#allocation3 + $0x67] sm:$0xff]
      %v1788 = vld [vmem:[#allocation3 + $0x6f] sm:$0xff]
      %v1789 = vld [vmem:[#allocation3 + $0x77] sm:$0xff]
      %v1790 = vld [vmem:[#allocation3 + $0x7f] sm:$0xff]
      %1807 = vrot.lane.b32.xlu0 %v1775, 64
      %v1808 = vpop.permute.xlu0 %1807
      %1809 = vrot.lane.b32.xlu0 %v1776, 64
      %v1810 = vpop.permute.xlu0 %1809
      %1811 = vrot.lane.b32.xlu0 %v1777, 64
      %v1812 = vpop.permute.xlu0 %1811
      %1813 = vrot.lane.b32.xlu0 %v1778, 64
      %v1814 = vpop.permute.xlu0 %1813
      %1815 = vrot.lane.b32.xlu0 %v1779, 64
      %v1816 = vpop.permute.xlu0 %1815
      %1817 = vrot.lane.b32.xlu0 %v1780, 64
      %v1818 = vpop.permute.xlu0 %1817
      %1819 = vrot.lane.b32.xlu0 %v1781, 64
      %v1820 = vpop.permute.xlu0 %1819
      %1821 = vrot.lane.b32.xlu0 %v1782, 64
      %v1822 = vpop.permute.xlu0 %1821
      %1823 = vrot.lane.b32.xlu0 %v1783, 64
      %v1824 = vpop.permute.xlu0 %1823
      %1825 = vrot.lane.b32.xlu0 %v1784, 64
      %v1826 = vpop.permute.xlu0 %1825
      %1827 = vrot.lane.b32.xlu0 %v1785, 64
      %v1828 = vpop.permute.xlu0 %1827
      %1829 = vrot.lane.b32.xlu0 %v1786, 64
      %v1830 = vpop.permute.xlu0 %1829
      %1831 = vrot.lane.b32.xlu0 %v1787, 64
      %v1832 = vpop.permute.xlu0 %1831
      %1833 = vrot.lane.b32.xlu0 %v1788, 64
      %v1834 = vpop.permute.xlu0 %1833
      %1835 = vrot.lane.b32.xlu0 %v1789, 64
      %v1836 = vpop.permute.xlu0 %1835
      %1837 = vrot.lane.b32.xlu0 %v1790, 64
      %v1838 = vpop.permute.xlu0 %1837
      %1855 = vst.msk [vmem:[#allocation4] sm:$0xff] %vm804, %v1808
      %1856 = vst.msk [vmem:[#allocation4 + $0x18] sm:$0xff] %vm804, %v1810
      %1857 = vst.msk [vmem:[#allocation4 + $0x30] sm:$0xff] %vm804, %v1812
      %1858 = vst.msk [vmem:[#allocation4 + $0x48] sm:$0xff] %vm804, %v1814
      %1859 = vst.msk [vmem:[#allocation4 + $0x60] sm:$0xff] %vm804, %v1816
      %1860 = vst.msk [vmem:[#allocation4 + $0x78] sm:$0xff] %vm804, %v1818
      %1861 = vst.msk [vmem:[#allocation4 + $0x90] sm:$0xff] %vm804, %v1820
      %1862 = vst.msk [vmem:[#allocation4 + $0xa8] sm:$0xff] %vm804, %v1822
      %1863 = vst.msk [vmem:[#allocation4 + $0xc0] sm:$0xff] %vm804, %v1824
      %1864 = vst.msk [vmem:[#allocation4 + $0xd8] sm:$0xff] %vm804, %v1826
      %1865 = vst.msk [vmem:[#allocation4 + $0xf0] sm:$0xff] %vm804, %v1828
      %1866 = vst.msk [vmem:[#allocation4 + $0x108] sm:$0xff] %vm804, %v1830
      %1867 = vst.msk [vmem:[#allocation4 + $0x120] sm:$0xff] %vm804, %v1832
      %1868 = vst.msk [vmem:[#allocation4 + $0x138] sm:$0xff] %vm804, %v1834
      %1869 = vst.msk [vmem:[#allocation4 + $0x150] sm:$0xff] %vm804, %v1836
      %1870 = vst.msk [vmem:[#allocation4 + $0x168] sm:$0xff] %vm804, %v1838
      %v1871 = vld [vmem:[#allocation3 + $0xf] sm:$0xff]
      %v1872 = vld [vmem:[#allocation3 + $0x17] sm:$0xff]
      %v1873 = vld [vmem:[#allocation3 + $0x1f] sm:$0xff]
      %v1874 = vld [vmem:[#allocation3 + $0x27] sm:$0xff]
      %v1875 = vld [vmem:[#allocation3 + $0x2f] sm:$0xff]
      %v1876 = vld [vmem:[#allocation3 + $0x37] sm:$0xff]
      %v1877 = vld [vmem:[#allocation3 + $0x3f] sm:$0xff]
      %v1878 = vld [vmem:[#allocation3 + $0x47] sm:$0xff]
      %v1879 = vld [vmem:[#allocation3 + $0x4f] sm:$0xff]
      %v1880 = vld [vmem:[#allocation3 + $0x57] sm:$0xff]
      %v1881 = vld [vmem:[#allocation3 + $0x5f] sm:$0xff]
      %v1882 = vld [vmem:[#allocation3 + $0x67] sm:$0xff]
      %v1883 = vld [vmem:[#allocation3 + $0x6f] sm:$0xff]
      %v1884 = vld [vmem:[#allocation3 + $0x77] sm:$0xff]
      %v1885 = vld [vmem:[#allocation3 + $0x7f] sm:$0xff]
      %v1886 = vld [vmem:[#allocation3 + $0x87] sm:$0xff]
      %1903 = vrot.lane.b32.xlu0 %v1871, 96
      %v1904 = vpop.permute.xlu0 %1903
      %1905 = vrot.lane.b32.xlu0 %v1872, 96
      %v1906 = vpop.permute.xlu0 %1905
      %1907 = vrot.lane.b32.xlu0 %v1873, 96
      %v1908 = vpop.permute.xlu0 %1907
      %1909 = vrot.lane.b32.xlu0 %v1874, 96
      %v1910 = vpop.permute.xlu0 %1909
      %1911 = vrot.lane.b32.xlu0 %v1875, 96
      %v1912 = vpop.permute.xlu0 %1911
      %1913 = vrot.lane.b32.xlu0 %v1876, 96
      %v1914 = vpop.permute.xlu0 %1913
      %1915 = vrot.lane.b32.xlu0 %v1877, 96
      %v1916 = vpop.permute.xlu0 %1915
      %1917 = vrot.lane.b32.xlu0 %v1878, 96
      %v1918 = vpop.permute.xlu0 %1917
      %1919 = vrot.lane.b32.xlu0 %v1879, 96
      %v1920 = vpop.permute.xlu0 %1919
      %1921 = vrot.lane.b32.xlu0 %v1880, 96
      %v1922 = vpop.permute.xlu0 %1921
      %1923 = vrot.lane.b32.xlu0 %v1881, 96
      %v1924 = vpop.permute.xlu0 %1923
      %1925 = vrot.lane.b32.xlu0 %v1882, 96
      %v1926 = vpop.permute.xlu0 %1925
      %1927 = vrot.lane.b32.xlu0 %v1883, 96
      %v1928 = vpop.permute.xlu0 %1927
      %1929 = vrot.lane.b32.xlu0 %v1884, 96
      %v1930 = vpop.permute.xlu0 %1929
      %1931 = vrot.lane.b32.xlu0 %v1885, 96
      %v1932 = vpop.permute.xlu0 %1931
      %1933 = vrot.lane.b32.xlu0 %v1886, 96
      %v1934 = vpop.permute.xlu0 %1933
      %1951 = vst.msk [vmem:[#allocation4] sm:$0xff] %vm901, %v1904
      %1952 = vst.msk [vmem:[#allocation4 + $0x18] sm:$0xff] %vm901, %v1906
      %1953 = vst.msk [vmem:[#allocation4 + $0x30] sm:$0xff] %vm901, %v1908
      %1954 = vst.msk [vmem:[#allocation4 + $0x48] sm:$0xff] %vm901, %v1910
      %1955 = vst.msk [vmem:[#allocation4 + $0x60] sm:$0xff] %vm901, %v1912
      %1956 = vst.msk [vmem:[#allocation4 + $0x78] sm:$0xff] %vm901, %v1914
      %1957 = vst.msk [vmem:[#allocation4 + $0x90] sm:$0xff] %vm901, %v1916
      %1958 = vst.msk [vmem:[#allocation4 + $0xa8] sm:$0xff] %vm901, %v1918
      %1959 = vst.msk [vmem:[#allocation4 + $0xc0] sm:$0xff] %vm901, %v1920
      %1960 = vst.msk [vmem:[#allocation4 + $0xd8] sm:$0xff] %vm901, %v1922
      %1961 = vst.msk [vmem:[#allocation4 + $0xf0] sm:$0xff] %vm901, %v1924
      %1962 = vst.msk [vmem:[#allocation4 + $0x108] sm:$0xff] %vm901, %v1926
      %1963 = vst.msk [vmem:[#allocation4 + $0x120] sm:$0xff] %vm901, %v1928
      %1964 = vst.msk [vmem:[#allocation4 + $0x138] sm:$0xff] %vm901, %v1930
      %1965 = vst.msk [vmem:[#allocation4 + $0x150] sm:$0xff] %vm901, %v1932
      %1966 = vst.msk [vmem:[#allocation4 + $0x168] sm:$0xff] %vm901, %v1934
      %v1967 = vld [vmem:[#allocation3 + $0x10] sm:$0xff]
      %v1968 = vld [vmem:[#allocation3 + $0x18] sm:$0xff]
      %v1969 = vld [vmem:[#allocation3 + $0x20] sm:$0xff]
      %v1970 = vld [vmem:[#allocation3 + $0x28] sm:$0xff]
      %v1971 = vld [vmem:[#allocation3 + $0x30] sm:$0xff]
      %v1972 = vld [vmem:[#allocation3 + $0x38] sm:$0xff]
      %v1973 = vld [vmem:[#allocation3 + $0x40] sm:$0xff]
      %v1974 = vld [vmem:[#allocation3 + $0x48] sm:$0xff]
      %v1975 = vld [vmem:[#allocation3 + $0x50] sm:$0xff]
      %v1976 = vld [vmem:[#allocation3 + $0x58] sm:$0xff]
      %v1977 = vld [vmem:[#allocation3 + $0x60] sm:$0xff]
      %v1978 = vld [vmem:[#allocation3 + $0x68] sm:$0xff]
      %v1979 = vld [vmem:[#allocation3 + $0x70] sm:$0xff]
      %v1980 = vld [vmem:[#allocation3 + $0x78] sm:$0xff]
      %v1981 = vld [vmem:[#allocation3 + $0x80] sm:$0xff]
      %v1982 = vld [vmem:[#allocation3 + $0x88] sm:$0xff]
      %1983 = vst.msk [vmem:[#allocation4 + $0x8] sm:$0xff] %vm304, %v1967
      %1984 = vst.msk [vmem:[#allocation4 + $0x20] sm:$0xff] %vm304, %v1968
      %1985 = vst.msk [vmem:[#allocation4 + $0x38] sm:$0xff] %vm304, %v1969
      %1986 = vst.msk [vmem:[#allocation4 + $0x50] sm:$0xff] %vm304, %v1970
      %1987 = vst.msk [vmem:[#allocation4 + $0x68] sm:$0xff] %vm304, %v1971
      %1988 = vst.msk [vmem:[#allocation4 + $0x80] sm:$0xff] %vm304, %v1972
      %1989 = vst.msk [vmem:[#allocation4 + $0x98] sm:$0xff] %vm304, %v1973
      %1990 = vst.msk [vmem:[#allocation4 + $0xb0] sm:$0xff] %vm304, %v1974
      %1991 = vst.msk [vmem:[#allocation4 + $0xc8] sm:$0xff] %vm304, %v1975
      %1992 = vst.msk [vmem:[#allocation4 + $0xe0] sm:$0xff] %vm304, %v1976
      %1993 = vst.msk [vmem:[#allocation4 + $0xf8] sm:$0xff] %vm304, %v1977
      %1994 = vst.msk [vmem:[#allocation4 + $0x110] sm:$0xff] %vm304, %v1978
      %1995 = vst.msk [vmem:[#allocation4 + $0x128] sm:$0xff] %vm304, %v1979
      %1996 = vst.msk [vmem:[#allocation4 + $0x140] sm:$0xff] %vm304, %v1980
      %1997 = vst.msk [vmem:[#allocation4 + $0x158] sm:$0xff] %vm304, %v1981
      %1998 = vst.msk [vmem:[#allocation4 + $0x170] sm:$0xff] %vm304, %v1982
      %v1999 = vld [vmem:[#allocation3 + $0x11] sm:$0xff]
      %v2000 = vld [vmem:[#allocation3 + $0x19] sm:$0xff]
      %v2001 = vld [vmem:[#allocation3 + $0x21] sm:$0xff]
      %v2002 = vld [vmem:[#allocation3 + $0x29] sm:$0xff]
      %v2003 = vld [vmem:[#allocation3 + $0x31] sm:$0xff]
      %v2004 = vld [vmem:[#allocation3 + $0x39] sm:$0xff]
      %v2005 = vld [vmem:[#allocation3 + $0x41] sm:$0xff]
      %v2006 = vld [vmem:[#allocation3 + $0x49] sm:$0xff]
      %v2007 = vld [vmem:[#allocation3 + $0x51] sm:$0xff]
      %v2008 = vld [vmem:[#allocation3 + $0x59] sm:$0xff]
      %v2009 = vld [vmem:[#allocation3 + $0x61] sm:$0xff]
      %v2010 = vld [vmem:[#allocation3 + $0x69] sm:$0xff]
      %v2011 = vld [vmem:[#allocation3 + $0x71] sm:$0xff]
      %v2012 = vld [vmem:[#allocation3 + $0x79] sm:$0xff]
      %v2013 = vld [vmem:[#allocation3 + $0x81] sm:$0xff]
      %v2014 = vld [vmem:[#allocation3 + $0x89] sm:$0xff]
      %2031 = vrot.lane.b32.xlu0 %v1999, 32
      %v2032 = vpop.permute.xlu0 %2031
      %2033 = vrot.lane.b32.xlu0 %v2000, 32
      %v2034 = vpop.permute.xlu0 %2033
      %2035 = vrot.lane.b32.xlu0 %v2001, 32
      %v2036 = vpop.permute.xlu0 %2035
      %2037 = vrot.lane.b32.xlu0 %v2002, 32
      %v2038 = vpop.permute.xlu0 %2037
      %2039 = vrot.lane.b32.xlu0 %v2003, 32
      %v2040 = vpop.permute.xlu0 %2039
      %2041 = vrot.lane.b32.xlu0 %v2004, 32
      %v2042 = vpop.permute.xlu0 %2041
      %2043 = vrot.lane.b32.xlu0 %v2005, 32
      %v2044 = vpop.permute.xlu0 %2043
      %2045 = vrot.lane.b32.xlu0 %v2006, 32
      %v2046 = vpop.permute.xlu0 %2045
      %2047 = vrot.lane.b32.xlu0 %v2007, 32
      %v2048 = vpop.permute.xlu0 %2047
      %2049 = vrot.lane.b32.xlu0 %v2008, 32
      %v2050 = vpop.permute.xlu0 %2049
      %2051 = vrot.lane.b32.xlu0 %v2009, 32
      %v2052 = vpop.permute.xlu0 %2051
      %2053 = vrot.lane.b32.xlu0 %v2010, 32
      %v2054 = vpop.permute.xlu0 %2053
      %2055 = vrot.lane.b32.xlu0 %v2011, 32
      %v2056 = vpop.permute.xlu0 %2055
      %2057 = vrot.lane.b32.xlu0 %v2012, 32
      %v2058 = vpop.permute.xlu0 %2057
      %2059 = vrot.lane.b32.xlu0 %v2013, 32
      %v2060 = vpop.permute.xlu0 %2059
      %2061 = vrot.lane.b32.xlu0 %v2014, 32
      %v2062 = vpop.permute.xlu0 %2061
      %2079 = vst.msk [vmem:[#allocation4 + $0x8] sm:$0xff] %vm707, %v2032
      %2080 = vst.msk [vmem:[#allocation4 + $0x20] sm:$0xff] %vm707, %v2034
      %2081 = vst.msk [vmem:[#allocation4 + $0x38] sm:$0xff] %vm707, %v2036
      %2082 = vst.msk [vmem:[#allocation4 + $0x50] sm:$0xff] %vm707, %v2038
      %2083 = vst.msk [vmem:[#allocation4 + $0x68] sm:$0xff] %vm707, %v2040
      %2084 = vst.msk [vmem:[#allocation4 + $0x80] sm:$0xff] %vm707, %v2042
      %2085 = vst.msk [vmem:[#allocation4 + $0x98] sm:$0xff] %vm707, %v2044
      %2086 = vst.msk [vmem:[#allocation4 + $0xb0] sm:$0xff] %vm707, %v2046
      %2087 = vst.msk [vmem:[#allocation4 + $0xc8] sm:$0xff] %vm707, %v2048
      %2088 = vst.msk [vmem:[#allocation4 + $0xe0] sm:$0xff] %vm707, %v2050
      %2089 = vst.msk [vmem:[#allocation4 + $0xf8] sm:$0xff] %vm707, %v2052
      %2090 = vst.msk [vmem:[#allocation4 + $0x110] sm:$0xff] %vm707, %v2054
      %2091 = vst.msk [vmem:[#allocation4 + $0x128] sm:$0xff] %vm707, %v2056
      %2092 = vst.msk [vmem:[#allocation4 + $0x140] sm:$0xff] %vm707, %v2058
      %2093 = vst.msk [vmem:[#allocation4 + $0x158] sm:$0xff] %vm707, %v2060
      %2094 = vst.msk [vmem:[#allocation4 + $0x170] sm:$0xff] %vm707, %v2062
      %v2095 = vld [vmem:[#allocation3 + $0x19] sm:$0xff]
      %v2096 = vld [vmem:[#allocation3 + $0x21] sm:$0xff]
      %v2097 = vld [vmem:[#allocation3 + $0x29] sm:$0xff]
      %v2098 = vld [vmem:[#allocation3 + $0x31] sm:$0xff]
      %v2099 = vld [vmem:[#allocation3 + $0x39] sm:$0xff]
      %v2100 = vld [vmem:[#allocation3 + $0x41] sm:$0xff]
      %v2101 = vld [vmem:[#allocation3 + $0x49] sm:$0xff]
      %v2102 = vld [vmem:[#allocation3 + $0x51] sm:$0xff]
      %v2103 = vld [vmem:[#allocation3 + $0x59] sm:$0xff]
      %v2104 = vld [vmem:[#allocation3 + $0x61] sm:$0xff]
      %v2105 = vld [vmem:[#allocation3 + $0x69] sm:$0xff]
      %v2106 = vld [vmem:[#allocation3 + $0x71] sm:$0xff]
      %v2107 = vld [vmem:[#allocation3 + $0x79] sm:$0xff]
      %v2108 = vld [vmem:[#allocation3 + $0x81] sm:$0xff]
      %v2109 = vld [vmem:[#allocation3 + $0x89] sm:$0xff]
      %v2110 = vld [vmem:[#allocation3 + $0x91] sm:$0xff]
      %2127 = vrot.lane.b32.xlu0 %v2095, 64
      %v2128 = vpop.permute.xlu0 %2127
      %2129 = vrot.lane.b32.xlu0 %v2096, 64
      %v2130 = vpop.permute.xlu0 %2129
      %2131 = vrot.lane.b32.xlu0 %v2097, 64
      %v2132 = vpop.permute.xlu0 %2131
      %2133 = vrot.lane.b32.xlu0 %v2098, 64
      %v2134 = vpop.permute.xlu0 %2133
      %2135 = vrot.lane.b32.xlu0 %v2099, 64
      %v2136 = vpop.permute.xlu0 %2135
      %2137 = vrot.lane.b32.xlu0 %v2100, 64
      %v2138 = vpop.permute.xlu0 %2137
      %2139 = vrot.lane.b32.xlu0 %v2101, 64
      %v2140 = vpop.permute.xlu0 %2139
      %2141 = vrot.lane.b32.xlu0 %v2102, 64
      %v2142 = vpop.permute.xlu0 %2141
      %2143 = vrot.lane.b32.xlu0 %v2103, 64
      %v2144 = vpop.permute.xlu0 %2143
      %2145 = vrot.lane.b32.xlu0 %v2104, 64
      %v2146 = vpop.permute.xlu0 %2145
      %2147 = vrot.lane.b32.xlu0 %v2105, 64
      %v2148 = vpop.permute.xlu0 %2147
      %2149 = vrot.lane.b32.xlu0 %v2106, 64
      %v2150 = vpop.permute.xlu0 %2149
      %2151 = vrot.lane.b32.xlu0 %v2107, 64
      %v2152 = vpop.permute.xlu0 %2151
      %2153 = vrot.lane.b32.xlu0 %v2108, 64
      %v2154 = vpop.permute.xlu0 %2153
      %2155 = vrot.lane.b32.xlu0 %v2109, 64
      %v2156 = vpop.permute.xlu0 %2155
      %2157 = vrot.lane.b32.xlu0 %v2110, 64
      %v2158 = vpop.permute.xlu0 %2157
      %2175 = vst.msk [vmem:[#allocation4 + $0x8] sm:$0xff] %vm804, %v2128
      %2176 = vst.msk [vmem:[#allocation4 + $0x20] sm:$0xff] %vm804, %v2130
      %2177 = vst.msk [vmem:[#allocation4 + $0x38] sm:$0xff] %vm804, %v2132
      %2178 = vst.msk [vmem:[#allocation4 + $0x50] sm:$0xff] %vm804, %v2134
      %2179 = vst.msk [vmem:[#allocation4 + $0x68] sm:$0xff] %vm804, %v2136
      %2180 = vst.msk [vmem:[#allocation4 + $0x80] sm:$0xff] %vm804, %v2138
      %2181 = vst.msk [vmem:[#allocation4 + $0x98] sm:$0xff] %vm804, %v2140
      %2182 = vst.msk [vmem:[#allocation4 + $0xb0] sm:$0xff] %vm804, %v2142
      %2183 = vst.msk [vmem:[#allocation4 + $0xc8] sm:$0xff] %vm804, %v2144
      %2184 = vst.msk [vmem:[#allocation4 + $0xe0] sm:$0xff] %vm804, %v2146
      %2185 = vst.msk [vmem:[#allocation4 + $0xf8] sm:$0xff] %vm804, %v2148
      %2186 = vst.msk [vmem:[#allocation4 + $0x110] sm:$0xff] %vm804, %v2150
      %2187 = vst.msk [vmem:[#allocation4 + $0x128] sm:$0xff] %vm804, %v2152
      %2188 = vst.msk [vmem:[#allocation4 + $0x140] sm:$0xff] %vm804, %v2154
      %2189 = vst.msk [vmem:[#allocation4 + $0x158] sm:$0xff] %vm804, %v2156
      %2190 = vst.msk [vmem:[#allocation4 + $0x170] sm:$0xff] %vm804, %v2158
      %v2191 = vld [vmem:[#allocation3 + $0x1a] sm:$0xff]
      %v2192 = vld [vmem:[#allocation3 + $0x22] sm:$0xff]
      %v2193 = vld [vmem:[#allocation3 + $0x2a] sm:$0xff]
      %v2194 = vld [vmem:[#allocation3 + $0x32] sm:$0xff]
      %v2195 = vld [vmem:[#allocation3 + $0x3a] sm:$0xff]
      %v2196 = vld [vmem:[#allocation3 + $0x42] sm:$0xff]
      %v2197 = vld [vmem:[#allocation3 + $0x4a] sm:$0xff]
      %v2198 = vld [vmem:[#allocation3 + $0x52] sm:$0xff]
      %v2199 = vld [vmem:[#allocation3 + $0x5a] sm:$0xff]
      %v2200 = vld [vmem:[#allocation3 + $0x62] sm:$0xff]
      %v2201 = vld [vmem:[#allocation3 + $0x6a] sm:$0xff]
      %v2202 = vld [vmem:[#allocation3 + $0x72] sm:$0xff]
      %v2203 = vld [vmem:[#allocation3 + $0x7a] sm:$0xff]
      %v2204 = vld [vmem:[#allocation3 + $0x82] sm:$0xff]
      %v2205 = vld [vmem:[#allocation3 + $0x8a] sm:$0xff]
      %v2206 = vld [vmem:[#allocation3 + $0x92] sm:$0xff]
      %2223 = vrot.lane.b32.xlu0 %v2191, 96
      %v2224 = vpop.permute.xlu0 %2223
      %2225 = vrot.lane.b32.xlu0 %v2192, 96
      %v2226 = vpop.permute.xlu0 %2225
      %2227 = vrot.lane.b32.xlu0 %v2193, 96
      %v2228 = vpop.permute.xlu0 %2227
      %2229 = vrot.lane.b32.xlu0 %v2194, 96
      %v2230 = vpop.permute.xlu0 %2229
      %2231 = vrot.lane.b32.xlu0 %v2195, 96
      %v2232 = vpop.permute.xlu0 %2231
      %2233 = vrot.lane.b32.xlu0 %v2196, 96
      %v2234 = vpop.permute.xlu0 %2233
      %2235 = vrot.lane.b32.xlu0 %v2197, 96
      %v2236 = vpop.permute.xlu0 %2235
      %2237 = vrot.lane.b32.xlu0 %v2198, 96
      %v2238 = vpop.permute.xlu0 %2237
      %2239 = vrot.lane.b32.xlu0 %v2199, 96
      %v2240 = vpop.permute.xlu0 %2239
      %2241 = vrot.lane.b32.xlu0 %v2200, 96
      %v2242 = vpop.permute.xlu0 %2241
      %2243 = vrot.lane.b32.xlu0 %v2201, 96
      %v2244 = vpop.permute.xlu0 %2243
      %2245 = vrot.lane.b32.xlu0 %v2202, 96
      %v2246 = vpop.permute.xlu0 %2245
      %2247 = vrot.lane.b32.xlu0 %v2203, 96
      %v2248 = vpop.permute.xlu0 %2247
      %2249 = vrot.lane.b32.xlu0 %v2204, 96
      %v2250 = vpop.permute.xlu0 %2249
      %2251 = vrot.lane.b32.xlu0 %v2205, 96
      %v2252 = vpop.permute.xlu0 %2251
      %2253 = vrot.lane.b32.xlu0 %v2206, 96
      %v2254 = vpop.permute.xlu0 %2253
      %2271 = vst.msk [vmem:[#allocation4 + $0x8] sm:$0xff] %vm901, %v2224
      %2272 = vst.msk [vmem:[#allocation4 + $0x20] sm:$0xff] %vm901, %v2226
      %2273 = vst.msk [vmem:[#allocation4 + $0x38] sm:$0xff] %vm901, %v2228
      %2274 = vst.msk [vmem:[#allocation4 + $0x50] sm:$0xff] %vm901, %v2230
      %2275 = vst.msk [vmem:[#allocation4 + $0x68] sm:$0xff] %vm901, %v2232
      %2276 = vst.msk [vmem:[#allocation4 + $0x80] sm:$0xff] %vm901, %v2234
      %2277 = vst.msk [vmem:[#allocation4 + $0x98] sm:$0xff] %vm901, %v2236
      %2278 = vst.msk [vmem:[#allocation4 + $0xb0] sm:$0xff] %vm901, %v2238
      %2279 = vst.msk [vmem:[#allocation4 + $0xc8] sm:$0xff] %vm901, %v2240
      %2280 = vst.msk [vmem:[#allocation4 + $0xe0] sm:$0xff] %vm901, %v2242
      %2281 = vst.msk [vmem:[#allocation4 + $0xf8] sm:$0xff] %vm901, %v2244
      %2282 = vst.msk [vmem:[#allocation4 + $0x110] sm:$0xff] %vm901, %v2246
      %2283 = vst.msk [vmem:[#allocation4 + $0x128] sm:$0xff] %vm901, %v2248
      %2284 = vst.msk [vmem:[#allocation4 + $0x140] sm:$0xff] %vm901, %v2250
      %2285 = vst.msk [vmem:[#allocation4 + $0x158] sm:$0xff] %vm901, %v2252
      %2286 = vst.msk [vmem:[#allocation4 + $0x170] sm:$0xff] %vm901, %v2254
      %v2287 = vld [vmem:[#allocation3 + $0x1b] sm:$0xff]
      %v2288 = vld [vmem:[#allocation3 + $0x23] sm:$0xff]
      %v2289 = vld [vmem:[#allocation3 + $0x2b] sm:$0xff]
      %v2290 = vld [vmem:[#allocation3 + $0x33] sm:$0xff]
      %v2291 = vld [vmem:[#allocation3 + $0x3b] sm:$0xff]
      %v2292 = vld [vmem:[#allocation3 + $0x43] sm:$0xff]
      %v2293 = vld [vmem:[#allocation3 + $0x4b] sm:$0xff]
      %v2294 = vld [vmem:[#allocation3 + $0x53] sm:$0xff]
      %v2295 = vld [vmem:[#allocation3 + $0x5b] sm:$0xff]
      %v2296 = vld [vmem:[#allocation3 + $0x63] sm:$0xff]
      %v2297 = vld [vmem:[#allocation3 + $0x6b] sm:$0xff]
      %v2298 = vld [vmem:[#allocation3 + $0x73] sm:$0xff]
      %v2299 = vld [vmem:[#allocation3 + $0x7b] sm:$0xff]
      %v2300 = vld [vmem:[#allocation3 + $0x83] sm:$0xff]
      %v2301 = vld [vmem:[#allocation3 + $0x8b] sm:$0xff]
      %v2302 = vld [vmem:[#allocation3 + $0x93] sm:$0xff]
      %2303 = vst.msk [vmem:[#allocation4 + $0x10] sm:$0xff] %vm304, %v2287
      %2304 = vst.msk [vmem:[#allocation4 + $0x28] sm:$0xff] %vm304, %v2288
      %2305 = vst.msk [vmem:[#allocation4 + $0x40] sm:$0xff] %vm304, %v2289
      %2306 = vst.msk [vmem:[#allocation4 + $0x58] sm:$0xff] %vm304, %v2290
      %2307 = vst.msk [vmem:[#allocation4 + $0x70] sm:$0xff] %vm304, %v2291
      %2308 = vst.msk [vmem:[#allocation4 + $0x88] sm:$0xff] %vm304, %v2292
      %2309 = vst.msk [vmem:[#allocation4 + $0xa0] sm:$0xff] %vm304, %v2293
      %2310 = vst.msk [vmem:[#allocation4 + $0xb8] sm:$0xff] %vm304, %v2294
      %2311 = vst.msk [vmem:[#allocation4 + $0xd0] sm:$0xff] %vm304, %v2295
      %2312 = vst.msk [vmem:[#allocation4 + $0xe8] sm:$0xff] %vm304, %v2296
      %2313 = vst.msk [vmem:[#allocation4 + $0x100] sm:$0xff] %vm304, %v2297
      %2314 = vst.msk [vmem:[#allocation4 + $0x118] sm:$0xff] %vm304, %v2298
      %2315 = vst.msk [vmem:[#allocation4 + $0x130] sm:$0xff] %vm304, %v2299
      %2316 = vst.msk [vmem:[#allocation4 + $0x148] sm:$0xff] %vm304, %v2300
      %2317 = vst.msk [vmem:[#allocation4 + $0x160] sm:$0xff] %vm304, %v2301
      %2318 = vst.msk [vmem:[#allocation4 + $0x178] sm:$0xff] %vm304, %v2302
      %v2319 = vld [vmem:[#allocation4] sm:$0xff]
      %v2320 = vld [vmem:[#allocation4 + $0x8] sm:$0xff]
      %v2321 = vld [vmem:[#allocation4 + $0x10] sm:$0xff]
      %v2322 = vld [vmem:[#allocation4 + $0x18] sm:$0xff]
      %v2323 = vld [vmem:[#allocation4 + $0x20] sm:$0xff]
      %v2324 = vld [vmem:[#allocation4 + $0x28] sm:$0xff]
      %v2325 = vld [vmem:[#allocation4 + $0x30] sm:$0xff]
      %v2326 = vld [vmem:[#allocation4 + $0x38] sm:$0xff]
      %v2327 = vld [vmem:[#allocation4 + $0x40] sm:$0xff]
      %v2328 = vld [vmem:[#allocation4 + $0x48] sm:$0xff]
      %v2329 = vld [vmem:[#allocation4 + $0x50] sm:$0xff]
      %v2330 = vld [vmem:[#allocation4 + $0x58] sm:$0xff]
      %v2331 = vld [vmem:[#allocation4 + $0x60] sm:$0xff]
      %v2332 = vld [vmem:[#allocation4 + $0x68] sm:$0xff]
      %v2333 = vld [vmem:[#allocation4 + $0x70] sm:$0xff]
      %v2334 = vld [vmem:[#allocation4 + $0x78] sm:$0xff]
      %v2335 = vld [vmem:[#allocation4 + $0x80] sm:$0xff]
      %v2336 = vld [vmem:[#allocation4 + $0x88] sm:$0xff]
      %v2337 = vld [vmem:[#allocation4 + $0x90] sm:$0xff]
      %v2338 = vld [vmem:[#allocation4 + $0x98] sm:$0xff]
      %v2339 = vld [vmem:[#allocation4 + $0xa0] sm:$0xff]
      %v2340 = vld [vmem:[#allocation4 + $0xa8] sm:$0xff]
      %v2341 = vld [vmem:[#allocation4 + $0xb0] sm:$0xff]
      %v2342 = vld [vmem:[#allocation4 + $0xb8] sm:$0xff]
      %v2343 = vld [vmem:[#allocation4 + $0xc0] sm:$0xff]
      %v2344 = vld [vmem:[#allocation4 + $0xc8] sm:$0xff]
      %v2345 = vld [vmem:[#allocation4 + $0xd0] sm:$0xff]
      %v2346 = vld [vmem:[#allocation4 + $0xd8] sm:$0xff]
      %v2347 = vld [vmem:[#allocation4 + $0xe0] sm:$0xff]
      %v2348 = vld [vmem:[#allocation4 + $0xe8] sm:$0xff]
      %v2349 = vld [vmem:[#allocation4 + $0xf0] sm:$0xff]
      %v2350 = vld [vmem:[#allocation4 + $0xf8] sm:$0xff]
      %v2351 = vld [vmem:[#allocation4 + $0x100] sm:$0xff]
      %v2352 = vld [vmem:[#allocation4 + $0x108] sm:$0xff]
      %v2353 = vld [vmem:[#allocation4 + $0x110] sm:$0xff]
      %v2354 = vld [vmem:[#allocation4 + $0x118] sm:$0xff]
      %v2355 = vld [vmem:[#allocation4 + $0x120] sm:$0xff]
      %v2356 = vld [vmem:[#allocation4 + $0x128] sm:$0xff]
      %v2357 = vld [vmem:[#allocation4 + $0x130] sm:$0xff]
      %v2358 = vld [vmem:[#allocation4 + $0x138] sm:$0xff]
      %v2359 = vld [vmem:[#allocation4 + $0x140] sm:$0xff]
      %v2360 = vld [vmem:[#allocation4 + $0x148] sm:$0xff]
      %v2361 = vld [vmem:[#allocation4 + $0x150] sm:$0xff]
      %v2362 = vld [vmem:[#allocation4 + $0x158] sm:$0xff]
      %v2363 = vld [vmem:[#allocation4 + $0x160] sm:$0xff]
      %v2364 = vld [vmem:[#allocation4 + $0x168] sm:$0xff]
      %v2365 = vld [vmem:[#allocation4 + $0x170] sm:$0xff]
      %v2366 = vld [vmem:[#allocation4 + $0x178] sm:$0xff]
      %v2367 = vld [vmem:[%s4 + $0x120] sm:$0xff]
      %v2368 = vld [vmem:[%s4 + $0x128] sm:$0xff]
      %v2369 = vld [vmem:[%s4 + $0x130] sm:$0xff]
      %v2370 = vld [vmem:[%s4 + $0x138] sm:$0xff]
      %v2371 = vld [vmem:[%s4 + $0x140] sm:$0xff]
      %v2372 = vld [vmem:[%s4 + $0x148] sm:$0xff]
      %v2373 = vld [vmem:[%s4 + $0x150] sm:$0xff]
      %v2374 = vld [vmem:[%s4 + $0x158] sm:$0xff]
      %v2375 = vld [vmem:[%s4 + $0x160] sm:$0xff]
      %v2376 = vld [vmem:[%s4 + $0x168] sm:$0xff]
      %v2377 = vld [vmem:[%s4 + $0x170] sm:$0xff]
      %v2378 = vld [vmem:[%s4 + $0x178] sm:$0xff]
      %v2379 = vld [vmem:[%s4 + $0x180] sm:$0xff]
      %v2380 = vld [vmem:[%s4 + $0x188] sm:$0xff]
      %v2381 = vld [vmem:[%s4 + $0x190] sm:$0xff]
      %v2382 = vld [vmem:[%s4 + $0x198] sm:$0xff]
      %v2383 = vld [vmem:[%s4 + $0x1a0] sm:$0xff]
      %v2384 = vld [vmem:[%s4 + $0x1a8] sm:$0xff]
      %v2385 = vld [vmem:[%s4 + $0x1b0] sm:$0xff]
      %v2386 = vld [vmem:[%s4 + $0x1b8] sm:$0xff]
      %v2387 = vld [vmem:[%s4 + $0x1c0] sm:$0xff]
      %v2388 = vld [vmem:[%s4 + $0x1c8] sm:$0xff]
      %v2389 = vld [vmem:[%s4 + $0x1d0] sm:$0xff]
      %v2390 = vld [vmem:[%s4 + $0x1d8] sm:$0xff]
      %v2391 = vld [vmem:[%s4 + $0x1e0] sm:$0xff]
      %v2392 = vld [vmem:[%s4 + $0x1e8] sm:$0xff]
      %v2393 = vld [vmem:[%s4 + $0x1f0] sm:$0xff]
      %v2394 = vld [vmem:[%s4 + $0x1f8] sm:$0xff]
      %v2395 = vld [vmem:[%s4 + $0x200] sm:$0xff]
      %v2396 = vld [vmem:[%s4 + $0x208] sm:$0xff]
      %v2397 = vld [vmem:[%s4 + $0x210] sm:$0xff]
      %v2398 = vld [vmem:[%s4 + $0x218] sm:$0xff]
      %v2399 = vld [vmem:[%s4 + $0x220] sm:$0xff]
      %v2400 = vld [vmem:[%s4 + $0x228] sm:$0xff]
      %v2401 = vld [vmem:[%s4 + $0x230] sm:$0xff]
      %v2402 = vld [vmem:[%s4 + $0x238] sm:$0xff]
      %v2403 = vld [vmem:[%s5 + $0x1] sm:$0x1]
      %v2404 = vperm.slane %v2403, 0
      %v2406 = vsel %vm304, %v2321, 0
      %v2409 = vsel %vm304, %v2324, 0
      %v2412 = vsel %vm304, %v2327, 0
      %v2415 = vsel %vm304, %v2330, 0
      %v2418 = vsel %vm304, %v2333, 0
      %v2421 = vsel %vm304, %v2336, 0
      %v2424 = vsel %vm304, %v2339, 0
      %v2427 = vsel %vm304, %v2342, 0
      %v2430 = vsel %vm304, %v2345, 0
      %v2433 = vsel %vm304, %v2348, 0
      %v2436 = vsel %vm304, %v2351, 0
      %v2439 = vsel %vm304, %v2354, 0
      %v2442 = vsel %vm304, %v2357, 0
      %v2445 = vsel %vm304, %v2360, 0
      %v2448 = vsel %vm304, %v2363, 0
      %v2451 = vsel %vm304, %v2366, 0
      %2453 = vmatpush.msra.mxu0 %v2382
      %2454 = vmatpush.msra.mxu0 %v2381
      %2455 = vmatpush.msra.mxu0 %v2380
      %2456 = vmatpush.msra.mxu0 %v2379
      %2457 = vmatpush.msra.mxu0 %v2378
      %2458 = vmatpush.msra.mxu0 %v2377
      %2459 = vmatpush.msra.mxu0 %v2376
      %2460 = vmatpush.msra.mxu0 %v2375
      %2461 = vmatpush.msra.mxu0 %v2374
      %2462 = vmatpush.msra.mxu0 %v2373
      %2463 = vmatpush.msra.mxu0 %v2372
      %2464 = vmatpush.msra.mxu0 %v2371
      %2465 = vmatpush.msra.mxu0 %v2370
      %2466 = vmatpush.msra.mxu0 %v2369
      %2467 = vmatpush.msra.mxu0 %v2368
      %2468 = vmatpush.msra.mxu0 %v2367
      %2469 = vmatmul.f32.gmra.mxu0 %v2319
      %v2470 = vpop.f32.mrf.mxu0
      %v2471 = vadd.f32 %v2404, %v2470
      %2472 = vmatmul.f32.gmra.mxu0 %v2322
      %v2473 = vpop.f32.mrf.mxu0
      %v2474 = vadd.f32 %v2404, %v2473
      %2475 = vmatmul.f32.gmra.mxu0 %v2325
      %v2476 = vpop.f32.mrf.mxu0
      %v2477 = vadd.f32 %v2404, %v2476
      %2478 = vmatmul.f32.gmra.mxu0 %v2328
      %v2479 = vpop.f32.mrf.mxu0
      %v2480 = vadd.f32 %v2404, %v2479
      %2481 = vmatmul.f32.gmra.mxu0 %v2331
      %v2482 = vpop.f32.mrf.mxu0
      %v2483 = vadd.f32 %v2404, %v2482
      %2484 = vmatmul.f32.gmra.mxu0 %v2334
      %v2485 = vpop.f32.mrf.mxu0
      %v2486 = vadd.f32 %v2404, %v2485
      %2487 = vmatmul.f32.gmra.mxu0 %v2337
      %v2488 = vpop.f32.mrf.mxu0
      %v2489 = vadd.f32 %v2404, %v2488
      %2490 = vmatmul.f32.gmra.mxu0 %v2340
      %v2491 = vpop.f32.mrf.mxu0
      %v2492 = vadd.f32 %v2404, %v2491
      %2493 = vmatmul.f32.gmra.mxu0 %v2343
      %v2494 = vpop.f32.mrf.mxu0
      %v2495 = vadd.f32 %v2404, %v2494
      %2496 = vmatmul.f32.gmra.mxu0 %v2346
      %v2497 = vpop.f32.mrf.mxu0
      %v2498 = vadd.f32 %v2404, %v2497
      %2499 = vmatmul.f32.gmra.mxu0 %v2349
      %v2500 = vpop.f32.mrf.mxu0
      %v2501 = vadd.f32 %v2404, %v2500
      %2502 = vmatmul.f32.gmra.mxu0 %v2352
      %v2503 = vpop.f32.mrf.mxu0
      %v2504 = vadd.f32 %v2404, %v2503
      %2505 = vmatmul.f32.gmra.mxu0 %v2355
      %v2506 = vpop.f32.mrf.mxu0
      %v2507 = vadd.f32 %v2404, %v2506
      %2508 = vmatmul.f32.gmra.mxu0 %v2358
      %v2509 = vpop.f32.mrf.mxu0
      %v2510 = vadd.f32 %v2404, %v2509
      %2511 = vmatmul.f32.gmra.mxu0 %v2361
      %v2512 = vpop.f32.mrf.mxu0
      %v2513 = vadd.f32 %v2404, %v2512
      %2514 = vmatmul.f32.gmra.mxu0 %v2364
      %v2515 = vpop.f32.mrf.mxu0
      %v2516 = vadd.f32 %v2404, %v2515
      %2517 = vdwg.mxu0
      %2518 = vmatpush.msra.mxu0 %v2398
      %2519 = vmatpush.msra.mxu0 %v2397
      %2520 = vmatpush.msra.mxu0 %v2396
      %2521 = vmatpush.msra.mxu0 %v2395
      %2522 = vmatpush.msra.mxu0 %v2394
      %2523 = vmatpush.msra.mxu0 %v2393
      %2524 = vmatpush.msra.mxu0 %v2392
      %2525 = vmatpush.msra.mxu0 %v2391
      %2526 = vmatpush.msra.mxu0 %v2390
      %2527 = vmatpush.msra.mxu0 %v2389
      %2528 = vmatpush.msra.mxu0 %v2388
      %2529 = vmatpush.msra.mxu0 %v2387
      %2530 = vmatpush.msra.mxu0 %v2386
      %2531 = vmatpush.msra.mxu0 %v2385
      %2532 = vmatpush.msra.mxu0 %v2384
      %2533 = vmatpush.msra.mxu0 %v2383
      %2534 = vmatmul.f32.gmra.mxu0 %v2320
      %v2535 = vpop.f32.mrf.mxu0
      %v2536 = vadd.f32 %v2471, %v2535
      %2537 = vmatmul.f32.gmra.mxu0 %v2323
      %v2538 = vpop.f32.mrf.mxu0
      %v2539 = vadd.f32 %v2474, %v2538
      %2540 = vmatmul.f32.gmra.mxu0 %v2326
      %v2541 = vpop.f32.mrf.mxu0
      %v2542 = vadd.f32 %v2477, %v2541
      %2543 = vmatmul.f32.gmra.mxu0 %v2329
      %v2544 = vpop.f32.mrf.mxu0
      %v2545 = vadd.f32 %v2480, %v2544
      %2546 = vmatmul.f32.gmra.mxu0 %v2332
      %v2547 = vpop.f32.mrf.mxu0
      %v2548 = vadd.f32 %v2483, %v2547
      %2549 = vmatmul.f32.gmra.mxu0 %v2335
      %v2550 = vpop.f32.mrf.mxu0
      %v2551 = vadd.f32 %v2486, %v2550
      %2552 = vmatmul.f32.gmra.mxu0 %v2338
      %v2553 = vpop.f32.mrf.mxu0
      %v2554 = vadd.f32 %v2489, %v2553
      %2555 = vmatmul.f32.gmra.mxu0 %v2341
      %v2556 = vpop.f32.mrf.mxu0
      %v2557 = vadd.f32 %v2492, %v2556
      %2558 = vmatmul.f32.gmra.mxu0 %v2344
      %v2559 = vpop.f32.mrf.mxu0
      %v2560 = vadd.f32 %v2495, %v2559
      %2561 = vmatmul.f32.gmra.mxu0 %v2347
      %v2562 = vpop.f32.mrf.mxu0
      %v2563 = vadd.f32 %v2498, %v2562
      %2564 = vmatmul.f32.gmra.mxu0 %v2350
      %v2565 = vpop.f32.mrf.mxu0
      %v2566 = vadd.f32 %v2501, %v2565
      %2567 = vmatmul.f32.gmra.mxu0 %v2353
      %v2568 = vpop.f32.mrf.mxu0
      %v2569 = vadd.f32 %v2504, %v2568
      %2570 = vmatmul.f32.gmra.mxu0 %v2356
      %v2571 = vpop.f32.mrf.mxu0
      %v2572 = vadd.f32 %v2507, %v2571
      %2573 = vmatmul.f32.gmra.mxu0 %v2359
      %v2574 = vpop.f32.mrf.mxu0
      %v2575 = vadd.f32 %v2510, %v2574
      %2576 = vmatmul.f32.gmra.mxu0 %v2362
      %v2577 = vpop.f32.mrf.mxu0
      %v2578 = vadd.f32 %v2513, %v2577
      %2579 = vmatmul.f32.gmra.mxu0 %v2365
      %v2580 = vpop.f32.mrf.mxu0
      %v2581 = vadd.f32 %v2516, %v2580
      %2582 = vdwg.mxu0
      %2583 = vmatpush.msra.mxu0 0.0
      %2584 = vmatpush.msra.mxu0 0.0
      %2585 = vmatpush.msra.mxu0 0.0
      %2586 = vmatpush.msra.mxu0 0.0
      %2587 = vmatpush.msra.mxu0 0.0
      %2588 = vmatpush.msra.mxu0 0.0
      %2589 = vmatpush.msra.mxu0 0.0
      %2590 = vmatpush.msra.mxu0 0.0
      %2591 = vmatpush.msra.mxu0 0.0
      %2592 = vmatpush.msra.mxu0 0.0
      %2593 = vmatpush.msra.mxu0 0.0
      %2594 = vmatpush.msra.mxu0 0.0
      %2595 = vmatpush.msra.mxu0 %v2402
      %2596 = vmatpush.msra.mxu0 %v2401
      %2597 = vmatpush.msra.mxu0 %v2400
      %2598 = vmatpush.msra.mxu0 %v2399
      %2599 = vmatmul.f32.gmra.mxu0 %v2406
      %v2600 = vpop.f32.mrf.mxu0
      %v2601 = vadd.f32 %v2536, %v2600
      %2602 = vmatmul.f32.gmra.mxu0 %v2409
      %v2603 = vpop.f32.mrf.mxu0
      %v2604 = vadd.f32 %v2539, %v2603
      %2605 = vmatmul.f32.gmra.mxu0 %v2412
      %v2606 = vpop.f32.mrf.mxu0
      %v2607 = vadd.f32 %v2542, %v2606
      %2608 = vmatmul.f32.gmra.mxu0 %v2415
      %v2609 = vpop.f32.mrf.mxu0
      %v2610 = vadd.f32 %v2545, %v2609
      %2611 = vmatmul.f32.gmra.mxu0 %v2418
      %v2612 = vpop.f32.mrf.mxu0
      %v2613 = vadd.f32 %v2548, %v2612
      %2614 = vmatmul.f32.gmra.mxu0 %v2421
      %v2615 = vpop.f32.mrf.mxu0
      %v2616 = vadd.f32 %v2551, %v2615
      %2617 = vmatmul.f32.gmra.mxu0 %v2424
      %v2618 = vpop.f32.mrf.mxu0
      %v2619 = vadd.f32 %v2554, %v2618
      %2620 = vmatmul.f32.gmra.mxu0 %v2427
      %v2621 = vpop.f32.mrf.mxu0
      %v2622 = vadd.f32 %v2557, %v2621
      %2623 = vmatmul.f32.gmra.mxu0 %v2430
      %v2624 = vpop.f32.mrf.mxu0
      %v2625 = vadd.f32 %v2560, %v2624
      %2626 = vmatmul.f32.gmra.mxu0 %v2433
      %v2627 = vpop.f32.mrf.mxu0
      %v2628 = vadd.f32 %v2563, %v2627
      %2629 = vmatmul.f32.gmra.mxu0 %v2436
      %v2630 = vpop.f32.mrf.mxu0
      %v2631 = vadd.f32 %v2566, %v2630
      %2632 = vmatmul.f32.gmra.mxu0 %v2439
      %v2633 = vpop.f32.mrf.mxu0
      %v2634 = vadd.f32 %v2569, %v2633
      %2635 = vmatmul.f32.gmra.mxu0 %v2442
      %v2636 = vpop.f32.mrf.mxu0
      %v2637 = vadd.f32 %v2572, %v2636
      %2638 = vmatmul.f32.gmra.mxu0 %v2445
      %v2639 = vpop.f32.mrf.mxu0
      %v2640 = vadd.f32 %v2575, %v2639
      %2641 = vmatmul.f32.gmra.mxu0 %v2448
      %v2642 = vpop.f32.mrf.mxu0
      %v2643 = vadd.f32 %v2578, %v2642
      %2644 = vmatmul.f32.gmra.mxu0 %v2451
      %v2645 = vpop.f32.mrf.mxu0
      %v2646 = vadd.f32 %v2581, %v2645
      %2647 = vdwg.mxu0
      %v2648 = vld [vmem:[#allocation2 + $0x10] sm:$0xff]
      %v2649 = vld [vmem:[#allocation2 + $0x18] sm:$0xff]
      %v2650 = vld [vmem:[#allocation2 + $0x20] sm:$0xff]
      %v2651 = vld [vmem:[#allocation2 + $0x28] sm:$0xff]
      %v2652 = vld [vmem:[#allocation2 + $0x30] sm:$0xff]
      %v2653 = vld [vmem:[#allocation2 + $0x38] sm:$0xff]
      %v2654 = vld [vmem:[#allocation2 + $0x40] sm:$0xff]
      %v2655 = vld [vmem:[#allocation2 + $0x48] sm:$0xff]
      %v2656 = vld [vmem:[#allocation2 + $0x50] sm:$0xff]
      %v2657 = vld [vmem:[#allocation2 + $0x58] sm:$0xff]
      %v2658 = vld [vmem:[#allocation2 + $0x60] sm:$0xff]
      %v2659 = vld [vmem:[#allocation2 + $0x68] sm:$0xff]
      %v2660 = vld [vmem:[#allocation2 + $0x70] sm:$0xff]
      %v2661 = vld [vmem:[#allocation2 + $0x78] sm:$0xff]
      %v2662 = vld [vmem:[#allocation2 + $0x80] sm:$0xff]
      %v2663 = vld [vmem:[#allocation2 + $0x88] sm:$0xff]
      %v2664 = vadd.f32 %v2601, %v2648
      %v2665 = vadd.f32 %v2604, %v2649
      %v2666 = vadd.f32 %v2607, %v2650
      %v2667 = vadd.f32 %v2610, %v2651
      %v2668 = vadd.f32 %v2613, %v2652
      %v2669 = vadd.f32 %v2616, %v2653
      %v2670 = vadd.f32 %v2619, %v2654
      %v2671 = vadd.f32 %v2622, %v2655
      %v2672 = vadd.f32 %v2625, %v2656
      %v2673 = vadd.f32 %v2628, %v2657
      %v2674 = vadd.f32 %v2631, %v2658
      %v2675 = vadd.f32 %v2634, %v2659
      %v2676 = vadd.f32 %v2637, %v2660
      %v2677 = vadd.f32 %v2640, %v2661
      %v2678 = vadd.f32 %v2643, %v2662
      %v2679 = vadd.f32 %v2646, %v2663
      %v2680 = vmul.f32 %v2664, %v486
      %v2681 = vmul.f32 %v2665, %v491
      %v2682 = vmul.f32 %v2666, %v496
      %v2683 = vmul.f32 %v2667, %v501
      %v2684 = vmul.f32 %v2668, %v506
      %v2685 = vmul.f32 %v2669, %v511
      %v2686 = vmul.f32 %v2670, %v516
      %v2687 = vmul.f32 %v2671, %v521
      %v2688 = vmul.f32 %v2672, %v526
      %v2689 = vmul.f32 %v2673, %v531
      %v2690 = vmul.f32 %v2674, %v536
      %v2691 = vmul.f32 %v2675, %v541
      %v2692 = vmul.f32 %v2676, %v546
      %v2693 = vmul.f32 %v2677, %v551
      %v2694 = vmul.f32 %v2678, %v556
      %v2695 = vmul.f32 %v2679, %v561
      %2696 = vst.msk [vmem:[#allocation2 + $0x10] sm:$0xff] %vm304, %v2680
      %2697 = vst.msk [vmem:[#allocation2 + $0x18] sm:$0xff] %vm304, %v2681
      %2698 = vst.msk [vmem:[#allocation2 + $0x20] sm:$0xff] %vm304, %v2682
      %2699 = vst.msk [vmem:[#allocation2 + $0x28] sm:$0xff] %vm304, %v2683
      %2700 = vst.msk [vmem:[#allocation2 + $0x30] sm:$0xff] %vm304, %v2684
      %2701 = vst.msk [vmem:[#allocation2 + $0x38] sm:$0xff] %vm304, %v2685
      %2702 = vst.msk [vmem:[#allocation2 + $0x40] sm:$0xff] %vm304, %v2686
      %2703 = vst.msk [vmem:[#allocation2 + $0x48] sm:$0xff] %vm304, %v2687
      %2704 = vst.msk [vmem:[#allocation2 + $0x50] sm:$0xff] %vm304, %v2688
      %2705 = vst.msk [vmem:[#allocation2 + $0x58] sm:$0xff] %vm304, %v2689
      %2706 = vst.msk [vmem:[#allocation2 + $0x60] sm:$0xff] %vm304, %v2690
      %2707 = vst.msk [vmem:[#allocation2 + $0x68] sm:$0xff] %vm304, %v2691
      %2708 = vst.msk [vmem:[#allocation2 + $0x70] sm:$0xff] %vm304, %v2692
      %2709 = vst.msk [vmem:[#allocation2 + $0x78] sm:$0xff] %vm304, %v2693
      %2710 = vst.msk [vmem:[#allocation2 + $0x80] sm:$0xff] %vm304, %v2694
      %2711 = vst.msk [vmem:[#allocation2 + $0x88] sm:$0xff] %vm304, %v2695
      %v2712 = vld [vmem:[#allocation2 + $0x5] sm:$0xff]
      %v2713 = vld [vmem:[#allocation2 + $0xd] sm:$0xff]
      %v2714 = vld [vmem:[#allocation2 + $0x15] sm:$0xff]
      %v2715 = vld [vmem:[#allocation2 + $0x1d] sm:$0xff]
      %v2716 = vld [vmem:[#allocation2 + $0x25] sm:$0xff]
      %v2717 = vld [vmem:[#allocation2 + $0x2d] sm:$0xff]
      %v2718 = vld [vmem:[#allocation2 + $0x35] sm:$0xff]
      %v2719 = vld [vmem:[#allocation2 + $0x3d] sm:$0xff]
      %v2720 = vld [vmem:[#allocation2 + $0x45] sm:$0xff]
      %v2721 = vld [vmem:[#allocation2 + $0x4d] sm:$0xff]
      %v2722 = vld [vmem:[#allocation2 + $0x55] sm:$0xff]
      %v2723 = vld [vmem:[#allocation2 + $0x5d] sm:$0xff]
      %v2724 = vld [vmem:[#allocation2 + $0x65] sm:$0xff]
      %v2725 = vld [vmem:[#allocation2 + $0x6d] sm:$0xff]
      %v2726 = vld [vmem:[#allocation2 + $0x75] sm:$0xff]
      %v2727 = vld [vmem:[#allocation2 + $0x7d] sm:$0xff]
      %2728 = vst.msk [vmem:[#allocation4] sm:$0xff] %vm304, %v2712
      %2729 = vst.msk [vmem:[#allocation4 + $0x18] sm:$0xff] %vm304, %v2713
      %2730 = vst.msk [vmem:[#allocation4 + $0x30] sm:$0xff] %vm304, %v2714
      %2731 = vst.msk [vmem:[#allocation4 + $0x48] sm:$0xff] %vm304, %v2715
      %2732 = vst.msk [vmem:[#allocation4 + $0x60] sm:$0xff] %vm304, %v2716
      %2733 = vst.msk [vmem:[#allocation4 + $0x78] sm:$0xff] %vm304, %v2717
      %2734 = vst.msk [vmem:[#allocation4 + $0x90] sm:$0xff] %vm304, %v2718
      %2735 = vst.msk [vmem:[#allocation4 + $0xa8] sm:$0xff] %vm304, %v2719
      %2736 = vst.msk [vmem:[#allocation4 + $0xc0] sm:$0xff] %vm304, %v2720
      %2737 = vst.msk [vmem:[#allocation4 + $0xd8] sm:$0xff] %vm304, %v2721
      %2738 = vst.msk [vmem:[#allocation4 + $0xf0] sm:$0xff] %vm304, %v2722
      %2739 = vst.msk [vmem:[#allocation4 + $0x108] sm:$0xff] %vm304, %v2723
      %2740 = vst.msk [vmem:[#allocation4 + $0x120] sm:$0xff] %vm304, %v2724
      %2741 = vst.msk [vmem:[#allocation4 + $0x138] sm:$0xff] %vm304, %v2725
      %2742 = vst.msk [vmem:[#allocation4 + $0x150] sm:$0xff] %vm304, %v2726
      %2743 = vst.msk [vmem:[#allocation4 + $0x168] sm:$0xff] %vm304, %v2727
      %v2744 = vld [vmem:[#allocation2 + $0x6] sm:$0xff]
      %v2745 = vld [vmem:[#allocation2 + $0xe] sm:$0xff]
      %v2746 = vld [vmem:[#allocation2 + $0x16] sm:$0xff]
      %v2747 = vld [vmem:[#allocation2 + $0x1e] sm:$0xff]
      %v2748 = vld [vmem:[#allocation2 + $0x26] sm:$0xff]
      %v2749 = vld [vmem:[#allocation2 + $0x2e] sm:$0xff]
      %v2750 = vld [vmem:[#allocation2 + $0x36] sm:$0xff]
      %v2751 = vld [vmem:[#allocation2 + $0x3e] sm:$0xff]
      %v2752 = vld [vmem:[#allocation2 + $0x46] sm:$0xff]
      %v2753 = vld [vmem:[#allocation2 + $0x4e] sm:$0xff]
      %v2754 = vld [vmem:[#allocation2 + $0x56] sm:$0xff]
      %v2755 = vld [vmem:[#allocation2 + $0x5e] sm:$0xff]
      %v2756 = vld [vmem:[#allocation2 + $0x66] sm:$0xff]
      %v2757 = vld [vmem:[#allocation2 + $0x6e] sm:$0xff]
      %v2758 = vld [vmem:[#allocation2 + $0x76] sm:$0xff]
      %v2759 = vld [vmem:[#allocation2 + $0x7e] sm:$0xff]
      %2776 = vrot.lane.b32.xlu0 %v2744, 32
      %v2777 = vpop.permute.xlu0 %2776
      %2778 = vrot.lane.b32.xlu0 %v2745, 32
      %v2779 = vpop.permute.xlu0 %2778
      %2780 = vrot.lane.b32.xlu0 %v2746, 32
      %v2781 = vpop.permute.xlu0 %2780
      %2782 = vrot.lane.b32.xlu0 %v2747, 32
      %v2783 = vpop.permute.xlu0 %2782
      %2784 = vrot.lane.b32.xlu0 %v2748, 32
      %v2785 = vpop.permute.xlu0 %2784
      %2786 = vrot.lane.b32.xlu0 %v2749, 32
      %v2787 = vpop.permute.xlu0 %2786
      %2788 = vrot.lane.b32.xlu0 %v2750, 32
      %v2789 = vpop.permute.xlu0 %2788
      %2790 = vrot.lane.b32.xlu0 %v2751, 32
      %v2791 = vpop.permute.xlu0 %2790
      %2792 = vrot.lane.b32.xlu0 %v2752, 32
      %v2793 = vpop.permute.xlu0 %2792
      %2794 = vrot.lane.b32.xlu0 %v2753, 32
      %v2795 = vpop.permute.xlu0 %2794
      %2796 = vrot.lane.b32.xlu0 %v2754, 32
      %v2797 = vpop.permute.xlu0 %2796
      %2798 = vrot.lane.b32.xlu0 %v2755, 32
      %v2799 = vpop.permute.xlu0 %2798
      %2800 = vrot.lane.b32.xlu0 %v2756, 32
      %v2801 = vpop.permute.xlu0 %2800
      %2802 = vrot.lane.b32.xlu0 %v2757, 32
      %v2803 = vpop.permute.xlu0 %2802
      %2804 = vrot.lane.b32.xlu0 %v2758, 32
      %v2805 = vpop.permute.xlu0 %2804
      %2806 = vrot.lane.b32.xlu0 %v2759, 32
      %v2807 = vpop.permute.xlu0 %2806
      %2824 = vst.msk [vmem:[#allocation4] sm:$0xff] %vm707, %v2777
      %2825 = vst.msk [vmem:[#allocation4 + $0x18] sm:$0xff] %vm707, %v2779
      %2826 = vst.msk [vmem:[#allocation4 + $0x30] sm:$0xff] %vm707, %v2781
      %2827 = vst.msk [vmem:[#allocation4 + $0x48] sm:$0xff] %vm707, %v2783
      %2828 = vst.msk [vmem:[#allocation4 + $0x60] sm:$0xff] %vm707, %v2785
      %2829 = vst.msk [vmem:[#allocation4 + $0x78] sm:$0xff] %vm707, %v2787
      %2830 = vst.msk [vmem:[#allocation4 + $0x90] sm:$0xff] %vm707, %v2789
      %2831 = vst.msk [vmem:[#allocation4 + $0xa8] sm:$0xff] %vm707, %v2791
      %2832 = vst.msk [vmem:[#allocation4 + $0xc0] sm:$0xff] %vm707, %v2793
      %2833 = vst.msk [vmem:[#allocation4 + $0xd8] sm:$0xff] %vm707, %v2795
      %2834 = vst.msk [vmem:[#allocation4 + $0xf0] sm:$0xff] %vm707, %v2797
      %2835 = vst.msk [vmem:[#allocation4 + $0x108] sm:$0xff] %vm707, %v2799
      %2836 = vst.msk [vmem:[#allocation4 + $0x120] sm:$0xff] %vm707, %v2801
      %2837 = vst.msk [vmem:[#allocation4 + $0x138] sm:$0xff] %vm707, %v2803
      %2838 = vst.msk [vmem:[#allocation4 + $0x150] sm:$0xff] %vm707, %v2805
      %2839 = vst.msk [vmem:[#allocation4 + $0x168] sm:$0xff] %vm707, %v2807
      %v2840 = vld [vmem:[#allocation2 + $0x7] sm:$0xff]
      %v2841 = vld [vmem:[#allocation2 + $0xf] sm:$0xff]
      %v2842 = vld [vmem:[#allocation2 + $0x17] sm:$0xff]
      %v2843 = vld [vmem:[#allocation2 + $0x1f] sm:$0xff]
      %v2844 = vld [vmem:[#allocation2 + $0x27] sm:$0xff]
      %v2845 = vld [vmem:[#allocation2 + $0x2f] sm:$0xff]
      %v2846 = vld [vmem:[#allocation2 + $0x37] sm:$0xff]
      %v2847 = vld [vmem:[#allocation2 + $0x3f] sm:$0xff]
      %v2848 = vld [vmem:[#allocation2 + $0x47] sm:$0xff]
      %v2849 = vld [vmem:[#allocation2 + $0x4f] sm:$0xff]
      %v2850 = vld [vmem:[#allocation2 + $0x57] sm:$0xff]
      %v2851 = vld [vmem:[#allocation2 + $0x5f] sm:$0xff]
      %v2852 = vld [vmem:[#allocation2 + $0x67] sm:$0xff]
      %v2853 = vld [vmem:[#allocation2 + $0x6f] sm:$0xff]
      %v2854 = vld [vmem:[#allocation2 + $0x77] sm:$0xff]
      %v2855 = vld [vmem:[#allocation2 + $0x7f] sm:$0xff]
      %2872 = vrot.lane.b32.xlu0 %v2840, 64
      %v2873 = vpop.permute.xlu0 %2872
      %2874 = vrot.lane.b32.xlu0 %v2841, 64
      %v2875 = vpop.permute.xlu0 %2874
      %2876 = vrot.lane.b32.xlu0 %v2842, 64
      %v2877 = vpop.permute.xlu0 %2876
      %2878 = vrot.lane.b32.xlu0 %v2843, 64
      %v2879 = vpop.permute.xlu0 %2878
      %2880 = vrot.lane.b32.xlu0 %v2844, 64
      %v2881 = vpop.permute.xlu0 %2880
      %2882 = vrot.lane.b32.xlu0 %v2845, 64
      %v2883 = vpop.permute.xlu0 %2882
      %2884 = vrot.lane.b32.xlu0 %v2846, 64
      %v2885 = vpop.permute.xlu0 %2884
      %2886 = vrot.lane.b32.xlu0 %v2847, 64
      %v2887 = vpop.permute.xlu0 %2886
      %2888 = vrot.lane.b32.xlu0 %v2848, 64
      %v2889 = vpop.permute.xlu0 %2888
      %2890 = vrot.lane.b32.xlu0 %v2849, 64
      %v2891 = vpop.permute.xlu0 %2890
      %2892 = vrot.lane.b32.xlu0 %v2850, 64
      %v2893 = vpop.permute.xlu0 %2892
      %2894 = vrot.lane.b32.xlu0 %v2851, 64
      %v2895 = vpop.permute.xlu0 %2894
      %2896 = vrot.lane.b32.xlu0 %v2852, 64
      %v2897 = vpop.permute.xlu0 %2896
      %2898 = vrot.lane.b32.xlu0 %v2853, 64
      %v2899 = vpop.permute.xlu0 %2898
      %2900 = vrot.lane.b32.xlu0 %v2854, 64
      %v2901 = vpop.permute.xlu0 %2900
      %2902 = vrot.lane.b32.xlu0 %v2855, 64
      %v2903 = vpop.permute.xlu0 %2902
      %2920 = vst.msk [vmem:[#allocation4] sm:$0xff] %vm804, %v2873
      %2921 = vst.msk [vmem:[#allocation4 + $0x18] sm:$0xff] %vm804, %v2875
      %2922 = vst.msk [vmem:[#allocation4 + $0x30] sm:$0xff] %vm804, %v2877
      %2923 = vst.msk [vmem:[#allocation4 + $0x48] sm:$0xff] %vm804, %v2879
      %2924 = vst.msk [vmem:[#allocation4 + $0x60] sm:$0xff] %vm804, %v2881
      %2925 = vst.msk [vmem:[#allocation4 + $0x78] sm:$0xff] %vm804, %v2883
      %2926 = vst.msk [vmem:[#allocation4 + $0x90] sm:$0xff] %vm804, %v2885
      %2927 = vst.msk [vmem:[#allocation4 + $0xa8] sm:$0xff] %vm804, %v2887
      %2928 = vst.msk [vmem:[#allocation4 + $0xc0] sm:$0xff] %vm804, %v2889
      %2929 = vst.msk [vmem:[#allocation4 + $0xd8] sm:$0xff] %vm804, %v2891
      %2930 = vst.msk [vmem:[#allocation4 + $0xf0] sm:$0xff] %vm804, %v2893
      %2931 = vst.msk [vmem:[#allocation4 + $0x108] sm:$0xff] %vm804, %v2895
      %2932 = vst.msk [vmem:[#allocation4 + $0x120] sm:$0xff] %vm804, %v2897
      %2933 = vst.msk [vmem:[#allocation4 + $0x138] sm:$0xff] %vm804, %v2899
      %2934 = vst.msk [vmem:[#allocation4 + $0x150] sm:$0xff] %vm804, %v2901
      %2935 = vst.msk [vmem:[#allocation4 + $0x168] sm:$0xff] %vm804, %v2903
      %v2936 = vld [vmem:[#allocation2 + $0xf] sm:$0xff]
      %v2937 = vld [vmem:[#allocation2 + $0x17] sm:$0xff]
      %v2938 = vld [vmem:[#allocation2 + $0x1f] sm:$0xff]
      %v2939 = vld [vmem:[#allocation2 + $0x27] sm:$0xff]
      %v2940 = vld [vmem:[#allocation2 + $0x2f] sm:$0xff]
      %v2941 = vld [vmem:[#allocation2 + $0x37] sm:$0xff]
      %v2942 = vld [vmem:[#allocation2 + $0x3f] sm:$0xff]
      %v2943 = vld [vmem:[#allocation2 + $0x47] sm:$0xff]
      %v2944 = vld [vmem:[#allocation2 + $0x4f] sm:$0xff]
      %v2945 = vld [vmem:[#allocation2 + $0x57] sm:$0xff]
      %v2946 = vld [vmem:[#allocation2 + $0x5f] sm:$0xff]
      %v2947 = vld [vmem:[#allocation2 + $0x67] sm:$0xff]
      %v2948 = vld [vmem:[#allocation2 + $0x6f] sm:$0xff]
      %v2949 = vld [vmem:[#allocation2 + $0x77] sm:$0xff]
      %v2950 = vld [vmem:[#allocation2 + $0x7f] sm:$0xff]
      %v2951 = vld [vmem:[#allocation2 + $0x87] sm:$0xff]
      %2968 = vrot.lane.b32.xlu0 %v2936, 96
      %v2969 = vpop.permute.xlu0 %2968
      %2970 = vrot.lane.b32.xlu0 %v2937, 96
      %v2971 = vpop.permute.xlu0 %2970
      %2972 = vrot.lane.b32.xlu0 %v2938, 96
      %v2973 = vpop.permute.xlu0 %2972
      %2974 = vrot.lane.b32.xlu0 %v2939, 96
      %v2975 = vpop.permute.xlu0 %2974
      %2976 = vrot.lane.b32.xlu0 %v2940, 96
      %v2977 = vpop.permute.xlu0 %2976
      %2978 = vrot.lane.b32.xlu0 %v2941, 96
      %v2979 = vpop.permute.xlu0 %2978
      %2980 = vrot.lane.b32.xlu0 %v2942, 96
      %v2981 = vpop.permute.xlu0 %2980
      %2982 = vrot.lane.b32.xlu0 %v2943, 96
      %v2983 = vpop.permute.xlu0 %2982
      %2984 = vrot.lane.b32.xlu0 %v2944, 96
      %v2985 = vpop.permute.xlu0 %2984
      %2986 = vrot.lane.b32.xlu0 %v2945, 96
      %v2987 = vpop.permute.xlu0 %2986
      %2988 = vrot.lane.b32.xlu0 %v2946, 96
      %v2989 = vpop.permute.xlu0 %2988
      %2990 = vrot.lane.b32.xlu0 %v2947, 96
      %v2991 = vpop.permute.xlu0 %2990
      %2992 = vrot.lane.b32.xlu0 %v2948, 96
      %v2993 = vpop.permute.xlu0 %2992
      %2994 = vrot.lane.b32.xlu0 %v2949, 96
      %v2995 = vpop.permute.xlu0 %2994
      %2996 = vrot.lane.b32.xlu0 %v2950, 96
      %v2997 = vpop.permute.xlu0 %2996
      %2998 = vrot.lane.b32.xlu0 %v2951, 96
      %v2999 = vpop.permute.xlu0 %2998
      %3016 = vst.msk [vmem:[#allocation4] sm:$0xff] %vm901, %v2969
      %3017 = vst.msk [vmem:[#allocation4 + $0x18] sm:$0xff] %vm901, %v2971
      %3018 = vst.msk [vmem:[#allocation4 + $0x30] sm:$0xff] %vm901, %v2973
      %3019 = vst.msk [vmem:[#allocation4 + $0x48] sm:$0xff] %vm901, %v2975
      %3020 = vst.msk [vmem:[#allocation4 + $0x60] sm:$0xff] %vm901, %v2977
      %3021 = vst.msk [vmem:[#allocation4 + $0x78] sm:$0xff] %vm901, %v2979
      %3022 = vst.msk [vmem:[#allocation4 + $0x90] sm:$0xff] %vm901, %v2981
      %3023 = vst.msk [vmem:[#allocation4 + $0xa8] sm:$0xff] %vm901, %v2983
      %3024 = vst.msk [vmem:[#allocation4 + $0xc0] sm:$0xff] %vm901, %v2985
      %3025 = vst.msk [vmem:[#allocation4 + $0xd8] sm:$0xff] %vm901, %v2987
      %3026 = vst.msk [vmem:[#allocation4 + $0xf0] sm:$0xff] %vm901, %v2989
      %3027 = vst.msk [vmem:[#allocation4 + $0x108] sm:$0xff] %vm901, %v2991
      %3028 = vst.msk [vmem:[#allocation4 + $0x120] sm:$0xff] %vm901, %v2993
      %3029 = vst.msk [vmem:[#allocation4 + $0x138] sm:$0xff] %vm901, %v2995
      %3030 = vst.msk [vmem:[#allocation4 + $0x150] sm:$0xff] %vm901, %v2997
      %3031 = vst.msk [vmem:[#allocation4 + $0x168] sm:$0xff] %vm901, %v2999
      %v3032 = vld [vmem:[#allocation2 + $0x10] sm:$0xff]
      %v3033 = vld [vmem:[#allocation2 + $0x18] sm:$0xff]
      %v3034 = vld [vmem:[#allocation2 + $0x20] sm:$0xff]
      %v3035 = vld [vmem:[#allocation2 + $0x28] sm:$0xff]
      %v3036 = vld [vmem:[#allocation2 + $0x30] sm:$0xff]
      %v3037 = vld [vmem:[#allocation2 + $0x38] sm:$0xff]
      %v3038 = vld [vmem:[#allocation2 + $0x40] sm:$0xff]
      %v3039 = vld [vmem:[#allocation2 + $0x48] sm:$0xff]
      %v3040 = vld [vmem:[#allocation2 + $0x50] sm:$0xff]
      %v3041 = vld [vmem:[#allocation2 + $0x58] sm:$0xff]
      %v3042 = vld [vmem:[#allocation2 + $0x60] sm:$0xff]
      %v3043 = vld [vmem:[#allocation2 + $0x68] sm:$0xff]
      %v3044 = vld [vmem:[#allocation2 + $0x70] sm:$0xff]
      %v3045 = vld [vmem:[#allocation2 + $0x78] sm:$0xff]
      %v3046 = vld [vmem:[#allocation2 + $0x80] sm:$0xff]
      %v3047 = vld [vmem:[#allocation2 + $0x88] sm:$0xff]
      %3048 = vst.msk [vmem:[#allocation4 + $0x8] sm:$0xff] %vm304, %v3032
      %3049 = vst.msk [vmem:[#allocation4 + $0x20] sm:$0xff] %vm304, %v3033
      %3050 = vst.msk [vmem:[#allocation4 + $0x38] sm:$0xff] %vm304, %v3034
      %3051 = vst.msk [vmem:[#allocation4 + $0x50] sm:$0xff] %vm304, %v3035
      %3052 = vst.msk [vmem:[#allocation4 + $0x68] sm:$0xff] %vm304, %v3036
      %3053 = vst.msk [vmem:[#allocation4 + $0x80] sm:$0xff] %vm304, %v3037
      %3054 = vst.msk [vmem:[#allocation4 + $0x98] sm:$0xff] %vm304, %v3038
      %3055 = vst.msk [vmem:[#allocation4 + $0xb0] sm:$0xff] %vm304, %v3039
      %3056 = vst.msk [vmem:[#allocation4 + $0xc8] sm:$0xff] %vm304, %v3040
      %3057 = vst.msk [vmem:[#allocation4 + $0xe0] sm:$0xff] %vm304, %v3041
      %3058 = vst.msk [vmem:[#allocation4 + $0xf8] sm:$0xff] %vm304, %v3042
      %3059 = vst.msk [vmem:[#allocation4 + $0x110] sm:$0xff] %vm304, %v3043
      %3060 = vst.msk [vmem:[#allocation4 + $0x128] sm:$0xff] %vm304, %v3044
      %3061 = vst.msk [vmem:[#allocation4 + $0x140] sm:$0xff] %vm304, %v3045
      %3062 = vst.msk [vmem:[#allocation4 + $0x158] sm:$0xff] %vm304, %v3046
      %3063 = vst.msk [vmem:[#allocation4 + $0x170] sm:$0xff] %vm304, %v3047
      %v3064 = vld [vmem:[#allocation2 + $0x11] sm:$0xff]
      %v3065 = vld [vmem:[#allocation2 + $0x19] sm:$0xff]
      %v3066 = vld [vmem:[#allocation2 + $0x21] sm:$0xff]
      %v3067 = vld [vmem:[#allocation2 + $0x29] sm:$0xff]
      %v3068 = vld [vmem:[#allocation2 + $0x31] sm:$0xff]
      %v3069 = vld [vmem:[#allocation2 + $0x39] sm:$0xff]
      %v3070 = vld [vmem:[#allocation2 + $0x41] sm:$0xff]
      %v3071 = vld [vmem:[#allocation2 + $0x49] sm:$0xff]
      %v3072 = vld [vmem:[#allocation2 + $0x51] sm:$0xff]
      %v3073 = vld [vmem:[#allocation2 + $0x59] sm:$0xff]
      %v3074 = vld [vmem:[#allocation2 + $0x61] sm:$0xff]
      %v3075 = vld [vmem:[#allocation2 + $0x69] sm:$0xff]
      %v3076 = vld [vmem:[#allocation2 + $0x71] sm:$0xff]
      %v3077 = vld [vmem:[#allocation2 + $0x79] sm:$0xff]
      %v3078 = vld [vmem:[#allocation2 + $0x81] sm:$0xff]
      %v3079 = vld [vmem:[#allocation2 + $0x89] sm:$0xff]
      %3096 = vrot.lane.b32.xlu0 %v3064, 32
      %v3097 = vpop.permute.xlu0 %3096
      %3098 = vrot.lane.b32.xlu0 %v3065, 32
      %v3099 = vpop.permute.xlu0 %3098
      %3100 = vrot.lane.b32.xlu0 %v3066, 32
      %v3101 = vpop.permute.xlu0 %3100
      %3102 = vrot.lane.b32.xlu0 %v3067, 32
      %v3103 = vpop.permute.xlu0 %3102
      %3104 = vrot.lane.b32.xlu0 %v3068, 32
      %v3105 = vpop.permute.xlu0 %3104
      %3106 = vrot.lane.b32.xlu0 %v3069, 32
      %v3107 = vpop.permute.xlu0 %3106
      %3108 = vrot.lane.b32.xlu0 %v3070, 32
      %v3109 = vpop.permute.xlu0 %3108
      %3110 = vrot.lane.b32.xlu0 %v3071, 32
      %v3111 = vpop.permute.xlu0 %3110
      %3112 = vrot.lane.b32.xlu0 %v3072, 32
      %v3113 = vpop.permute.xlu0 %3112
      %3114 = vrot.lane.b32.xlu0 %v3073, 32
      %v3115 = vpop.permute.xlu0 %3114
      %3116 = vrot.lane.b32.xlu0 %v3074, 32
      %v3117 = vpop.permute.xlu0 %3116
      %3118 = vrot.lane.b32.xlu0 %v3075, 32
      %v3119 = vpop.permute.xlu0 %3118
      %3120 = vrot.lane.b32.xlu0 %v3076, 32
      %v3121 = vpop.permute.xlu0 %3120
      %3122 = vrot.lane.b32.xlu0 %v3077, 32
      %v3123 = vpop.permute.xlu0 %3122
      %3124 = vrot.lane.b32.xlu0 %v3078, 32
      %v3125 = vpop.permute.xlu0 %3124
      %3126 = vrot.lane.b32.xlu0 %v3079, 32
      %v3127 = vpop.permute.xlu0 %3126
      %3144 = vst.msk [vmem:[#allocation4 + $0x8] sm:$0xff] %vm707, %v3097
      %3145 = vst.msk [vmem:[#allocation4 + $0x20] sm:$0xff] %vm707, %v3099
      %3146 = vst.msk [vmem:[#allocation4 + $0x38] sm:$0xff] %vm707, %v3101
      %3147 = vst.msk [vmem:[#allocation4 + $0x50] sm:$0xff] %vm707, %v3103
      %3148 = vst.msk [vmem:[#allocation4 + $0x68] sm:$0xff] %vm707, %v3105
      %3149 = vst.msk [vmem:[#allocation4 + $0x80] sm:$0xff] %vm707, %v3107
      %3150 = vst.msk [vmem:[#allocation4 + $0x98] sm:$0xff] %vm707, %v3109
      %3151 = vst.msk [vmem:[#allocation4 + $0xb0] sm:$0xff] %vm707, %v3111
      %3152 = vst.msk [vmem:[#allocation4 + $0xc8] sm:$0xff] %vm707, %v3113
      %3153 = vst.msk [vmem:[#allocation4 + $0xe0] sm:$0xff] %vm707, %v3115
      %3154 = vst.msk [vmem:[#allocation4 + $0xf8] sm:$0xff] %vm707, %v3117
      %3155 = vst.msk [vmem:[#allocation4 + $0x110] sm:$0xff] %vm707, %v3119
      %3156 = vst.msk [vmem:[#allocation4 + $0x128] sm:$0xff] %vm707, %v3121
      %3157 = vst.msk [vmem:[#allocation4 + $0x140] sm:$0xff] %vm707, %v3123
      %3158 = vst.msk [vmem:[#allocation4 + $0x158] sm:$0xff] %vm707, %v3125
      %3159 = vst.msk [vmem:[#allocation4 + $0x170] sm:$0xff] %vm707, %v3127
      %v3160 = vld [vmem:[#allocation2 + $0x19] sm:$0xff]
      %v3161 = vld [vmem:[#allocation2 + $0x21] sm:$0xff]
      %v3162 = vld [vmem:[#allocation2 + $0x29] sm:$0xff]
      %v3163 = vld [vmem:[#allocation2 + $0x31] sm:$0xff]
      %v3164 = vld [vmem:[#allocation2 + $0x39] sm:$0xff]
      %v3165 = vld [vmem:[#allocation2 + $0x41] sm:$0xff]
      %v3166 = vld [vmem:[#allocation2 + $0x49] sm:$0xff]
      %v3167 = vld [vmem:[#allocation2 + $0x51] sm:$0xff]
      %v3168 = vld [vmem:[#allocation2 + $0x59] sm:$0xff]
      %v3169 = vld [vmem:[#allocation2 + $0x61] sm:$0xff]
      %v3170 = vld [vmem:[#allocation2 + $0x69] sm:$0xff]
      %v3171 = vld [vmem:[#allocation2 + $0x71] sm:$0xff]
      %v3172 = vld [vmem:[#allocation2 + $0x79] sm:$0xff]
      %v3173 = vld [vmem:[#allocation2 + $0x81] sm:$0xff]
      %v3174 = vld [vmem:[#allocation2 + $0x89] sm:$0xff]
      %v3175 = vld [vmem:[#allocation2 + $0x91] sm:$0xff]
      %3192 = vrot.lane.b32.xlu0 %v3160, 64
      %v3193 = vpop.permute.xlu0 %3192
      %3194 = vrot.lane.b32.xlu0 %v3161, 64
      %v3195 = vpop.permute.xlu0 %3194
      %3196 = vrot.lane.b32.xlu0 %v3162, 64
      %v3197 = vpop.permute.xlu0 %3196
      %3198 = vrot.lane.b32.xlu0 %v3163, 64
      %v3199 = vpop.permute.xlu0 %3198
      %3200 = vrot.lane.b32.xlu0 %v3164, 64
      %v3201 = vpop.permute.xlu0 %3200
      %3202 = vrot.lane.b32.xlu0 %v3165, 64
      %v3203 = vpop.permute.xlu0 %3202
      %3204 = vrot.lane.b32.xlu0 %v3166, 64
      %v3205 = vpop.permute.xlu0 %3204
      %3206 = vrot.lane.b32.xlu0 %v3167, 64
      %v3207 = vpop.permute.xlu0 %3206
      %3208 = vrot.lane.b32.xlu0 %v3168, 64
      %v3209 = vpop.permute.xlu0 %3208
      %3210 = vrot.lane.b32.xlu0 %v3169, 64
      %v3211 = vpop.permute.xlu0 %3210
      %3212 = vrot.lane.b32.xlu0 %v3170, 64
      %v3213 = vpop.permute.xlu0 %3212
      %3214 = vrot.lane.b32.xlu0 %v3171, 64
      %v3215 = vpop.permute.xlu0 %3214
      %3216 = vrot.lane.b32.xlu0 %v3172, 64
      %v3217 = vpop.permute.xlu0 %3216
      %3218 = vrot.lane.b32.xlu0 %v3173, 64
      %v3219 = vpop.permute.xlu0 %3218
      %3220 = vrot.lane.b32.xlu0 %v3174, 64
      %v3221 = vpop.permute.xlu0 %3220
      %3222 = vrot.lane.b32.xlu0 %v3175, 64
      %v3223 = vpop.permute.xlu0 %3222
      %3240 = vst.msk [vmem:[#allocation4 + $0x8] sm:$0xff] %vm804, %v3193
      %3241 = vst.msk [vmem:[#allocation4 + $0x20] sm:$0xff] %vm804, %v3195
      %3242 = vst.msk [vmem:[#allocation4 + $0x38] sm:$0xff] %vm804, %v3197
      %3243 = vst.msk [vmem:[#allocation4 + $0x50] sm:$0xff] %vm804, %v3199
      %3244 = vst.msk [vmem:[#allocation4 + $0x68] sm:$0xff] %vm804, %v3201
      %3245 = vst.msk [vmem:[#allocation4 + $0x80] sm:$0xff] %vm804, %v3203
      %3246 = vst.msk [vmem:[#allocation4 + $0x98] sm:$0xff] %vm804, %v3205
      %3247 = vst.msk [vmem:[#allocation4 + $0xb0] sm:$0xff] %vm804, %v3207
      %3248 = vst.msk [vmem:[#allocation4 + $0xc8] sm:$0xff] %vm804, %v3209
      %3249 = vst.msk [vmem:[#allocation4 + $0xe0] sm:$0xff] %vm804, %v3211
      %3250 = vst.msk [vmem:[#allocation4 + $0xf8] sm:$0xff] %vm804, %v3213
      %3251 = vst.msk [vmem:[#allocation4 + $0x110] sm:$0xff] %vm804, %v3215
      %3252 = vst.msk [vmem:[#allocation4 + $0x128] sm:$0xff] %vm804, %v3217
      %3253 = vst.msk [vmem:[#allocation4 + $0x140] sm:$0xff] %vm804, %v3219
      %3254 = vst.msk [vmem:[#allocation4 + $0x158] sm:$0xff] %vm804, %v3221
      %3255 = vst.msk [vmem:[#allocation4 + $0x170] sm:$0xff] %vm804, %v3223
      %v3256 = vld [vmem:[#allocation2 + $0x1a] sm:$0xff]
      %v3257 = vld [vmem:[#allocation2 + $0x22] sm:$0xff]
      %v3258 = vld [vmem:[#allocation2 + $0x2a] sm:$0xff]
      %v3259 = vld [vmem:[#allocation2 + $0x32] sm:$0xff]
      %v3260 = vld [vmem:[#allocation2 + $0x3a] sm:$0xff]
      %v3261 = vld [vmem:[#allocation2 + $0x42] sm:$0xff]
      %v3262 = vld [vmem:[#allocation2 + $0x4a] sm:$0xff]
      %v3263 = vld [vmem:[#allocation2 + $0x52] sm:$0xff]
      %v3264 = vld [vmem:[#allocation2 + $0x5a] sm:$0xff]
      %v3265 = vld [vmem:[#allocation2 + $0x62] sm:$0xff]
      %v3266 = vld [vmem:[#allocation2 + $0x6a] sm:$0xff]
      %v3267 = vld [vmem:[#allocation2 + $0x72] sm:$0xff]
      %v3268 = vld [vmem:[#allocation2 + $0x7a] sm:$0xff]
      %v3269 = vld [vmem:[#allocation2 + $0x82] sm:$0xff]
      %v3270 = vld [vmem:[#allocation2 + $0x8a] sm:$0xff]
      %v3271 = vld [vmem:[#allocation2 + $0x92] sm:$0xff]
      %3288 = vrot.lane.b32.xlu0 %v3256, 96
      %v3289 = vpop.permute.xlu0 %3288
      %3290 = vrot.lane.b32.xlu0 %v3257, 96
      %v3291 = vpop.permute.xlu0 %3290
      %3292 = vrot.lane.b32.xlu0 %v3258, 96
      %v3293 = vpop.permute.xlu0 %3292
      %3294 = vrot.lane.b32.xlu0 %v3259, 96
      %v3295 = vpop.permute.xlu0 %3294
      %3296 = vrot.lane.b32.xlu0 %v3260, 96
      %v3297 = vpop.permute.xlu0 %3296
      %3298 = vrot.lane.b32.xlu0 %v3261, 96
      %v3299 = vpop.permute.xlu0 %3298
      %3300 = vrot.lane.b32.xlu0 %v3262, 96
      %v3301 = vpop.permute.xlu0 %3300
      %3302 = vrot.lane.b32.xlu0 %v3263, 96
      %v3303 = vpop.permute.xlu0 %3302
      %3304 = vrot.lane.b32.xlu0 %v3264, 96
      %v3305 = vpop.permute.xlu0 %3304
      %3306 = vrot.lane.b32.xlu0 %v3265, 96
      %v3307 = vpop.permute.xlu0 %3306
      %3308 = vrot.lane.b32.xlu0 %v3266, 96
      %v3309 = vpop.permute.xlu0 %3308
      %3310 = vrot.lane.b32.xlu0 %v3267, 96
      %v3311 = vpop.permute.xlu0 %3310
      %3312 = vrot.lane.b32.xlu0 %v3268, 96
      %v3313 = vpop.permute.xlu0 %3312
      %3314 = vrot.lane.b32.xlu0 %v3269, 96
      %v3315 = vpop.permute.xlu0 %3314
      %3316 = vrot.lane.b32.xlu0 %v3270, 96
      %v3317 = vpop.permute.xlu0 %3316
      %3318 = vrot.lane.b32.xlu0 %v3271, 96
      %v3319 = vpop.permute.xlu0 %3318
      %3336 = vst.msk [vmem:[#allocation4 + $0x8] sm:$0xff] %vm901, %v3289
      %3337 = vst.msk [vmem:[#allocation4 + $0x20] sm:$0xff] %vm901, %v3291
      %3338 = vst.msk [vmem:[#allocation4 + $0x38] sm:$0xff] %vm901, %v3293
      %3339 = vst.msk [vmem:[#allocation4 + $0x50] sm:$0xff] %vm901, %v3295
      %3340 = vst.msk [vmem:[#allocation4 + $0x68] sm:$0xff] %vm901, %v3297
      %3341 = vst.msk [vmem:[#allocation4 + $0x80] sm:$0xff] %vm901, %v3299
      %3342 = vst.msk [vmem:[#allocation4 + $0x98] sm:$0xff] %vm901, %v3301
      %3343 = vst.msk [vmem:[#allocation4 + $0xb0] sm:$0xff] %vm901, %v3303
      %3344 = vst.msk [vmem:[#allocation4 + $0xc8] sm:$0xff] %vm901, %v3305
      %3345 = vst.msk [vmem:[#allocation4 + $0xe0] sm:$0xff] %vm901, %v3307
      %3346 = vst.msk [vmem:[#allocation4 + $0xf8] sm:$0xff] %vm901, %v3309
      %3347 = vst.msk [vmem:[#allocation4 + $0x110] sm:$0xff] %vm901, %v3311
      %3348 = vst.msk [vmem:[#allocation4 + $0x128] sm:$0xff] %vm901, %v3313
      %3349 = vst.msk [vmem:[#allocation4 + $0x140] sm:$0xff] %vm901, %v3315
      %3350 = vst.msk [vmem:[#allocation4 + $0x158] sm:$0xff] %vm901, %v3317
      %3351 = vst.msk [vmem:[#allocation4 + $0x170] sm:$0xff] %vm901, %v3319
      %v3352 = vld [vmem:[#allocation2 + $0x1b] sm:$0xff]
      %v3353 = vld [vmem:[#allocation2 + $0x23] sm:$0xff]
      %v3354 = vld [vmem:[#allocation2 + $0x2b] sm:$0xff]
      %v3355 = vld [vmem:[#allocation2 + $0x33] sm:$0xff]
      %v3356 = vld [vmem:[#allocation2 + $0x3b] sm:$0xff]
      %v3357 = vld [vmem:[#allocation2 + $0x43] sm:$0xff]
      %v3358 = vld [vmem:[#allocation2 + $0x4b] sm:$0xff]
      %v3359 = vld [vmem:[#allocation2 + $0x53] sm:$0xff]
      %v3360 = vld [vmem:[#allocation2 + $0x5b] sm:$0xff]
      %v3361 = vld [vmem:[#allocation2 + $0x63] sm:$0xff]
      %v3362 = vld [vmem:[#allocation2 + $0x6b] sm:$0xff]
      %v3363 = vld [vmem:[#allocation2 + $0x73] sm:$0xff]
      %v3364 = vld [vmem:[#allocation2 + $0x7b] sm:$0xff]
      %v3365 = vld [vmem:[#allocation2 + $0x83] sm:$0xff]
      %v3366 = vld [vmem:[#allocation2 + $0x8b] sm:$0xff]
      %v3367 = vld [vmem:[#allocation2 + $0x93] sm:$0xff]
      %3368 = vst.msk [vmem:[#allocation4 + $0x10] sm:$0xff] %vm304, %v3352
      %3369 = vst.msk [vmem:[#allocation4 + $0x28] sm:$0xff] %vm304, %v3353
      %3370 = vst.msk [vmem:[#allocation4 + $0x40] sm:$0xff] %vm304, %v3354
      %3371 = vst.msk [vmem:[#allocation4 + $0x58] sm:$0xff] %vm304, %v3355
      %3372 = vst.msk [vmem:[#allocation4 + $0x70] sm:$0xff] %vm304, %v3356
      %3373 = vst.msk [vmem:[#allocation4 + $0x88] sm:$0xff] %vm304, %v3357
      %3374 = vst.msk [vmem:[#allocation4 + $0xa0] sm:$0xff] %vm304, %v3358
      %3375 = vst.msk [vmem:[#allocation4 + $0xb8] sm:$0xff] %vm304, %v3359
      %3376 = vst.msk [vmem:[#allocation4 + $0xd0] sm:$0xff] %vm304, %v3360
      %3377 = vst.msk [vmem:[#allocation4 + $0xe8] sm:$0xff] %vm304, %v3361
      %3378 = vst.msk [vmem:[#allocation4 + $0x100] sm:$0xff] %vm304, %v3362
      %3379 = vst.msk [vmem:[#allocation4 + $0x118] sm:$0xff] %vm304, %v3363
      %3380 = vst.msk [vmem:[#allocation4 + $0x130] sm:$0xff] %vm304, %v3364
      %3381 = vst.msk [vmem:[#allocation4 + $0x148] sm:$0xff] %vm304, %v3365
      %3382 = vst.msk [vmem:[#allocation4 + $0x160] sm:$0xff] %vm304, %v3366
      %3383 = vst.msk [vmem:[#allocation4 + $0x178] sm:$0xff] %vm304, %v3367
      %v3384 = vld [vmem:[#allocation4] sm:$0xff]
      %v3385 = vld [vmem:[#allocation4 + $0x8] sm:$0xff]
      %v3386 = vld [vmem:[#allocation4 + $0x10] sm:$0xff]
      %v3387 = vld [vmem:[#allocation4 + $0x18] sm:$0xff]
      %v3388 = vld [vmem:[#allocation4 + $0x20] sm:$0xff]
      %v3389 = vld [vmem:[#allocation4 + $0x28] sm:$0xff]
      %v3390 = vld [vmem:[#allocation4 + $0x30] sm:$0xff]
      %v3391 = vld [vmem:[#allocation4 + $0x38] sm:$0xff]
      %v3392 = vld [vmem:[#allocation4 + $0x40] sm:$0xff]
      %v3393 = vld [vmem:[#allocation4 + $0x48] sm:$0xff]
      %v3394 = vld [vmem:[#allocation4 + $0x50] sm:$0xff]
      %v3395 = vld [vmem:[#allocation4 + $0x58] sm:$0xff]
      %v3396 = vld [vmem:[#allocation4 + $0x60] sm:$0xff]
      %v3397 = vld [vmem:[#allocation4 + $0x68] sm:$0xff]
      %v3398 = vld [vmem:[#allocation4 + $0x70] sm:$0xff]
      %v3399 = vld [vmem:[#allocation4 + $0x78] sm:$0xff]
      %v3400 = vld [vmem:[#allocation4 + $0x80] sm:$0xff]
      %v3401 = vld [vmem:[#allocation4 + $0x88] sm:$0xff]
      %v3402 = vld [vmem:[#allocation4 + $0x90] sm:$0xff]
      %v3403 = vld [vmem:[#allocation4 + $0x98] sm:$0xff]
      %v3404 = vld [vmem:[#allocation4 + $0xa0] sm:$0xff]
      %v3405 = vld [vmem:[#allocation4 + $0xa8] sm:$0xff]
      %v3406 = vld [vmem:[#allocation4 + $0xb0] sm:$0xff]
      %v3407 = vld [vmem:[#allocation4 + $0xb8] sm:$0xff]
      %v3408 = vld [vmem:[#allocation4 + $0xc0] sm:$0xff]
      %v3409 = vld [vmem:[#allocation4 + $0xc8] sm:$0xff]
      %v3410 = vld [vmem:[#allocation4 + $0xd0] sm:$0xff]
      %v3411 = vld [vmem:[#allocation4 + $0xd8] sm:$0xff]
      %v3412 = vld [vmem:[#allocation4 + $0xe0] sm:$0xff]
      %v3413 = vld [vmem:[#allocation4 + $0xe8] sm:$0xff]
      %v3414 = vld [vmem:[#allocation4 + $0xf0] sm:$0xff]
      %v3415 = vld [vmem:[#allocation4 + $0xf8] sm:$0xff]
      %v3416 = vld [vmem:[#allocation4 + $0x100] sm:$0xff]
      %v3417 = vld [vmem:[#allocation4 + $0x108] sm:$0xff]
      %v3418 = vld [vmem:[#allocation4 + $0x110] sm:$0xff]
      %v3419 = vld [vmem:[#allocation4 + $0x118] sm:$0xff]
      %v3420 = vld [vmem:[#allocation4 + $0x120] sm:$0xff]
      %v3421 = vld [vmem:[#allocation4 + $0x128] sm:$0xff]
      %v3422 = vld [vmem:[#allocation4 + $0x130] sm:$0xff]
      %v3423 = vld [vmem:[#allocation4 + $0x138] sm:$0xff]
      %v3424 = vld [vmem:[#allocation4 + $0x140] sm:$0xff]
      %v3425 = vld [vmem:[#allocation4 + $0x148] sm:$0xff]
      %v3426 = vld [vmem:[#allocation4 + $0x150] sm:$0xff]
      %v3427 = vld [vmem:[#allocation4 + $0x158] sm:$0xff]
      %v3428 = vld [vmem:[#allocation4 + $0x160] sm:$0xff]
      %v3429 = vld [vmem:[#allocation4 + $0x168] sm:$0xff]
      %v3430 = vld [vmem:[#allocation4 + $0x170] sm:$0xff]
      %v3431 = vld [vmem:[#allocation4 + $0x178] sm:$0xff]
      %v3432 = vld [vmem:[%s4 + $0x240] sm:$0xff]
      %v3433 = vld [vmem:[%s4 + $0x248] sm:$0xff]
      %v3434 = vld [vmem:[%s4 + $0x250] sm:$0xff]
      %v3435 = vld [vmem:[%s4 + $0x258] sm:$0xff]
      %v3436 = vld [vmem:[%s4 + $0x260] sm:$0xff]
      %v3437 = vld [vmem:[%s4 + $0x268] sm:$0xff]
      %v3438 = vld [vmem:[%s4 + $0x270] sm:$0xff]
      %v3439 = vld [vmem:[%s4 + $0x278] sm:$0xff]
      %v3440 = vld [vmem:[%s4 + $0x280] sm:$0xff]
      %v3441 = vld [vmem:[%s4 + $0x288] sm:$0xff]
      %v3442 = vld [vmem:[%s4 + $0x290] sm:$0xff]
      %v3443 = vld [vmem:[%s4 + $0x298] sm:$0xff]
      %v3444 = vld [vmem:[%s4 + $0x2a0] sm:$0xff]
      %v3445 = vld [vmem:[%s4 + $0x2a8] sm:$0xff]
      %v3446 = vld [vmem:[%s4 + $0x2b0] sm:$0xff]
      %v3447 = vld [vmem:[%s4 + $0x2b8] sm:$0xff]
      %v3448 = vld [vmem:[%s4 + $0x2c0] sm:$0xff]
      %v3449 = vld [vmem:[%s4 + $0x2c8] sm:$0xff]
      %v3450 = vld [vmem:[%s4 + $0x2d0] sm:$0xff]
      %v3451 = vld [vmem:[%s4 + $0x2d8] sm:$0xff]
      %v3452 = vld [vmem:[%s4 + $0x2e0] sm:$0xff]
      %v3453 = vld [vmem:[%s4 + $0x2e8] sm:$0xff]
      %v3454 = vld [vmem:[%s4 + $0x2f0] sm:$0xff]
      %v3455 = vld [vmem:[%s4 + $0x2f8] sm:$0xff]
      %v3456 = vld [vmem:[%s4 + $0x300] sm:$0xff]
      %v3457 = vld [vmem:[%s4 + $0x308] sm:$0xff]
      %v3458 = vld [vmem:[%s4 + $0x310] sm:$0xff]
      %v3459 = vld [vmem:[%s4 + $0x318] sm:$0xff]
      %v3460 = vld [vmem:[%s4 + $0x320] sm:$0xff]
      %v3461 = vld [vmem:[%s4 + $0x328] sm:$0xff]
      %v3462 = vld [vmem:[%s4 + $0x330] sm:$0xff]
      %v3463 = vld [vmem:[%s4 + $0x338] sm:$0xff]
      %v3464 = vld [vmem:[%s4 + $0x340] sm:$0xff]
      %v3465 = vld [vmem:[%s4 + $0x348] sm:$0xff]
      %v3466 = vld [vmem:[%s4 + $0x350] sm:$0xff]
      %v3467 = vld [vmem:[%s4 + $0x358] sm:$0xff]
      %v3468 = vld [vmem:[%s5 + $0x2] sm:$0x1]
      %v3469 = vperm.slane %v3468, 0
      %v3471 = vsel %vm304, %v3386, 0
      %v3474 = vsel %vm304, %v3389, 0
      %v3477 = vsel %vm304, %v3392, 0
      %v3480 = vsel %vm304, %v3395, 0
      %v3483 = vsel %vm304, %v3398, 0
      %v3486 = vsel %vm304, %v3401, 0
      %v3489 = vsel %vm304, %v3404, 0
      %v3492 = vsel %vm304, %v3407, 0
      %v3495 = vsel %vm304, %v3410, 0
      %v3498 = vsel %vm304, %v3413, 0
      %v3501 = vsel %vm304, %v3416, 0
      %v3504 = vsel %vm304, %v3419, 0
      %v3507 = vsel %vm304, %v3422, 0
      %v3510 = vsel %vm304, %v3425, 0
      %v3513 = vsel %vm304, %v3428, 0
      %v3516 = vsel %vm304, %v3431, 0
      %3518 = vmatpush.msra.mxu0 %v3447
      %3519 = vmatpush.msra.mxu0 %v3446
      %3520 = vmatpush.msra.mxu0 %v3445
      %3521 = vmatpush.msra.mxu0 %v3444
      %3522 = vmatpush.msra.mxu0 %v3443
      %3523 = vmatpush.msra.mxu0 %v3442
      %3524 = vmatpush.msra.mxu0 %v3441
      %3525 = vmatpush.msra.mxu0 %v3440
      %3526 = vmatpush.msra.mxu0 %v3439
      %3527 = vmatpush.msra.mxu0 %v3438
      %3528 = vmatpush.msra.mxu0 %v3437
      %3529 = vmatpush.msra.mxu0 %v3436
      %3530 = vmatpush.msra.mxu0 %v3435
      %3531 = vmatpush.msra.mxu0 %v3434
      %3532 = vmatpush.msra.mxu0 %v3433
      %3533 = vmatpush.msra.mxu0 %v3432
      %3534 = vmatmul.f32.gmra.mxu0 %v3384
      %v3535 = vpop.f32.mrf.mxu0
      %v3536 = vadd.f32 %v3469, %v3535
      %3537 = vmatmul.f32.gmra.mxu0 %v3387
      %v3538 = vpop.f32.mrf.mxu0
      %v3539 = vadd.f32 %v3469, %v3538
      %3540 = vmatmul.f32.gmra.mxu0 %v3390
      %v3541 = vpop.f32.mrf.mxu0
      %v3542 = vadd.f32 %v3469, %v3541
      %3543 = vmatmul.f32.gmra.mxu0 %v3393
      %v3544 = vpop.f32.mrf.mxu0
      %v3545 = vadd.f32 %v3469, %v3544
      %3546 = vmatmul.f32.gmra.mxu0 %v3396
      %v3547 = vpop.f32.mrf.mxu0
      %v3548 = vadd.f32 %v3469, %v3547
      %3549 = vmatmul.f32.gmra.mxu0 %v3399
      %v3550 = vpop.f32.mrf.mxu0
      %v3551 = vadd.f32 %v3469, %v3550
      %3552 = vmatmul.f32.gmra.mxu0 %v3402
      %v3553 = vpop.f32.mrf.mxu0
      %v3554 = vadd.f32 %v3469, %v3553
      %3555 = vmatmul.f32.gmra.mxu0 %v3405
      %v3556 = vpop.f32.mrf.mxu0
      %v3557 = vadd.f32 %v3469, %v3556
      %3558 = vmatmul.f32.gmra.mxu0 %v3408
      %v3559 = vpop.f32.mrf.mxu0
      %v3560 = vadd.f32 %v3469, %v3559
      %3561 = vmatmul.f32.gmra.mxu0 %v3411
      %v3562 = vpop.f32.mrf.mxu0
      %v3563 = vadd.f32 %v3469, %v3562
      %3564 = vmatmul.f32.gmra.mxu0 %v3414
      %v3565 = vpop.f32.mrf.mxu0
      %v3566 = vadd.f32 %v3469, %v3565
      %3567 = vmatmul.f32.gmra.mxu0 %v3417
      %v3568 = vpop.f32.mrf.mxu0
      %v3569 = vadd.f32 %v3469, %v3568
      %3570 = vmatmul.f32.gmra.mxu0 %v3420
      %v3571 = vpop.f32.mrf.mxu0
      %v3572 = vadd.f32 %v3469, %v3571
      %3573 = vmatmul.f32.gmra.mxu0 %v3423
      %v3574 = vpop.f32.mrf.mxu0
      %v3575 = vadd.f32 %v3469, %v3574
      %3576 = vmatmul.f32.gmra.mxu0 %v3426
      %v3577 = vpop.f32.mrf.mxu0
      %v3578 = vadd.f32 %v3469, %v3577
      %3579 = vmatmul.f32.gmra.mxu0 %v3429
      %v3580 = vpop.f32.mrf.mxu0
      %v3581 = vadd.f32 %v3469, %v3580
      %3582 = vdwg.mxu0
      %3583 = vmatpush.msra.mxu0 %v3463
      %3584 = vmatpush.msra.mxu0 %v3462
      %3585 = vmatpush.msra.mxu0 %v3461
      %3586 = vmatpush.msra.mxu0 %v3460
      %3587 = vmatpush.msra.mxu0 %v3459
      %3588 = vmatpush.msra.mxu0 %v3458
      %3589 = vmatpush.msra.mxu0 %v3457
      %3590 = vmatpush.msra.mxu0 %v3456
      %3591 = vmatpush.msra.mxu0 %v3455
      %3592 = vmatpush.msra.mxu0 %v3454
      %3593 = vmatpush.msra.mxu0 %v3453
      %3594 = vmatpush.msra.mxu0 %v3452
      %3595 = vmatpush.msra.mxu0 %v3451
      %3596 = vmatpush.msra.mxu0 %v3450
      %3597 = vmatpush.msra.mxu0 %v3449
      %3598 = vmatpush.msra.mxu0 %v3448
      %3599 = vmatmul.f32.gmra.mxu0 %v3385
      %v3600 = vpop.f32.mrf.mxu0
      %v3601 = vadd.f32 %v3536, %v3600
      %3602 = vmatmul.f32.gmra.mxu0 %v3388
      %v3603 = vpop.f32.mrf.mxu0
      %v3604 = vadd.f32 %v3539, %v3603
      %3605 = vmatmul.f32.gmra.mxu0 %v3391
      %v3606 = vpop.f32.mrf.mxu0
      %v3607 = vadd.f32 %v3542, %v3606
      %3608 = vmatmul.f32.gmra.mxu0 %v3394
      %v3609 = vpop.f32.mrf.mxu0
      %v3610 = vadd.f32 %v3545, %v3609
      %3611 = vmatmul.f32.gmra.mxu0 %v3397
      %v3612 = vpop.f32.mrf.mxu0
      %v3613 = vadd.f32 %v3548, %v3612
      %3614 = vmatmul.f32.gmra.mxu0 %v3400
      %v3615 = vpop.f32.mrf.mxu0
      %v3616 = vadd.f32 %v3551, %v3615
      %3617 = vmatmul.f32.gmra.mxu0 %v3403
      %v3618 = vpop.f32.mrf.mxu0
      %v3619 = vadd.f32 %v3554, %v3618
      %3620 = vmatmul.f32.gmra.mxu0 %v3406
      %v3621 = vpop.f32.mrf.mxu0
      %v3622 = vadd.f32 %v3557, %v3621
      %3623 = vmatmul.f32.gmra.mxu0 %v3409
      %v3624 = vpop.f32.mrf.mxu0
      %v3625 = vadd.f32 %v3560, %v3624
      %3626 = vmatmul.f32.gmra.mxu0 %v3412
      %v3627 = vpop.f32.mrf.mxu0
      %v3628 = vadd.f32 %v3563, %v3627
      %3629 = vmatmul.f32.gmra.mxu0 %v3415
      %v3630 = vpop.f32.mrf.mxu0
      %v3631 = vadd.f32 %v3566, %v3630
      %3632 = vmatmul.f32.gmra.mxu0 %v3418
      %v3633 = vpop.f32.mrf.mxu0
      %v3634 = vadd.f32 %v3569, %v3633
      %3635 = vmatmul.f32.gmra.mxu0 %v3421
      %v3636 = vpop.f32.mrf.mxu0
      %v3637 = vadd.f32 %v3572, %v3636
      %3638 = vmatmul.f32.gmra.mxu0 %v3424
      %v3639 = vpop.f32.mrf.mxu0
      %v3640 = vadd.f32 %v3575, %v3639
      %3641 = vmatmul.f32.gmra.mxu0 %v3427
      %v3642 = vpop.f32.mrf.mxu0
      %v3643 = vadd.f32 %v3578, %v3642
      %3644 = vmatmul.f32.gmra.mxu0 %v3430
      %v3645 = vpop.f32.mrf.mxu0
      %v3646 = vadd.f32 %v3581, %v3645
      %3647 = vdwg.mxu0
      %3648 = vmatpush.msra.mxu0 0.0
      %3649 = vmatpush.msra.mxu0 0.0
      %3650 = vmatpush.msra.mxu0 0.0
      %3651 = vmatpush.msra.mxu0 0.0
      %3652 = vmatpush.msra.mxu0 0.0
      %3653 = vmatpush.msra.mxu0 0.0
      %3654 = vmatpush.msra.mxu0 0.0
      %3655 = vmatpush.msra.mxu0 0.0
      %3656 = vmatpush.msra.mxu0 0.0
      %3657 = vmatpush.msra.mxu0 0.0
      %3658 = vmatpush.msra.mxu0 0.0
      %3659 = vmatpush.msra.mxu0 0.0
      %3660 = vmatpush.msra.mxu0 %v3467
      %3661 = vmatpush.msra.mxu0 %v3466
      %3662 = vmatpush.msra.mxu0 %v3465
      %3663 = vmatpush.msra.mxu0 %v3464
      %3664 = vmatmul.f32.gmra.mxu0 %v3471
      %v3665 = vpop.f32.mrf.mxu0
      %v3666 = vadd.f32 %v3601, %v3665
      %3667 = vmatmul.f32.gmra.mxu0 %v3474
      %v3668 = vpop.f32.mrf.mxu0
      %v3669 = vadd.f32 %v3604, %v3668
      %3670 = vmatmul.f32.gmra.mxu0 %v3477
      %v3671 = vpop.f32.mrf.mxu0
      %v3672 = vadd.f32 %v3607, %v3671
      %3673 = vmatmul.f32.gmra.mxu0 %v3480
      %v3674 = vpop.f32.mrf.mxu0
      %v3675 = vadd.f32 %v3610, %v3674
      %3676 = vmatmul.f32.gmra.mxu0 %v3483
      %v3677 = vpop.f32.mrf.mxu0
      %v3678 = vadd.f32 %v3613, %v3677
      %3679 = vmatmul.f32.gmra.mxu0 %v3486
      %v3680 = vpop.f32.mrf.mxu0
      %v3681 = vadd.f32 %v3616, %v3680
      %3682 = vmatmul.f32.gmra.mxu0 %v3489
      %v3683 = vpop.f32.mrf.mxu0
      %v3684 = vadd.f32 %v3619, %v3683
      %3685 = vmatmul.f32.gmra.mxu0 %v3492
      %v3686 = vpop.f32.mrf.mxu0
      %v3687 = vadd.f32 %v3622, %v3686
      %3688 = vmatmul.f32.gmra.mxu0 %v3495
      %v3689 = vpop.f32.mrf.mxu0
      %v3690 = vadd.f32 %v3625, %v3689
      %3691 = vmatmul.f32.gmra.mxu0 %v3498
      %v3692 = vpop.f32.mrf.mxu0
      %v3693 = vadd.f32 %v3628, %v3692
      %3694 = vmatmul.f32.gmra.mxu0 %v3501
      %v3695 = vpop.f32.mrf.mxu0
      %v3696 = vadd.f32 %v3631, %v3695
      %3697 = vmatmul.f32.gmra.mxu0 %v3504
      %v3698 = vpop.f32.mrf.mxu0
      %v3699 = vadd.f32 %v3634, %v3698
      %3700 = vmatmul.f32.gmra.mxu0 %v3507
      %v3701 = vpop.f32.mrf.mxu0
      %v3702 = vadd.f32 %v3637, %v3701
      %3703 = vmatmul.f32.gmra.mxu0 %v3510
      %v3704 = vpop.f32.mrf.mxu0
      %v3705 = vadd.f32 %v3640, %v3704
      %3706 = vmatmul.f32.gmra.mxu0 %v3513
      %v3707 = vpop.f32.mrf.mxu0
      %v3708 = vadd.f32 %v3643, %v3707
      %3709 = vmatmul.f32.gmra.mxu0 %v3516
      %v3710 = vpop.f32.mrf.mxu0
      %v3711 = vadd.f32 %v3646, %v3710
      %3712 = vdwg.mxu0
      %v3713 = vmax.f32 %v3666, 0.0
      %v3714 = vmax.f32 %v3669, 0.0
      %v3715 = vmax.f32 %v3672, 0.0
      %v3716 = vmax.f32 %v3675, 0.0
      %v3717 = vmax.f32 %v3678, 0.0
      %v3718 = vmax.f32 %v3681, 0.0
      %v3719 = vmax.f32 %v3684, 0.0
      %v3720 = vmax.f32 %v3687, 0.0
      %v3721 = vmax.f32 %v3690, 0.0
      %v3722 = vmax.f32 %v3693, 0.0
      %v3723 = vmax.f32 %v3696, 0.0
      %v3724 = vmax.f32 %v3699, 0.0
      %v3725 = vmax.f32 %v3702, 0.0
      %v3726 = vmax.f32 %v3705, 0.0
      %v3727 = vmax.f32 %v3708, 0.0
      %v3728 = vmax.f32 %v3711, 0.0
      %v3729 = vmul.f32 %v3713, %v486
      %v3730 = vmul.f32 %v3714, %v491
      %v3731 = vmul.f32 %v3715, %v496
      %v3732 = vmul.f32 %v3716, %v501
      %v3733 = vmul.f32 %v3717, %v506
      %v3734 = vmul.f32 %v3718, %v511
      %v3735 = vmul.f32 %v3719, %v516
      %v3736 = vmul.f32 %v3720, %v521
      %v3737 = vmul.f32 %v3721, %v526
      %v3738 = vmul.f32 %v3722, %v531
      %v3739 = vmul.f32 %v3723, %v536
      %v3740 = vmul.f32 %v3724, %v541
      %v3741 = vmul.f32 %v3725, %v546
      %v3742 = vmul.f32 %v3726, %v551
      %v3743 = vmul.f32 %v3727, %v556
      %v3744 = vmul.f32 %v3728, %v561
      %3745 = vst.msk [vmem:[#allocation3 + $0x10] sm:$0xff] %vm304, %v3729
      %3746 = vst.msk [vmem:[#allocation3 + $0x18] sm:$0xff] %vm304, %v3730
      %3747 = vst.msk [vmem:[#allocation3 + $0x20] sm:$0xff] %vm304, %v3731
      %3748 = vst.msk [vmem:[#allocation3 + $0x28] sm:$0xff] %vm304, %v3732
      %3749 = vst.msk [vmem:[#allocation3 + $0x30] sm:$0xff] %vm304, %v3733
      %3750 = vst.msk [vmem:[#allocation3 + $0x38] sm:$0xff] %vm304, %v3734
      %3751 = vst.msk [vmem:[#allocation3 + $0x40] sm:$0xff] %vm304, %v3735
      %3752 = vst.msk [vmem:[#allocation3 + $0x48] sm:$0xff] %vm304, %v3736
      %3753 = vst.msk [vmem:[#allocation3 + $0x50] sm:$0xff] %vm304, %v3737
      %3754 = vst.msk [vmem:[#allocation3 + $0x58] sm:$0xff] %vm304, %v3738
      %3755 = vst.msk [vmem:[#allocation3 + $0x60] sm:$0xff] %vm304, %v3739
      %3756 = vst.msk [vmem:[#allocation3 + $0x68] sm:$0xff] %vm304, %v3740
      %3757 = vst.msk [vmem:[#allocation3 + $0x70] sm:$0xff] %vm304, %v3741
      %3758 = vst.msk [vmem:[#allocation3 + $0x78] sm:$0xff] %vm304, %v3742
      %3759 = vst.msk [vmem:[#allocation3 + $0x80] sm:$0xff] %vm304, %v3743
      %3760 = vst.msk [vmem:[#allocation3 + $0x88] sm:$0xff] %vm304, %v3744
      %v3761 = vld [vmem:[#allocation3 + $0x5] sm:$0xff]
      %v3762 = vld [vmem:[#allocation3 + $0xd] sm:$0xff]
      %v3763 = vld [vmem:[#allocation3 + $0x15] sm:$0xff]
      %v3764 = vld [vmem:[#allocation3 + $0x1d] sm:$0xff]
      %v3765 = vld [vmem:[#allocation3 + $0x25] sm:$0xff]
      %v3766 = vld [vmem:[#allocation3 + $0x2d] sm:$0xff]
      %v3767 = vld [vmem:[#allocation3 + $0x35] sm:$0xff]
      %v3768 = vld [vmem:[#allocation3 + $0x3d] sm:$0xff]
      %v3769 = vld [vmem:[#allocation3 + $0x45] sm:$0xff]
      %v3770 = vld [vmem:[#allocation3 + $0x4d] sm:$0xff]
      %v3771 = vld [vmem:[#allocation3 + $0x55] sm:$0xff]
      %v3772 = vld [vmem:[#allocation3 + $0x5d] sm:$0xff]
      %v3773 = vld [vmem:[#allocation3 + $0x65] sm:$0xff]
      %v3774 = vld [vmem:[#allocation3 + $0x6d] sm:$0xff]
      %v3775 = vld [vmem:[#allocation3 + $0x75] sm:$0xff]
      %v3776 = vld [vmem:[#allocation3 + $0x7d] sm:$0xff]
      %3777 = vst.msk [vmem:[#allocation4] sm:$0xff] %vm304, %v3761
      %3778 = vst.msk [vmem:[#allocation4 + $0x18] sm:$0xff] %vm304, %v3762
      %3779 = vst.msk [vmem:[#allocation4 + $0x30] sm:$0xff] %vm304, %v3763
      %3780 = vst.msk [vmem:[#allocation4 + $0x48] sm:$0xff] %vm304, %v3764
      %3781 = vst.msk [vmem:[#allocation4 + $0x60] sm:$0xff] %vm304, %v3765
      %3782 = vst.msk [vmem:[#allocation4 + $0x78] sm:$0xff] %vm304, %v3766
      %3783 = vst.msk [vmem:[#allocation4 + $0x90] sm:$0xff] %vm304, %v3767
      %3784 = vst.msk [vmem:[#allocation4 + $0xa8] sm:$0xff] %vm304, %v3768
      %3785 = vst.msk [vmem:[#allocation4 + $0xc0] sm:$0xff] %vm304, %v3769
      %3786 = vst.msk [vmem:[#allocation4 + $0xd8] sm:$0xff] %vm304, %v3770
      %3787 = vst.msk [vmem:[#allocation4 + $0xf0] sm:$0xff] %vm304, %v3771
      %3788 = vst.msk [vmem:[#allocation4 + $0x108] sm:$0xff] %vm304, %v3772
      %3789 = vst.msk [vmem:[#allocation4 + $0x120] sm:$0xff] %vm304, %v3773
      %3790 = vst.msk [vmem:[#allocation4 + $0x138] sm:$0xff] %vm304, %v3774
      %3791 = vst.msk [vmem:[#allocation4 + $0x150] sm:$0xff] %vm304, %v3775
      %3792 = vst.msk [vmem:[#allocation4 + $0x168] sm:$0xff] %vm304, %v3776
      %v3793 = vld [vmem:[#allocation3 + $0x6] sm:$0xff]
      %v3794 = vld [vmem:[#allocation3 + $0xe] sm:$0xff]
      %v3795 = vld [vmem:[#allocation3 + $0x16] sm:$0xff]
      %v3796 = vld [vmem:[#allocation3 + $0x1e] sm:$0xff]
      %v3797 = vld [vmem:[#allocation3 + $0x26] sm:$0xff]
      %v3798 = vld [vmem:[#allocation3 + $0x2e] sm:$0xff]
      %v3799 = vld [vmem:[#allocation3 + $0x36] sm:$0xff]
      %v3800 = vld [vmem:[#allocation3 + $0x3e] sm:$0xff]
      %v3801 = vld [vmem:[#allocation3 + $0x46] sm:$0xff]
      %v3802 = vld [vmem:[#allocation3 + $0x4e] sm:$0xff]
      %v3803 = vld [vmem:[#allocation3 + $0x56] sm:$0xff]
      %v3804 = vld [vmem:[#allocation3 + $0x5e] sm:$0xff]
      %v3805 = vld [vmem:[#allocation3 + $0x66] sm:$0xff]
      %v3806 = vld [vmem:[#allocation3 + $0x6e] sm:$0xff]
      %v3807 = vld [vmem:[#allocation3 + $0x76] sm:$0xff]
      %v3808 = vld [vmem:[#allocation3 + $0x7e] sm:$0xff]
      %3825 = vrot.lane.b32.xlu0 %v3793, 32
      %v3826 = vpop.permute.xlu0 %3825
      %3827 = vrot.lane.b32.xlu0 %v3794, 32
      %v3828 = vpop.permute.xlu0 %3827
      %3829 = vrot.lane.b32.xlu0 %v3795, 32
      %v3830 = vpop.permute.xlu0 %3829
      %3831 = vrot.lane.b32.xlu0 %v3796, 32
      %v3832 = vpop.permute.xlu0 %3831
      %3833 = vrot.lane.b32.xlu0 %v3797, 32
      %v3834 = vpop.permute.xlu0 %3833
      %3835 = vrot.lane.b32.xlu0 %v3798, 32
      %v3836 = vpop.permute.xlu0 %3835
      %3837 = vrot.lane.b32.xlu0 %v3799, 32
      %v3838 = vpop.permute.xlu0 %3837
      %3839 = vrot.lane.b32.xlu0 %v3800, 32
      %v3840 = vpop.permute.xlu0 %3839
      %3841 = vrot.lane.b32.xlu0 %v3801, 32
      %v3842 = vpop.permute.xlu0 %3841
      %3843 = vrot.lane.b32.xlu0 %v3802, 32
      %v3844 = vpop.permute.xlu0 %3843
      %3845 = vrot.lane.b32.xlu0 %v3803, 32
      %v3846 = vpop.permute.xlu0 %3845
      %3847 = vrot.lane.b32.xlu0 %v3804, 32
      %v3848 = vpop.permute.xlu0 %3847
      %3849 = vrot.lane.b32.xlu0 %v3805, 32
      %v3850 = vpop.permute.xlu0 %3849
      %3851 = vrot.lane.b32.xlu0 %v3806, 32
      %v3852 = vpop.permute.xlu0 %3851
      %3853 = vrot.lane.b32.xlu0 %v3807, 32
      %v3854 = vpop.permute.xlu0 %3853
      %3855 = vrot.lane.b32.xlu0 %v3808, 32
      %v3856 = vpop.permute.xlu0 %3855
      %3873 = vst.msk [vmem:[#allocation4] sm:$0xff] %vm707, %v3826
      %3874 = vst.msk [vmem:[#allocation4 + $0x18] sm:$0xff] %vm707, %v3828
      %3875 = vst.msk [vmem:[#allocation4 + $0x30] sm:$0xff] %vm707, %v3830
      %3876 = vst.msk [vmem:[#allocation4 + $0x48] sm:$0xff] %vm707, %v3832
      %3877 = vst.msk [vmem:[#allocation4 + $0x60] sm:$0xff] %vm707, %v3834
      %3878 = vst.msk [vmem:[#allocation4 + $0x78] sm:$0xff] %vm707, %v3836
      %3879 = vst.msk [vmem:[#allocation4 + $0x90] sm:$0xff] %vm707, %v3838
      %3880 = vst.msk [vmem:[#allocation4 + $0xa8] sm:$0xff] %vm707, %v3840
      %3881 = vst.msk [vmem:[#allocation4 + $0xc0] sm:$0xff] %vm707, %v3842
      %3882 = vst.msk [vmem:[#allocation4 + $0xd8] sm:$0xff] %vm707, %v3844
      %3883 = vst.msk [vmem:[#allocation4 + $0xf0] sm:$0xff] %vm707, %v3846
      %3884 = vst.msk [vmem:[#allocation4 + $0x108] sm:$0xff] %vm707, %v3848
      %3885 = vst.msk [vmem:[#allocation4 + $0x120] sm:$0xff] %vm707, %v3850
      %3886 = vst.msk [vmem:[#allocation4 + $0x138] sm:$0xff] %vm707, %v3852
      %3887 = vst.msk [vmem:[#allocation4 + $0x150] sm:$0xff] %vm707, %v3854
      %3888 = vst.msk [vmem:[#allocation4 + $0x168] sm:$0xff] %vm707, %v3856
      %v3889 = vld [vmem:[#allocation3 + $0x7] sm:$0xff]
      %v3890 = vld [vmem:[#allocation3 + $0xf] sm:$0xff]
      %v3891 = vld [vmem:[#allocation3 + $0x17] sm:$0xff]
      %v3892 = vld [vmem:[#allocation3 + $0x1f] sm:$0xff]
      %v3893 = vld [vmem:[#allocation3 + $0x27] sm:$0xff]
      %v3894 = vld [vmem:[#allocation3 + $0x2f] sm:$0xff]
      %v3895 = vld [vmem:[#allocation3 + $0x37] sm:$0xff]
      %v3896 = vld [vmem:[#allocation3 + $0x3f] sm:$0xff]
      %v3897 = vld [vmem:[#allocation3 + $0x47] sm:$0xff]
      %v3898 = vld [vmem:[#allocation3 + $0x4f] sm:$0xff]
      %v3899 = vld [vmem:[#allocation3 + $0x57] sm:$0xff]
      %v3900 = vld [vmem:[#allocation3 + $0x5f] sm:$0xff]
      %v3901 = vld [vmem:[#allocation3 + $0x67] sm:$0xff]
      %v3902 = vld [vmem:[#allocation3 + $0x6f] sm:$0xff]
      %v3903 = vld [vmem:[#allocation3 + $0x77] sm:$0xff]
      %v3904 = vld [vmem:[#allocation3 + $0x7f] sm:$0xff]
      %3921 = vrot.lane.b32.xlu0 %v3889, 64
      %v3922 = vpop.permute.xlu0 %3921
      %3923 = vrot.lane.b32.xlu0 %v3890, 64
      %v3924 = vpop.permute.xlu0 %3923
      %3925 = vrot.lane.b32.xlu0 %v3891, 64
      %v3926 = vpop.permute.xlu0 %3925
      %3927 = vrot.lane.b32.xlu0 %v3892, 64
      %v3928 = vpop.permute.xlu0 %3927
      %3929 = vrot.lane.b32.xlu0 %v3893, 64
      %v3930 = vpop.permute.xlu0 %3929
      %3931 = vrot.lane.b32.xlu0 %v3894, 64
      %v3932 = vpop.permute.xlu0 %3931
      %3933 = vrot.lane.b32.xlu0 %v3895, 64
      %v3934 = vpop.permute.xlu0 %3933
      %3935 = vrot.lane.b32.xlu0 %v3896, 64
      %v3936 = vpop.permute.xlu0 %3935
      %3937 = vrot.lane.b32.xlu0 %v3897, 64
      %v3938 = vpop.permute.xlu0 %3937
      %3939 = vrot.lane.b32.xlu0 %v3898, 64
      %v3940 = vpop.permute.xlu0 %3939
      %3941 = vrot.lane.b32.xlu0 %v3899, 64
      %v3942 = vpop.permute.xlu0 %3941
      %3943 = vrot.lane.b32.xlu0 %v3900, 64
      %v3944 = vpop.permute.xlu0 %3943
      %3945 = vrot.lane.b32.xlu0 %v3901, 64
      %v3946 = vpop.permute.xlu0 %3945
      %3947 = vrot.lane.b32.xlu0 %v3902, 64
      %v3948 = vpop.permute.xlu0 %3947
      %3949 = vrot.lane.b32.xlu0 %v3903, 64
      %v3950 = vpop.permute.xlu0 %3949
      %3951 = vrot.lane.b32.xlu0 %v3904, 64
      %v3952 = vpop.permute.xlu0 %3951
      %3969 = vst.msk [vmem:[#allocation4] sm:$0xff] %vm804, %v3922
      %3970 = vst.msk [vmem:[#allocation4 + $0x18] sm:$0xff] %vm804, %v3924
      %3971 = vst.msk [vmem:[#allocation4 + $0x30] sm:$0xff] %vm804, %v3926
      %3972 = vst.msk [vmem:[#allocation4 + $0x48] sm:$0xff] %vm804, %v3928
      %3973 = vst.msk [vmem:[#allocation4 + $0x60] sm:$0xff] %vm804, %v3930
      %3974 = vst.msk [vmem:[#allocation4 + $0x78] sm:$0xff] %vm804, %v3932
      %3975 = vst.msk [vmem:[#allocation4 + $0x90] sm:$0xff] %vm804, %v3934
      %3976 = vst.msk [vmem:[#allocation4 + $0xa8] sm:$0xff] %vm804, %v3936
      %3977 = vst.msk [vmem:[#allocation4 + $0xc0] sm:$0xff] %vm804, %v3938
      %3978 = vst.msk [vmem:[#allocation4 + $0xd8] sm:$0xff] %vm804, %v3940
      %3979 = vst.msk [vmem:[#allocation4 + $0xf0] sm:$0xff] %vm804, %v3942
      %3980 = vst.msk [vmem:[#allocation4 + $0x108] sm:$0xff] %vm804, %v3944
      %3981 = vst.msk [vmem:[#allocation4 + $0x120] sm:$0xff] %vm804, %v3946
      %3982 = vst.msk [vmem:[#allocation4 + $0x138] sm:$0xff] %vm804, %v3948
      %3983 = vst.msk [vmem:[#allocation4 + $0x150] sm:$0xff] %vm804, %v3950
      %3984 = vst.msk [vmem:[#allocation4 + $0x168] sm:$0xff] %vm804, %v3952
      %v3985 = vld [vmem:[#allocation3 + $0xf] sm:$0xff]
      %v3986 = vld [vmem:[#allocation3 + $0x17] sm:$0xff]
      %v3987 = vld [vmem:[#allocation3 + $0x1f] sm:$0xff]
      %v3988 = vld [vmem:[#allocation3 + $0x27] sm:$0xff]
      %v3989 = vld [vmem:[#allocation3 + $0x2f] sm:$0xff]
      %v3990 = vld [vmem:[#allocation3 + $0x37] sm:$0xff]
      %v3991 = vld [vmem:[#allocation3 + $0x3f] sm:$0xff]
      %v3992 = vld [vmem:[#allocation3 + $0x47] sm:$0xff]
      %v3993 = vld [vmem:[#allocation3 + $0x4f] sm:$0xff]
      %v3994 = vld [vmem:[#allocation3 + $0x57] sm:$0xff]
      %v3995 = vld [vmem:[#allocation3 + $0x5f] sm:$0xff]
      %v3996 = vld [vmem:[#allocation3 + $0x67] sm:$0xff]
      %v3997 = vld [vmem:[#allocation3 + $0x6f] sm:$0xff]
      %v3998 = vld [vmem:[#allocation3 + $0x77] sm:$0xff]
      %v3999 = vld [vmem:[#allocation3 + $0x7f] sm:$0xff]
      %v4000 = vld [vmem:[#allocation3 + $0x87] sm:$0xff]
      %4017 = vrot.lane.b32.xlu0 %v3985, 96
      %v4018 = vpop.permute.xlu0 %4017
      %4019 = vrot.lane.b32.xlu0 %v3986, 96
      %v4020 = vpop.permute.xlu0 %4019
      %4021 = vrot.lane.b32.xlu0 %v3987, 96
      %v4022 = vpop.permute.xlu0 %4021
      %4023 = vrot.lane.b32.xlu0 %v3988, 96
      %v4024 = vpop.permute.xlu0 %4023
      %4025 = vrot.lane.b32.xlu0 %v3989, 96
      %v4026 = vpop.permute.xlu0 %4025
      %4027 = vrot.lane.b32.xlu0 %v3990, 96
      %v4028 = vpop.permute.xlu0 %4027
      %4029 = vrot.lane.b32.xlu0 %v3991, 96
      %v4030 = vpop.permute.xlu0 %4029
      %4031 = vrot.lane.b32.xlu0 %v3992, 96
      %v4032 = vpop.permute.xlu0 %4031
      %4033 = vrot.lane.b32.xlu0 %v3993, 96
      %v4034 = vpop.permute.xlu0 %4033
      %4035 = vrot.lane.b32.xlu0 %v3994, 96
      %v4036 = vpop.permute.xlu0 %4035
      %4037 = vrot.lane.b32.xlu0 %v3995, 96
      %v4038 = vpop.permute.xlu0 %4037
      %4039 = vrot.lane.b32.xlu0 %v3996, 96
      %v4040 = vpop.permute.xlu0 %4039
      %4041 = vrot.lane.b32.xlu0 %v3997, 96
      %v4042 = vpop.permute.xlu0 %4041
      %4043 = vrot.lane.b32.xlu0 %v3998, 96
      %v4044 = vpop.permute.xlu0 %4043
      %4045 = vrot.lane.b32.xlu0 %v3999, 96
      %v4046 = vpop.permute.xlu0 %4045
      %4047 = vrot.lane.b32.xlu0 %v4000, 96
      %v4048 = vpop.permute.xlu0 %4047
      %4065 = vst.msk [vmem:[#allocation4] sm:$0xff] %vm901, %v4018
      %4066 = vst.msk [vmem:[#allocation4 + $0x18] sm:$0xff] %vm901, %v4020
      %4067 = vst.msk [vmem:[#allocation4 + $0x30] sm:$0xff] %vm901, %v4022
      %4068 = vst.msk [vmem:[#allocation4 + $0x48] sm:$0xff] %vm901, %v4024
      %4069 = vst.msk [vmem:[#allocation4 + $0x60] sm:$0xff] %vm901, %v4026
      %4070 = vst.msk [vmem:[#allocation4 + $0x78] sm:$0xff] %vm901, %v4028
      %4071 = vst.msk [vmem:[#allocation4 + $0x90] sm:$0xff] %vm901, %v4030
      %4072 = vst.msk [vmem:[#allocation4 + $0xa8] sm:$0xff] %vm901, %v4032
      %4073 = vst.msk [vmem:[#allocation4 + $0xc0] sm:$0xff] %vm901, %v4034
      %4074 = vst.msk [vmem:[#allocation4 + $0xd8] sm:$0xff] %vm901, %v4036
      %4075 = vst.msk [vmem:[#allocation4 + $0xf0] sm:$0xff] %vm901, %v4038
      %4076 = vst.msk [vmem:[#allocation4 + $0x108] sm:$0xff] %vm901, %v4040
      %4077 = vst.msk [vmem:[#allocation4 + $0x120] sm:$0xff] %vm901, %v4042
      %4078 = vst.msk [vmem:[#allocation4 + $0x138] sm:$0xff] %vm901, %v4044
      %4079 = vst.msk [vmem:[#allocation4 + $0x150] sm:$0xff] %vm901, %v4046
      %4080 = vst.msk [vmem:[#allocation4 + $0x168] sm:$0xff] %vm901, %v4048
      %v4081 = vld [vmem:[#allocation3 + $0x10] sm:$0xff]
      %v4082 = vld [vmem:[#allocation3 + $0x18] sm:$0xff]
      %v4083 = vld [vmem:[#allocation3 + $0x20] sm:$0xff]
      %v4084 = vld [vmem:[#allocation3 + $0x28] sm:$0xff]
      %v4085 = vld [vmem:[#allocation3 + $0x30] sm:$0xff]
      %v4086 = vld [vmem:[#allocation3 + $0x38] sm:$0xff]
      %v4087 = vld [vmem:[#allocation3 + $0x40] sm:$0xff]
      %v4088 = vld [vmem:[#allocation3 + $0x48] sm:$0xff]
      %v4089 = vld [vmem:[#allocation3 + $0x50] sm:$0xff]
      %v4090 = vld [vmem:[#allocation3 + $0x58] sm:$0xff]
      %v4091 = vld [vmem:[#allocation3 + $0x60] sm:$0xff]
      %v4092 = vld [vmem:[#allocation3 + $0x68] sm:$0xff]
      %v4093 = vld [vmem:[#allocation3 + $0x70] sm:$0xff]
      %v4094 = vld [vmem:[#allocation3 + $0x78] sm:$0xff]
      %v4095 = vld [vmem:[#allocation3 + $0x80] sm:$0xff]
      %v4096 = vld [vmem:[#allocation3 + $0x88] sm:$0xff]
      %4097 = vst.msk [vmem:[#allocation4 + $0x8] sm:$0xff] %vm304, %v4081
      %4098 = vst.msk [vmem:[#allocation4 + $0x20] sm:$0xff] %vm304, %v4082
      %4099 = vst.msk [vmem:[#allocation4 + $0x38] sm:$0xff] %vm304, %v4083
      %4100 = vst.msk [vmem:[#allocation4 + $0x50] sm:$0xff] %vm304, %v4084
      %4101 = vst.msk [vmem:[#allocation4 + $0x68] sm:$0xff] %vm304, %v4085
      %4102 = vst.msk [vmem:[#allocation4 + $0x80] sm:$0xff] %vm304, %v4086
      %4103 = vst.msk [vmem:[#allocation4 + $0x98] sm:$0xff] %vm304, %v4087
      %4104 = vst.msk [vmem:[#allocation4 + $0xb0] sm:$0xff] %vm304, %v4088
      %4105 = vst.msk [vmem:[#allocation4 + $0xc8] sm:$0xff] %vm304, %v4089
      %4106 = vst.msk [vmem:[#allocation4 + $0xe0] sm:$0xff] %vm304, %v4090
      %4107 = vst.msk [vmem:[#allocation4 + $0xf8] sm:$0xff] %vm304, %v4091
      %4108 = vst.msk [vmem:[#allocation4 + $0x110] sm:$0xff] %vm304, %v4092
      %4109 = vst.msk [vmem:[#allocation4 + $0x128] sm:$0xff] %vm304, %v4093
      %4110 = vst.msk [vmem:[#allocation4 + $0x140] sm:$0xff] %vm304, %v4094
      %4111 = vst.msk [vmem:[#allocation4 + $0x158] sm:$0xff] %vm304, %v4095
      %4112 = vst.msk [vmem:[#allocation4 + $0x170] sm:$0xff] %vm304, %v4096
      %v4113 = vld [vmem:[#allocation3 + $0x11] sm:$0xff]
      %v4114 = vld [vmem:[#allocation3 + $0x19] sm:$0xff]
      %v4115 = vld [vmem:[#allocation3 + $0x21] sm:$0xff]
      %v4116 = vld [vmem:[#allocation3 + $0x29] sm:$0xff]
      %v4117 = vld [vmem:[#allocation3 + $0x31] sm:$0xff]
      %v4118 = vld [vmem:[#allocation3 + $0x39] sm:$0xff]
      %v4119 = vld [vmem:[#allocation3 + $0x41] sm:$0xff]
      %v4120 = vld [vmem:[#allocation3 + $0x49] sm:$0xff]
      %v4121 = vld [vmem:[#allocation3 + $0x51] sm:$0xff]
      %v4122 = vld [vmem:[#allocation3 + $0x59] sm:$0xff]
      %v4123 = vld [vmem:[#allocation3 + $0x61] sm:$0xff]
      %v4124 = vld [vmem:[#allocation3 + $0x69] sm:$0xff]
      %v4125 = vld [vmem:[#allocation3 + $0x71] sm:$0xff]
      %v4126 = vld [vmem:[#allocation3 + $0x79] sm:$0xff]
      %v4127 = vld [vmem:[#allocation3 + $0x81] sm:$0xff]
      %v4128 = vld [vmem:[#allocation3 + $0x89] sm:$0xff]
      %4145 = vrot.lane.b32.xlu0 %v4113, 32
      %v4146 = vpop.permute.xlu0 %4145
      %4147 = vrot.lane.b32.xlu0 %v4114, 32
      %v4148 = vpop.permute.xlu0 %4147
      %4149 = vrot.lane.b32.xlu0 %v4115, 32
      %v4150 = vpop.permute.xlu0 %4149
      %4151 = vrot.lane.b32.xlu0 %v4116, 32
      %v4152 = vpop.permute.xlu0 %4151
      %4153 = vrot.lane.b32.xlu0 %v4117, 32
      %v4154 = vpop.permute.xlu0 %4153
      %4155 = vrot.lane.b32.xlu0 %v4118, 32
      %v4156 = vpop.permute.xlu0 %4155
      %4157 = vrot.lane.b32.xlu0 %v4119, 32
      %v4158 = vpop.permute.xlu0 %4157
      %4159 = vrot.lane.b32.xlu0 %v4120, 32
      %v4160 = vpop.permute.xlu0 %4159
      %4161 = vrot.lane.b32.xlu0 %v4121, 32
      %v4162 = vpop.permute.xlu0 %4161
      %4163 = vrot.lane.b32.xlu0 %v4122, 32
      %v4164 = vpop.permute.xlu0 %4163
      %4165 = vrot.lane.b32.xlu0 %v4123, 32
      %v4166 = vpop.permute.xlu0 %4165
      %4167 = vrot.lane.b32.xlu0 %v4124, 32
      %v4168 = vpop.permute.xlu0 %4167
      %4169 = vrot.lane.b32.xlu0 %v4125, 32
      %v4170 = vpop.permute.xlu0 %4169
      %4171 = vrot.lane.b32.xlu0 %v4126, 32
      %v4172 = vpop.permute.xlu0 %4171
      %4173 = vrot.lane.b32.xlu0 %v4127, 32
      %v4174 = vpop.permute.xlu0 %4173
      %4175 = vrot.lane.b32.xlu0 %v4128, 32
      %v4176 = vpop.permute.xlu0 %4175
      %4193 = vst.msk [vmem:[#allocation4 + $0x8] sm:$0xff] %vm707, %v4146
      %4194 = vst.msk [vmem:[#allocation4 + $0x20] sm:$0xff] %vm707, %v4148
      %4195 = vst.msk [vmem:[#allocation4 + $0x38] sm:$0xff] %vm707, %v4150
      %4196 = vst.msk [vmem:[#allocation4 + $0x50] sm:$0xff] %vm707, %v4152
      %4197 = vst.msk [vmem:[#allocation4 + $0x68] sm:$0xff] %vm707, %v4154
      %4198 = vst.msk [vmem:[#allocation4 + $0x80] sm:$0xff] %vm707, %v4156
      %4199 = vst.msk [vmem:[#allocation4 + $0x98] sm:$0xff] %vm707, %v4158
      %4200 = vst.msk [vmem:[#allocation4 + $0xb0] sm:$0xff] %vm707, %v4160
      %4201 = vst.msk [vmem:[#allocation4 + $0xc8] sm:$0xff] %vm707, %v4162
      %4202 = vst.msk [vmem:[#allocation4 + $0xe0] sm:$0xff] %vm707, %v4164
      %4203 = vst.msk [vmem:[#allocation4 + $0xf8] sm:$0xff] %vm707, %v4166
      %4204 = vst.msk [vmem:[#allocation4 + $0x110] sm:$0xff] %vm707, %v4168
      %4205 = vst.msk [vmem:[#allocation4 + $0x128] sm:$0xff] %vm707, %v4170
      %4206 = vst.msk [vmem:[#allocation4 + $0x140] sm:$0xff] %vm707, %v4172
      %4207 = vst.msk [vmem:[#allocation4 + $0x158] sm:$0xff] %vm707, %v4174
      %4208 = vst.msk [vmem:[#allocation4 + $0x170] sm:$0xff] %vm707, %v4176
      %v4209 = vld [vmem:[#allocation3 + $0x19] sm:$0xff]
      %v4210 = vld [vmem:[#allocation3 + $0x21] sm:$0xff]
      %v4211 = vld [vmem:[#allocation3 + $0x29] sm:$0xff]
      %v4212 = vld [vmem:[#allocation3 + $0x31] sm:$0xff]
      %v4213 = vld [vmem:[#allocation3 + $0x39] sm:$0xff]
      %v4214 = vld [vmem:[#allocation3 + $0x41] sm:$0xff]
      %v4215 = vld [vmem:[#allocation3 + $0x49] sm:$0xff]
      %v4216 = vld [vmem:[#allocation3 + $0x51] sm:$0xff]
      %v4217 = vld [vmem:[#allocation3 + $0x59] sm:$0xff]
      %v4218 = vld [vmem:[#allocation3 + $0x61] sm:$0xff]
      %v4219 = vld [vmem:[#allocation3 + $0x69] sm:$0xff]
      %v4220 = vld [vmem:[#allocation3 + $0x71] sm:$0xff]
      %v4221 = vld [vmem:[#allocation3 + $0x79] sm:$0xff]
      %v4222 = vld [vmem:[#allocation3 + $0x81] sm:$0xff]
      %v4223 = vld [vmem:[#allocation3 + $0x89] sm:$0xff]
      %v4224 = vld [vmem:[#allocation3 + $0x91] sm:$0xff]
      %4241 = vrot.lane.b32.xlu0 %v4209, 64
      %v4242 = vpop.permute.xlu0 %4241
      %4243 = vrot.lane.b32.xlu0 %v4210, 64
      %v4244 = vpop.permute.xlu0 %4243
      %4245 = vrot.lane.b32.xlu0 %v4211, 64
      %v4246 = vpop.permute.xlu0 %4245
      %4247 = vrot.lane.b32.xlu0 %v4212, 64
      %v4248 = vpop.permute.xlu0 %4247
      %4249 = vrot.lane.b32.xlu0 %v4213, 64
      %v4250 = vpop.permute.xlu0 %4249
      %4251 = vrot.lane.b32.xlu0 %v4214, 64
      %v4252 = vpop.permute.xlu0 %4251
      %4253 = vrot.lane.b32.xlu0 %v4215, 64
      %v4254 = vpop.permute.xlu0 %4253
      %4255 = vrot.lane.b32.xlu0 %v4216, 64
      %v4256 = vpop.permute.xlu0 %4255
      %4257 = vrot.lane.b32.xlu0 %v4217, 64
      %v4258 = vpop.permute.xlu0 %4257
      %4259 = vrot.lane.b32.xlu0 %v4218, 64
      %v4260 = vpop.permute.xlu0 %4259
      %4261 = vrot.lane.b32.xlu0 %v4219, 64
      %v4262 = vpop.permute.xlu0 %4261
      %4263 = vrot.lane.b32.xlu0 %v4220, 64
      %v4264 = vpop.permute.xlu0 %4263
      %4265 = vrot.lane.b32.xlu0 %v4221, 64
      %v4266 = vpop.permute.xlu0 %4265
      %4267 = vrot.lane.b32.xlu0 %v4222, 64
      %v4268 = vpop.permute.xlu0 %4267
      %4269 = vrot.lane.b32.xlu0 %v4223, 64
      %v4270 = vpop.permute.xlu0 %4269
      %4271 = vrot.lane.b32.xlu0 %v4224, 64
      %v4272 = vpop.permute.xlu0 %4271
      %4289 = vst.msk [vmem:[#allocation4 + $0x8] sm:$0xff] %vm804, %v4242
      %4290 = vst.msk [vmem:[#allocation4 + $0x20] sm:$0xff] %vm804, %v4244
      %4291 = vst.msk [vmem:[#allocation4 + $0x38] sm:$0xff] %vm804, %v4246
      %4292 = vst.msk [vmem:[#allocation4 + $0x50] sm:$0xff] %vm804, %v4248
      %4293 = vst.msk [vmem:[#allocation4 + $0x68] sm:$0xff] %vm804, %v4250
      %4294 = vst.msk [vmem:[#allocation4 + $0x80] sm:$0xff] %vm804, %v4252
      %4295 = vst.msk [vmem:[#allocation4 + $0x98] sm:$0xff] %vm804, %v4254
      %4296 = vst.msk [vmem:[#allocation4 + $0xb0] sm:$0xff] %vm804, %v4256
      %4297 = vst.msk [vmem:[#allocation4 + $0xc8] sm:$0xff] %vm804, %v4258
      %4298 = vst.msk [vmem:[#allocation4 + $0xe0] sm:$0xff] %vm804, %v4260
      %4299 = vst.msk [vmem:[#allocation4 + $0xf8] sm:$0xff] %vm804, %v4262
      %4300 = vst.msk [vmem:[#allocation4 + $0x110] sm:$0xff] %vm804, %v4264
      %4301 = vst.msk [vmem:[#allocation4 + $0x128] sm:$0xff] %vm804, %v4266
      %4302 = vst.msk [vmem:[#allocation4 + $0x140] sm:$0xff] %vm804, %v4268
      %4303 = vst.msk [vmem:[#allocation4 + $0x158] sm:$0xff] %vm804, %v4270
      %4304 = vst.msk [vmem:[#allocation4 + $0x170] sm:$0xff] %vm804, %v4272
      %v4305 = vld [vmem:[#allocation3 + $0x1a] sm:$0xff]
      %v4306 = vld [vmem:[#allocation3 + $0x22] sm:$0xff]
      %v4307 = vld [vmem:[#allocation3 + $0x2a] sm:$0xff]
      %v4308 = vld [vmem:[#allocation3 + $0x32] sm:$0xff]
      %v4309 = vld [vmem:[#allocation3 + $0x3a] sm:$0xff]
      %v4310 = vld [vmem:[#allocation3 + $0x42] sm:$0xff]
      %v4311 = vld [vmem:[#allocation3 + $0x4a] sm:$0xff]
      %v4312 = vld [vmem:[#allocation3 + $0x52] sm:$0xff]
      %v4313 = vld [vmem:[#allocation3 + $0x5a] sm:$0xff]
      %v4314 = vld [vmem:[#allocation3 + $0x62] sm:$0xff]
      %v4315 = vld [vmem:[#allocation3 + $0x6a] sm:$0xff]
      %v4316 = vld [vmem:[#allocation3 + $0x72] sm:$0xff]
      %v4317 = vld [vmem:[#allocation3 + $0x7a] sm:$0xff]
      %v4318 = vld [vmem:[#allocation3 + $0x82] sm:$0xff]
      %v4319 = vld [vmem:[#allocation3 + $0x8a] sm:$0xff]
      %v4320 = vld [vmem:[#allocation3 + $0x92] sm:$0xff]
      %4337 = vrot.lane.b32.xlu0 %v4305, 96
      %v4338 = vpop.permute.xlu0 %4337
      %4339 = vrot.lane.b32.xlu0 %v4306, 96
      %v4340 = vpop.permute.xlu0 %4339
      %4341 = vrot.lane.b32.xlu0 %v4307, 96
      %v4342 = vpop.permute.xlu0 %4341
      %4343 = vrot.lane.b32.xlu0 %v4308, 96
      %v4344 = vpop.permute.xlu0 %4343
      %4345 = vrot.lane.b32.xlu0 %v4309, 96
      %v4346 = vpop.permute.xlu0 %4345
      %4347 = vrot.lane.b32.xlu0 %v4310, 96
      %v4348 = vpop.permute.xlu0 %4347
      %4349 = vrot.lane.b32.xlu0 %v4311, 96
      %v4350 = vpop.permute.xlu0 %4349
      %4351 = vrot.lane.b32.xlu0 %v4312, 96
      %v4352 = vpop.permute.xlu0 %4351
      %4353 = vrot.lane.b32.xlu0 %v4313, 96
      %v4354 = vpop.permute.xlu0 %4353
      %4355 = vrot.lane.b32.xlu0 %v4314, 96
      %v4356 = vpop.permute.xlu0 %4355
      %4357 = vrot.lane.b32.xlu0 %v4315, 96
      %v4358 = vpop.permute.xlu0 %4357
      %4359 = vrot.lane.b32.xlu0 %v4316, 96
      %v4360 = vpop.permute.xlu0 %4359
      %4361 = vrot.lane.b32.xlu0 %v4317, 96
      %v4362 = vpop.permute.xlu0 %4361
      %4363 = vrot.lane.b32.xlu0 %v4318, 96
      %v4364 = vpop.permute.xlu0 %4363
      %4365 = vrot.lane.b32.xlu0 %v4319, 96
      %v4366 = vpop.permute.xlu0 %4365
      %4367 = vrot.lane.b32.xlu0 %v4320, 96
      %v4368 = vpop.permute.xlu0 %4367
      %4385 = vst.msk [vmem:[#allocation4 + $0x8] sm:$0xff] %vm901, %v4338
      %4386 = vst.msk [vmem:[#allocation4 + $0x20] sm:$0xff] %vm901, %v4340
      %4387 = vst.msk [vmem:[#allocation4 + $0x38] sm:$0xff] %vm901, %v4342
      %4388 = vst.msk [vmem:[#allocation4 + $0x50] sm:$0xff] %vm901, %v4344
      %4389 = vst.msk [vmem:[#allocation4 + $0x68] sm:$0xff] %vm901, %v4346
      %4390 = vst.msk [vmem:[#allocation4 + $0x80] sm:$0xff] %vm901, %v4348
      %4391 = vst.msk [vmem:[#allocation4 + $0x98] sm:$0xff] %vm901, %v4350
      %4392 = vst.msk [vmem:[#allocation4 + $0xb0] sm:$0xff] %vm901, %v4352
      %4393 = vst.msk [vmem:[#allocation4 + $0xc8] sm:$0xff] %vm901, %v4354
      %4394 = vst.msk [vmem:[#allocation4 + $0xe0] sm:$0xff] %vm901, %v4356
      %4395 = vst.msk [vmem:[#allocation4 + $0xf8] sm:$0xff] %vm901, %v4358
      %4396 = vst.msk [vmem:[#allocation4 + $0x110] sm:$0xff] %vm901, %v4360
      %4397 = vst.msk [vmem:[#allocation4 + $0x128] sm:$0xff] %vm901, %v4362
      %4398 = vst.msk [vmem:[#allocation4 + $0x140] sm:$0xff] %vm901, %v4364
      %4399 = vst.msk [vmem:[#allocation4 + $0x158] sm:$0xff] %vm901, %v4366
      %4400 = vst.msk [vmem:[#allocation4 + $0x170] sm:$0xff] %vm901, %v4368
      %v4401 = vld [vmem:[#allocation3 + $0x1b] sm:$0xff]
      %v4402 = vld [vmem:[#allocation3 + $0x23] sm:$0xff]
      %v4403 = vld [vmem:[#allocation3 + $0x2b] sm:$0xff]
      %v4404 = vld [vmem:[#allocation3 + $0x33] sm:$0xff]
      %v4405 = vld [vmem:[#allocation3 + $0x3b] sm:$0xff]
      %v4406 = vld [vmem:[#allocation3 + $0x43] sm:$0xff]
      %v4407 = vld [vmem:[#allocation3 + $0x4b] sm:$0xff]
      %v4408 = vld [vmem:[#allocation3 + $0x53] sm:$0xff]
      %v4409 = vld [vmem:[#allocation3 + $0x5b] sm:$0xff]
      %v4410 = vld [vmem:[#allocation3 + $0x63] sm:$0xff]
      %v4411 = vld [vmem:[#allocation3 + $0x6b] sm:$0xff]
      %v4412 = vld [vmem:[#allocation3 + $0x73] sm:$0xff]
      %v4413 = vld [vmem:[#allocation3 + $0x7b] sm:$0xff]
      %v4414 = vld [vmem:[#allocation3 + $0x83] sm:$0xff]
      %v4415 = vld [vmem:[#allocation3 + $0x8b] sm:$0xff]
      %v4416 = vld [vmem:[#allocation3 + $0x93] sm:$0xff]
      %4417 = vst.msk [vmem:[#allocation4 + $0x10] sm:$0xff] %vm304, %v4401
      %4418 = vst.msk [vmem:[#allocation4 + $0x28] sm:$0xff] %vm304, %v4402
      %4419 = vst.msk [vmem:[#allocation4 + $0x40] sm:$0xff] %vm304, %v4403
      %4420 = vst.msk [vmem:[#allocation4 + $0x58] sm:$0xff] %vm304, %v4404
      %4421 = vst.msk [vmem:[#allocation4 + $0x70] sm:$0xff] %vm304, %v4405
      %4422 = vst.msk [vmem:[#allocation4 + $0x88] sm:$0xff] %vm304, %v4406
      %4423 = vst.msk [vmem:[#allocation4 + $0xa0] sm:$0xff] %vm304, %v4407
      %4424 = vst.msk [vmem:[#allocation4 + $0xb8] sm:$0xff] %vm304, %v4408
      %4425 = vst.msk [vmem:[#allocation4 + $0xd0] sm:$0xff] %vm304, %v4409
      %4426 = vst.msk [vmem:[#allocation4 + $0xe8] sm:$0xff] %vm304, %v4410
      %4427 = vst.msk [vmem:[#allocation4 + $0x100] sm:$0xff] %vm304, %v4411
      %4428 = vst.msk [vmem:[#allocation4 + $0x118] sm:$0xff] %vm304, %v4412
      %4429 = vst.msk [vmem:[#allocation4 + $0x130] sm:$0xff] %vm304, %v4413
      %4430 = vst.msk [vmem:[#allocation4 + $0x148] sm:$0xff] %vm304, %v4414
      %4431 = vst.msk [vmem:[#allocation4 + $0x160] sm:$0xff] %vm304, %v4415
      %4432 = vst.msk [vmem:[#allocation4 + $0x178] sm:$0xff] %vm304, %v4416
      %v4433 = vld [vmem:[#allocation4] sm:$0xff]
      %v4434 = vld [vmem:[#allocation4 + $0x8] sm:$0xff]
      %v4435 = vld [vmem:[#allocation4 + $0x10] sm:$0xff]
      %v4436 = vld [vmem:[#allocation4 + $0x18] sm:$0xff]
      %v4437 = vld [vmem:[#allocation4 + $0x20] sm:$0xff]
      %v4438 = vld [vmem:[#allocation4 + $0x28] sm:$0xff]
      %v4439 = vld [vmem:[#allocation4 + $0x30] sm:$0xff]
      %v4440 = vld [vmem:[#allocation4 + $0x38] sm:$0xff]
      %v4441 = vld [vmem:[#allocation4 + $0x40] sm:$0xff]
      %v4442 = vld [vmem:[#allocation4 + $0x48] sm:$0xff]
      %v4443 = vld [vmem:[#allocation4 + $0x50] sm:$0xff]
      %v4444 = vld [vmem:[#allocation4 + $0x58] sm:$0xff]
      %v4445 = vld [vmem:[#allocation4 + $0x60] sm:$0xff]
      %v4446 = vld [vmem:[#allocation4 + $0x68] sm:$0xff]
      %v4447 = vld [vmem:[#allocation4 + $0x70] sm:$0xff]
      %v4448 = vld [vmem:[#allocation4 + $0x78] sm:$0xff]
      %v4449 = vld [vmem:[#allocation4 + $0x80] sm:$0xff]
      %v4450 = vld [vmem:[#allocation4 + $0x88] sm:$0xff]
      %v4451 = vld [vmem:[#allocation4 + $0x90] sm:$0xff]
      %v4452 = vld [vmem:[#allocation4 + $0x98] sm:$0xff]
      %v4453 = vld [vmem:[#allocation4 + $0xa0] sm:$0xff]
      %v4454 = vld [vmem:[#allocation4 + $0xa8] sm:$0xff]
      %v4455 = vld [vmem:[#allocation4 + $0xb0] sm:$0xff]
      %v4456 = vld [vmem:[#allocation4 + $0xb8] sm:$0xff]
      %v4457 = vld [vmem:[#allocation4 + $0xc0] sm:$0xff]
      %v4458 = vld [vmem:[#allocation4 + $0xc8] sm:$0xff]
      %v4459 = vld [vmem:[#allocation4 + $0xd0] sm:$0xff]
      %v4460 = vld [vmem:[#allocation4 + $0xd8] sm:$0xff]
      %v4461 = vld [vmem:[#allocation4 + $0xe0] sm:$0xff]
      %v4462 = vld [vmem:[#allocation4 + $0xe8] sm:$0xff]
      %v4463 = vld [vmem:[#allocation4 + $0xf0] sm:$0xff]
      %v4464 = vld [vmem:[#allocation4 + $0xf8] sm:$0xff]
      %v4465 = vld [vmem:[#allocation4 + $0x100] sm:$0xff]
      %v4466 = vld [vmem:[#allocation4 + $0x108] sm:$0xff]
      %v4467 = vld [vmem:[#allocation4 + $0x110] sm:$0xff]
      %v4468 = vld [vmem:[#allocation4 + $0x118] sm:$0xff]
      %v4469 = vld [vmem:[#allocation4 + $0x120] sm:$0xff]
      %v4470 = vld [vmem:[#allocation4 + $0x128] sm:$0xff]
      %v4471 = vld [vmem:[#allocation4 + $0x130] sm:$0xff]
      %v4472 = vld [vmem:[#allocation4 + $0x138] sm:$0xff]
      %v4473 = vld [vmem:[#allocation4 + $0x140] sm:$0xff]
      %v4474 = vld [vmem:[#allocation4 + $0x148] sm:$0xff]
      %v4475 = vld [vmem:[#allocation4 + $0x150] sm:$0xff]
      %v4476 = vld [vmem:[#allocation4 + $0x158] sm:$0xff]
      %v4477 = vld [vmem:[#allocation4 + $0x160] sm:$0xff]
      %v4478 = vld [vmem:[#allocation4 + $0x168] sm:$0xff]
      %v4479 = vld [vmem:[#allocation4 + $0x170] sm:$0xff]
      %v4480 = vld [vmem:[#allocation4 + $0x178] sm:$0xff]
      %v4481 = vld [vmem:[%s4 + $0x360] sm:$0xff]
      %v4482 = vld [vmem:[%s4 + $0x368] sm:$0xff]
      %v4483 = vld [vmem:[%s4 + $0x370] sm:$0xff]
      %v4484 = vld [vmem:[%s4 + $0x378] sm:$0xff]
      %v4485 = vld [vmem:[%s4 + $0x380] sm:$0xff]
      %v4486 = vld [vmem:[%s4 + $0x388] sm:$0xff]
      %v4487 = vld [vmem:[%s4 + $0x390] sm:$0xff]
      %v4488 = vld [vmem:[%s4 + $0x398] sm:$0xff]
      %v4489 = vld [vmem:[%s4 + $0x3a0] sm:$0xff]
      %v4490 = vld [vmem:[%s4 + $0x3a8] sm:$0xff]
      %v4491 = vld [vmem:[%s4 + $0x3b0] sm:$0xff]
      %v4492 = vld [vmem:[%s4 + $0x3b8] sm:$0xff]
      %v4493 = vld [vmem:[%s4 + $0x3c0] sm:$0xff]
      %v4494 = vld [vmem:[%s4 + $0x3c8] sm:$0xff]
      %v4495 = vld [vmem:[%s4 + $0x3d0] sm:$0xff]
      %v4496 = vld [vmem:[%s4 + $0x3d8] sm:$0xff]
      %v4497 = vld [vmem:[%s4 + $0x3e0] sm:$0xff]
      %v4498 = vld [vmem:[%s4 + $0x3e8] sm:$0xff]
      %v4499 = vld [vmem:[%s4 + $0x3f0] sm:$0xff]
      %v4500 = vld [vmem:[%s4 + $0x3f8] sm:$0xff]
      %v4501 = vld [vmem:[%s4 + $0x400] sm:$0xff]
      %v4502 = vld [vmem:[%s4 + $0x408] sm:$0xff]
      %v4503 = vld [vmem:[%s4 + $0x410] sm:$0xff]
      %v4504 = vld [vmem:[%s4 + $0x418] sm:$0xff]
      %v4505 = vld [vmem:[%s4 + $0x420] sm:$0xff]
      %v4506 = vld [vmem:[%s4 + $0x428] sm:$0xff]
      %v4507 = vld [vmem:[%s4 + $0x430] sm:$0xff]
      %v4508 = vld [vmem:[%s4 + $0x438] sm:$0xff]
      %v4509 = vld [vmem:[%s4 + $0x440] sm:$0xff]
      %v4510 = vld [vmem:[%s4 + $0x448] sm:$0xff]
      %v4511 = vld [vmem:[%s4 + $0x450] sm:$0xff]
      %v4512 = vld [vmem:[%s4 + $0x458] sm:$0xff]
      %v4513 = vld [vmem:[%s4 + $0x460] sm:$0xff]
      %v4514 = vld [vmem:[%s4 + $0x468] sm:$0xff]
      %v4515 = vld [vmem:[%s4 + $0x470] sm:$0xff]
      %v4516 = vld [vmem:[%s4 + $0x478] sm:$0xff]
      %v4517 = vld [vmem:[%s5 + $0x3] sm:$0x1]
      %v4518 = vperm.slane %v4517, 0
      %v4520 = vsel %vm304, %v4435, 0
      %v4523 = vsel %vm304, %v4438, 0
      %v4526 = vsel %vm304, %v4441, 0
      %v4529 = vsel %vm304, %v4444, 0
      %v4532 = vsel %vm304, %v4447, 0
      %v4535 = vsel %vm304, %v4450, 0
      %v4538 = vsel %vm304, %v4453, 0
      %v4541 = vsel %vm304, %v4456, 0
      %v4544 = vsel %vm304, %v4459, 0
      %v4547 = vsel %vm304, %v4462, 0
      %v4550 = vsel %vm304, %v4465, 0
      %v4553 = vsel %vm304, %v4468, 0
      %v4556 = vsel %vm304, %v4471, 0
      %v4559 = vsel %vm304, %v4474, 0
      %v4562 = vsel %vm304, %v4477, 0
      %v4565 = vsel %vm304, %v4480, 0
      %4567 = vmatpush.msra.mxu0 %v4496
      %4568 = vmatpush.msra.mxu0 %v4495
      %4569 = vmatpush.msra.mxu0 %v4494
      %4570 = vmatpush.msra.mxu0 %v4493
      %4571 = vmatpush.msra.mxu0 %v4492
      %4572 = vmatpush.msra.mxu0 %v4491
      %4573 = vmatpush.msra.mxu0 %v4490
      %4574 = vmatpush.msra.mxu0 %v4489
      %4575 = vmatpush.msra.mxu0 %v4488
      %4576 = vmatpush.msra.mxu0 %v4487
      %4577 = vmatpush.msra.mxu0 %v4486
      %4578 = vmatpush.msra.mxu0 %v4485
      %4579 = vmatpush.msra.mxu0 %v4484
      %4580 = vmatpush.msra.mxu0 %v4483
      %4581 = vmatpush.msra.mxu0 %v4482
      %4582 = vmatpush.msra.mxu0 %v4481
      %4583 = vmatmul.f32.gmra.mxu0 %v4433
      %v4584 = vpop.f32.mrf.mxu0
      %v4585 = vadd.f32 %v4518, %v4584
      %4586 = vmatmul.f32.gmra.mxu0 %v4436
      %v4587 = vpop.f32.mrf.mxu0
      %v4588 = vadd.f32 %v4518, %v4587
      %4589 = vmatmul.f32.gmra.mxu0 %v4439
      %v4590 = vpop.f32.mrf.mxu0
      %v4591 = vadd.f32 %v4518, %v4590
      %4592 = vmatmul.f32.gmra.mxu0 %v4442
      %v4593 = vpop.f32.mrf.mxu0
      %v4594 = vadd.f32 %v4518, %v4593
      %4595 = vmatmul.f32.gmra.mxu0 %v4445
      %v4596 = vpop.f32.mrf.mxu0
      %v4597 = vadd.f32 %v4518, %v4596
      %4598 = vmatmul.f32.gmra.mxu0 %v4448
      %v4599 = vpop.f32.mrf.mxu0
      %v4600 = vadd.f32 %v4518, %v4599
      %4601 = vmatmul.f32.gmra.mxu0 %v4451
      %v4602 = vpop.f32.mrf.mxu0
      %v4603 = vadd.f32 %v4518, %v4602
      %4604 = vmatmul.f32.gmra.mxu0 %v4454
      %v4605 = vpop.f32.mrf.mxu0
      %v4606 = vadd.f32 %v4518, %v4605
      %4607 = vmatmul.f32.gmra.mxu0 %v4457
      %v4608 = vpop.f32.mrf.mxu0
      %v4609 = vadd.f32 %v4518, %v4608
      %4610 = vmatmul.f32.gmra.mxu0 %v4460
      %v4611 = vpop.f32.mrf.mxu0
      %v4612 = vadd.f32 %v4518, %v4611
      %4613 = vmatmul.f32.gmra.mxu0 %v4463
      %v4614 = vpop.f32.mrf.mxu0
      %v4615 = vadd.f32 %v4518, %v4614
      %4616 = vmatmul.f32.gmra.mxu0 %v4466
      %v4617 = vpop.f32.mrf.mxu0
      %v4618 = vadd.f32 %v4518, %v4617
      %4619 = vmatmul.f32.gmra.mxu0 %v4469
      %v4620 = vpop.f32.mrf.mxu0
      %v4621 = vadd.f32 %v4518, %v4620
      %4622 = vmatmul.f32.gmra.mxu0 %v4472
      %v4623 = vpop.f32.mrf.mxu0
      %v4624 = vadd.f32 %v4518, %v4623
      %4625 = vmatmul.f32.gmra.mxu0 %v4475
      %v4626 = vpop.f32.mrf.mxu0
      %v4627 = vadd.f32 %v4518, %v4626
      %4628 = vmatmul.f32.gmra.mxu0 %v4478
      %v4629 = vpop.f32.mrf.mxu0
      %v4630 = vadd.f32 %v4518, %v4629
      %4631 = vdwg.mxu0
      %4632 = vmatpush.msra.mxu0 %v4512
      %4633 = vmatpush.msra.mxu0 %v4511
      %4634 = vmatpush.msra.mxu0 %v4510
      %4635 = vmatpush.msra.mxu0 %v4509
      %4636 = vmatpush.msra.mxu0 %v4508
      %4637 = vmatpush.msra.mxu0 %v4507
      %4638 = vmatpush.msra.mxu0 %v4506
      %4639 = vmatpush.msra.mxu0 %v4505
      %4640 = vmatpush.msra.mxu0 %v4504
      %4641 = vmatpush.msra.mxu0 %v4503
      %4642 = vmatpush.msra.mxu0 %v4502
      %4643 = vmatpush.msra.mxu0 %v4501
      %4644 = vmatpush.msra.mxu0 %v4500
      %4645 = vmatpush.msra.mxu0 %v4499
      %4646 = vmatpush.msra.mxu0 %v4498
      %4647 = vmatpush.msra.mxu0 %v4497
      %4648 = vmatmul.f32.gmra.mxu0 %v4434
      %v4649 = vpop.f32.mrf.mxu0
      %v4650 = vadd.f32 %v4585, %v4649
      %4651 = vmatmul.f32.gmra.mxu0 %v4437
      %v4652 = vpop.f32.mrf.mxu0
      %v4653 = vadd.f32 %v4588, %v4652
      %4654 = vmatmul.f32.gmra.mxu0 %v4440
      %v4655 = vpop.f32.mrf.mxu0
      %v4656 = vadd.f32 %v4591, %v4655
      %4657 = vmatmul.f32.gmra.mxu0 %v4443
      %v4658 = vpop.f32.mrf.mxu0
      %v4659 = vadd.f32 %v4594, %v4658
      %4660 = vmatmul.f32.gmra.mxu0 %v4446
      %v4661 = vpop.f32.mrf.mxu0
      %v4662 = vadd.f32 %v4597, %v4661
      %4663 = vmatmul.f32.gmra.mxu0 %v4449
      %v4664 = vpop.f32.mrf.mxu0
      %v4665 = vadd.f32 %v4600, %v4664
      %4666 = vmatmul.f32.gmra.mxu0 %v4452
      %v4667 = vpop.f32.mrf.mxu0
      %v4668 = vadd.f32 %v4603, %v4667
      %4669 = vmatmul.f32.gmra.mxu0 %v4455
      %v4670 = vpop.f32.mrf.mxu0
      %v4671 = vadd.f32 %v4606, %v4670
      %4672 = vmatmul.f32.gmra.mxu0 %v4458
      %v4673 = vpop.f32.mrf.mxu0
      %v4674 = vadd.f32 %v4609, %v4673
      %4675 = vmatmul.f32.gmra.mxu0 %v4461
      %v4676 = vpop.f32.mrf.mxu0
      %v4677 = vadd.f32 %v4612, %v4676
      %4678 = vmatmul.f32.gmra.mxu0 %v4464
      %v4679 = vpop.f32.mrf.mxu0
      %v4680 = vadd.f32 %v4615, %v4679
      %4681 = vmatmul.f32.gmra.mxu0 %v4467
      %v4682 = vpop.f32.mrf.mxu0
      %v4683 = vadd.f32 %v4618, %v4682
      %4684 = vmatmul.f32.gmra.mxu0 %v4470
      %v4685 = vpop.f32.mrf.mxu0
      %v4686 = vadd.f32 %v4621, %v4685
      %4687 = vmatmul.f32.gmra.mxu0 %v4473
      %v4688 = vpop.f32.mrf.mxu0
      %v4689 = vadd.f32 %v4624, %v4688
      %4690 = vmatmul.f32.gmra.mxu0 %v4476
      %v4691 = vpop.f32.mrf.mxu0
      %v4692 = vadd.f32 %v4627, %v4691
      %4693 = vmatmul.f32.gmra.mxu0 %v4479
      %v4694 = vpop.f32.mrf.mxu0
      %v4695 = vadd.f32 %v4630, %v4694
      %4696 = vdwg.mxu0
      %4697 = vmatpush.msra.mxu0 0.0
      %4698 = vmatpush.msra.mxu0 0.0
      %4699 = vmatpush.msra.mxu0 0.0
      %4700 = vmatpush.msra.mxu0 0.0
      %4701 = vmatpush.msra.mxu0 0.0
      %4702 = vmatpush.msra.mxu0 0.0
      %4703 = vmatpush.msra.mxu0 0.0
      %4704 = vmatpush.msra.mxu0 0.0
      %4705 = vmatpush.msra.mxu0 0.0
      %4706 = vmatpush.msra.mxu0 0.0
      %4707 = vmatpush.msra.mxu0 0.0
      %4708 = vmatpush.msra.mxu0 0.0
      %4709 = vmatpush.msra.mxu0 %v4516
      %4710 = vmatpush.msra.mxu0 %v4515
      %4711 = vmatpush.msra.mxu0 %v4514
      %4712 = vmatpush.msra.mxu0 %v4513
      %4713 = vmatmul.f32.gmra.mxu0 %v4520
      %v4714 = vpop.f32.mrf.mxu0
      %v4715 = vadd.f32 %v4650, %v4714
      %4716 = vmatmul.f32.gmra.mxu0 %v4523
      %v4717 = vpop.f32.mrf.mxu0
      %v4718 = vadd.f32 %v4653, %v4717
      %4719 = vmatmul.f32.gmra.mxu0 %v4526
      %v4720 = vpop.f32.mrf.mxu0
      %v4721 = vadd.f32 %v4656, %v4720
      %4722 = vmatmul.f32.gmra.mxu0 %v4529
      %v4723 = vpop.f32.mrf.mxu0
      %v4724 = vadd.f32 %v4659, %v4723
      %4725 = vmatmul.f32.gmra.mxu0 %v4532
      %v4726 = vpop.f32.mrf.mxu0
      %v4727 = vadd.f32 %v4662, %v4726
      %4728 = vmatmul.f32.gmra.mxu0 %v4535
      %v4729 = vpop.f32.mrf.mxu0
      %v4730 = vadd.f32 %v4665, %v4729
      %4731 = vmatmul.f32.gmra.mxu0 %v4538
      %v4732 = vpop.f32.mrf.mxu0
      %v4733 = vadd.f32 %v4668, %v4732
      %4734 = vmatmul.f32.gmra.mxu0 %v4541
      %v4735 = vpop.f32.mrf.mxu0
      %v4736 = vadd.f32 %v4671, %v4735
      %4737 = vmatmul.f32.gmra.mxu0 %v4544
      %v4738 = vpop.f32.mrf.mxu0
      %v4739 = vadd.f32 %v4674, %v4738
      %4740 = vmatmul.f32.gmra.mxu0 %v4547
      %v4741 = vpop.f32.mrf.mxu0
      %v4742 = vadd.f32 %v4677, %v4741
      %4743 = vmatmul.f32.gmra.mxu0 %v4550
      %v4744 = vpop.f32.mrf.mxu0
      %v4745 = vadd.f32 %v4680, %v4744
      %4746 = vmatmul.f32.gmra.mxu0 %v4553
      %v4747 = vpop.f32.mrf.mxu0
      %v4748 = vadd.f32 %v4683, %v4747
      %4749 = vmatmul.f32.gmra.mxu0 %v4556
      %v4750 = vpop.f32.mrf.mxu0
      %v4751 = vadd.f32 %v4686, %v4750
      %4752 = vmatmul.f32.gmra.mxu0 %v4559
      %v4753 = vpop.f32.mrf.mxu0
      %v4754 = vadd.f32 %v4689, %v4753
      %4755 = vmatmul.f32.gmra.mxu0 %v4562
      %v4756 = vpop.f32.mrf.mxu0
      %v4757 = vadd.f32 %v4692, %v4756
      %4758 = vmatmul.f32.gmra.mxu0 %v4565
      %v4759 = vpop.f32.mrf.mxu0
      %v4760 = vadd.f32 %v4695, %v4759
      %4761 = vdwg.mxu0
      %v4762 = vld [vmem:[#allocation2 + $0x10] sm:$0xff]
      %v4763 = vld [vmem:[#allocation2 + $0x18] sm:$0xff]
      %v4764 = vld [vmem:[#allocation2 + $0x20] sm:$0xff]
      %v4765 = vld [vmem:[#allocation2 + $0x28] sm:$0xff]
      %v4766 = vld [vmem:[#allocation2 + $0x30] sm:$0xff]
      %v4767 = vld [vmem:[#allocation2 + $0x38] sm:$0xff]
      %v4768 = vld [vmem:[#allocation2 + $0x40] sm:$0xff]
      %v4769 = vld [vmem:[#allocation2 + $0x48] sm:$0xff]
      %v4770 = vld [vmem:[#allocation2 + $0x50] sm:$0xff]
      %v4771 = vld [vmem:[#allocation2 + $0x58] sm:$0xff]
      %v4772 = vld [vmem:[#allocation2 + $0x60] sm:$0xff]
      %v4773 = vld [vmem:[#allocation2 + $0x68] sm:$0xff]
      %v4774 = vld [vmem:[#allocation2 + $0x70] sm:$0xff]
      %v4775 = vld [vmem:[#allocation2 + $0x78] sm:$0xff]
      %v4776 = vld [vmem:[#allocation2 + $0x80] sm:$0xff]
      %v4777 = vld [vmem:[#allocation2 + $0x88] sm:$0xff]
      %v4778 = vadd.f32 %v4715, %v4762
      %v4779 = vadd.f32 %v4718, %v4763
      %v4780 = vadd.f32 %v4721, %v4764
      %v4781 = vadd.f32 %v4724, %v4765
      %v4782 = vadd.f32 %v4727, %v4766
      %v4783 = vadd.f32 %v4730, %v4767
      %v4784 = vadd.f32 %v4733, %v4768
      %v4785 = vadd.f32 %v4736, %v4769
      %v4786 = vadd.f32 %v4739, %v4770
      %v4787 = vadd.f32 %v4742, %v4771
      %v4788 = vadd.f32 %v4745, %v4772
      %v4789 = vadd.f32 %v4748, %v4773
      %v4790 = vadd.f32 %v4751, %v4774
      %v4791 = vadd.f32 %v4754, %v4775
      %v4792 = vadd.f32 %v4757, %v4776
      %v4793 = vadd.f32 %v4760, %v4777
      %v4794 = vmul.f32 %v4778, %v486
      %v4795 = vmul.f32 %v4779, %v491
      %v4796 = vmul.f32 %v4780, %v496
      %v4797 = vmul.f32 %v4781, %v501
      %v4798 = vmul.f32 %v4782, %v506
      %v4799 = vmul.f32 %v4783, %v511
      %v4800 = vmul.f32 %v4784, %v516
      %v4801 = vmul.f32 %v4785, %v521
      %v4802 = vmul.f32 %v4786, %v526
      %v4803 = vmul.f32 %v4787, %v531
      %v4804 = vmul.f32 %v4788, %v536
      %v4805 = vmul.f32 %v4789, %v541
      %v4806 = vmul.f32 %v4790, %v546
      %v4807 = vmul.f32 %v4791, %v551
      %v4808 = vmul.f32 %v4792, %v556
      %v4809 = vmul.f32 %v4793, %v561
      %v4810 = vld [vmem:[%s6] sm:$0xf]
      %v4811 = vld [vmem:[%s7] sm:$0xf]
      %4813 = vset.pattern.permute.xlu0 0
      %4814 = vperm.xlu0 %4813, %v4811
      %v4815 = vpop.permute.xlu0 %4814
      %v4818 = vsel %vm304, %v4810, 0
      %v4821 = vsel %vm304, %v4794, 0
      %v4824 = vsel %vm304, %v4795, 0
      %v4827 = vsel %vm304, %v4796, 0
      %v4830 = vsel %vm304, %v4797, 0
      %v4833 = vsel %vm304, %v4798, 0
      %v4836 = vsel %vm304, %v4799, 0
      %v4839 = vsel %vm304, %v4800, 0
      %v4842 = vsel %vm304, %v4801, 0
      %v4845 = vsel %vm304, %v4802, 0
      %v4848 = vsel %vm304, %v4803, 0
      %v4851 = vsel %vm304, %v4804, 0
      %v4854 = vsel %vm304, %v4805, 0
      %v4857 = vsel %vm304, %v4806, 0
      %v4860 = vsel %vm304, %v4807, 0
      %v4863 = vsel %vm304, %v4808, 0
      %v4866 = vsel %vm304, %v4809, 0
      %4868 = vmatpush.xpose.msra.mxu0 %v4866
      %4869 = vmatpush.xpose.msra.mxu0 %v4863
      %4870 = vmatpush.xpose.msra.mxu0 %v4860
      %4871 = vmatpush.xpose.msra.mxu0 %v4857
      %4872 = vmatpush.xpose.msra.mxu0 %v4854
      %4873 = vmatpush.xpose.msra.mxu0 %v4851
      %4874 = vmatpush.xpose.msra.mxu0 %v4848
      %4875 = vmatpush.xpose.msra.mxu0 %v4845
      %4876 = vmatpush.xpose.msra.mxu0 %v4842
      %4877 = vmatpush.xpose.msra.mxu0 %v4839
      %4878 = vmatpush.xpose.msra.mxu0 %v4836
      %4879 = vmatpush.xpose.msra.mxu0 %v4833
      %4880 = vmatpush.xpose.msra.mxu0 %v4830
      %4881 = vmatpush.xpose.msra.mxu0 %v4827
      %4882 = vmatpush.xpose.msra.mxu0 %v4824
      %4883 = vmatpush.xpose.msra.mxu0 %v4821
      %4884 = vmatmul.f32.gmra.mxu0 %v4818
      %v4885 = vpop.f32.mrf.mxu0
      %v4886 = vadd.f32 %v4815, %v4885
      %4887 = vdwg.mxu0
      %4888 = vst [vmem:[%s303] sm:$0xf] %v4886
      %p4889 = scmp.lt.s32.totalorder %s19, 1
      %s4890 = scalar_select %p4889, %s19, 1
      %s4891 = smul.addr %s4890, 4
      %s4892 = scalar_lea.vmem %s8, %s4891
      // Predicated region
      $region53: #{extractor_forward.1} parent=51 // pred_check
        %p4893 = pneg %p210
      $region54: #{extractor_forward.1} parent=51 // pred_check_branch
        %4895 = sbr.rel (%p4893) target = $region56
      $region55: #{extractor_forward.1} parent=51 // pred_region
        _
      $region56: #{extractor_forward.1} parent=51 // pred_fallthru
        _
    $region52: #{extractor_forward.1} parent=5 // pred_fallthru
      _
    %p4896 = scmp.le.s32.totalorder 2, %s14
    // Predicated region
    $region57: #{extractor_forward.1} parent=5 // pred_check
      %p4897 = pneg %p4896
    $region58: #{extractor_forward.1} parent=5 // pred_check_branch
      %4899 = sbr.rel (%p4897) target = $region60
    $region59: #{extractor_forward.1} parent=5 // pred_region
      %s4900 = ssub.s32 %s14, 2
      // Predicated region
      $region61: #{extractor_forward.1} parent=59 // pred_check
        %p4901 = pneg %p216
      $region62: #{extractor_forward.1} parent=59 // pred_check_branch
        %4903 = sbr.rel (%p4901) target = $region64
      $region63: #{extractor_forward.1} parent=59 // pred_region
        %p4904 = scmp.lt.s32.totalorder %s20, 1
        %s4905 = scalar_select %p4904, %s20, 1
        %s4906 = smul.addr %s4905, 4
        %s4907 = scalar_lea.vmem %s8, %s4906
      $region64: #{extractor_forward.1} parent=59 // pred_fallthru
        _
    $region60: #{extractor_forward.1} parent=5 // pred_fallthru
      _
  $region6: #{extractor_forward.1} parent=0 // loop_footer
    %s18 = sadd.s32 1, %s14
  $region7: #{extractor_forward.1} parent=0 // loop_footer_branch
    %13 = sbr.rel target = $region3
  $region8: #{extractor_forward.1} parent=0 // loop_exit
    _

</llo_original>
